<compile_context>
chip_gen: v7x
topology: tpu7x:2x2x1
jax: 0.10.0
libtpu: 0.0.40
codegen_flags: <defaults>
</compile_context>

<pallas_src>
import collections
import functools
import math

import jax
import jax.numpy as jnp
from jax.experimental import pallas as pl
from jax.experimental.pallas import tpu as pltpu

LN_EPS = 1e-5  # torch.nn.LayerNorm default

VitConfig = collections.namedtuple(
    "VitConfig", ["img", "patch", "in_chans", "dim", "depth", "heads", "mlp_dim"]
)


# ----------------------------------------------------------------------------- helpers
def _round_up(x, m):
    return ((x + m - 1) // m) * m


def _choose_tm(m, tm_max):
    """Largest multiple of 8 that divides m and is <= tm_max (fallback: full m)."""
    best = None
    t = 8
    while t <= min(m, tm_max):
        if m % t == 0:
            best = t
        t += 8
    return best if best is not None else m


def _gelu(y):
    # tanh-approximate GELU (written out so kernel and reference match exactly).
    c = math.sqrt(2.0 / math.pi)
    return 0.5 * y * (1.0 + jnp.tanh(c * (y + 0.044715 * y * y * y)))


# ----------------------------------------------------------------------------- kernels
def _ln_linear_kernel(x_ref, g_ref, b_ref, w_ref, bias_ref, o_ref, *, act):
    # x:(TM,D)  g,b:(1,D)  w:(D,Do) bf16  bias:(1,Do)  o:(TM,Do)
    x = x_ref[...].astype(jnp.float32)
    g = g_ref[...].astype(jnp.float32)          # hoisted: loaded once per tile
    b = b_ref[...].astype(jnp.float32)
    bias = bias_ref[...].astype(jnp.float32)

    mean = jnp.mean(x, axis=-1, keepdims=True)
    xc = x - mean
    var = jnp.mean(xc * xc, axis=-1, keepdims=True)
    inv = jax.lax.rsqrt(var + LN_EPS)
    normed = (xc * inv) * g + b

    # bf16 operands into the MXU, f32 accumulation.
    y = jnp.dot(normed.astype(jnp.bfloat16), w_ref[...].astype(jnp.bfloat16),
                preferred_element_type=jnp.float32)
    y = y + bias
    if act == "gelu":
        y = _gelu(y)
    o_ref[...] = y.astype(o_ref.dtype)


def _linear_kernel(x_ref, w_ref, bias_ref, o_ref, *, act):
    # x:(TM,K)  w:(K,Do) bf16  bias:(1,Do)  o:(TM,Do)
    y = jnp.dot(x_ref[...].astype(jnp.bfloat16), w_ref[...].astype(jnp.bfloat16),
                preferred_element_type=jnp.float32)
    y = y + bias_ref[...].astype(jnp.float32)
    if act == "gelu":
        y = _gelu(y)
    o_ref[...] = y.astype(o_ref.dtype)


def _linear_res_kernel(x_ref, w_ref, bias_ref, res_ref, o_ref):
    # out = res + x @ w + bias   (residual fused into the matmul epilogue)
    y = jnp.dot(x_ref[...].astype(jnp.bfloat16), w_ref[...].astype(jnp.bfloat16),
                preferred_element_type=jnp.float32)
    y = y + bias_ref[...].astype(jnp.float32) + res_ref[...].astype(jnp.float32)
    o_ref[...] = y.astype(o_ref.dtype)


def _attn_kernel(qkv_ref, o_ref, *, heads, head_dim, n_valid, scale):
    # qkv:(1, Np, 3*D) in the layout produced by the fused QKV linear
    # o  :(1, Np, D)   lane-dense output slab (heads concatenated along last dim)
    Np = qkv_ref.shape[1]
    D = heads * head_dim

    # key-padding mask built in-kernel from static shapes (no mask tensor DMA)
    col = jax.lax.broadcasted_iota(jnp.int32, (Np, Np), 1)
    valid = col < n_valid

    outs = []
    for h in range(heads):                                   # small static unroll
        q = qkv_ref[0, :, h * head_dim:(h + 1) * head_dim].astype(jnp.bfloat16)
        k = qkv_ref[0, :, D + h * head_dim:D + (h + 1) * head_dim].astype(jnp.bfloat16)
        v = qkv_ref[0, :, 2 * D + h * head_dim:2 * D + (h + 1) * head_dim].astype(jnp.bfloat16)

        s = jnp.einsum("qd,kd->qk", q, k,
                       preferred_element_type=jnp.float32) * scale      # (Np, Np)
        s = jnp.where(valid, s, -1e30)                                   # mask pad keys
        m = jnp.max(s, axis=-1, keepdims=True)
        p = jnp.exp(s - m)
        l = jnp.sum(p, axis=-1, keepdims=True)
        o = jnp.einsum("qk,kd->qd", p.astype(jnp.bfloat16), v,
                       preferred_element_type=jnp.float32)
        outs.append(o * pl.reciprocal(l, approx=True))                   # EUP slot

    o_ref[0] = jnp.concatenate(outs, axis=-1).astype(o_ref.dtype)


def _pool_ln_kernel(x_ref, g_ref, b_ref, o_ref, *, n_valid):
    # x:(1, Np, D)  g,b:(1,1,D)  o:(1,1,D)
    # timm global_pool='avg' => mean over patch tokens (excl. cls, excl. padding),
    # then fc_norm LayerNorm on the pooled vector.
    x = x_ref[0].astype(jnp.float32)                         # (Np, D)
    row = jax.lax.broadcasted_iota(jnp.int32, x.shape, 0)
    keep = (row >= 1) & (row < n_valid)                      # drop cls + pad rows
    pooled = jnp.sum(jnp.where(keep, x, 0.0), axis=0, keepdims=True) / float(n_valid - 1)

    g = g_ref[0].astype(jnp.float32)
    b = b_ref[0].astype(jnp.float32)
    mean = jnp.mean(pooled, axis=-1, keepdims=True)
    xc = pooled - mean
    var = jnp.mean(xc * xc, axis=-1, keepdims=True)
    o_ref[0] = (xc * jax.lax.rsqrt(var + LN_EPS) * g + b).astype(o_ref.dtype)


# ----------------------------------------------------------------------------- wrappers
def ln_linear(x2, gamma, beta, w, bias, *, act=None, tm_max=256):
    """out = act(LayerNorm(x2) @ w + bias), row-tiled & pipelined."""
    M, D = x2.shape
    Do = w.shape[1]
    tm = _choose_tm(M, tm_max)
    flops = 2 * M * D * Do + 8 * M * D
    bytes_accessed = (x2.size * x2.dtype.itemsize + w.size * w.dtype.itemsize
                      + M * Do * 4 + 2 * D * 4 + Do * 4)
    return pl.pallas_call(
        functools.partial(_ln_linear_kernel, act=act),
        out_shape=jax.ShapeDtypeStruct((M, Do), jnp.float32),
        grid_spec=pltpu.PrefetchScalarGridSpec(
            num_scalar_prefetch=0,
            grid=(M // tm,),
            in_specs=[
                pl.BlockSpec((tm, D), lambda i: (i, 0)),
                pl.BlockSpec((1, D), lambda i: (0, 0)),
                pl.BlockSpec((1, D), lambda i: (0, 0)),
                pl.BlockSpec((D, Do), lambda i: (0, 0)),
                pl.BlockSpec((1, Do), lambda i: (0, 0)),
            ],
            out_specs=pl.BlockSpec((tm, Do), lambda i: (i, 0)),
        ),
        compiler_params=pltpu.CompilerParams(dimension_semantics=("parallel",)),
        cost_estimate=pl.CostEstimate(
            flops=flops,
            transcendentals=(M * Do if act == "gelu" else 0) + M,
            bytes_accessed=bytes_accessed),
    )(x2, gamma.reshape(1, D), beta.reshape(1, D), w, bias.reshape(1, Do))


def linear(x2, w, bias, *, act=None, tm_max=256):
    """out = act(x2 @ w + bias), row-tiled & pipelined."""
    M, K = x2.shape
    Do = w.shape[1]
    tm = _choose_tm(M, tm_max)
    flops = 2 * M * K * Do
    bytes_accessed = (x2.size * x2.dtype.itemsize + w.size * w.dtype.itemsize
                      + M * Do * 4 + Do * 4)
    return pl.pallas_call(
        functools.partial(_linear_kernel, act=act),
        out_shape=jax.ShapeDtypeStruct((M, Do), jnp.float32),
        grid_spec=pltpu.PrefetchScalarGridSpec(
            num_scalar_prefetch=0,
            grid=(M // tm,),
            in_specs=[
                pl.BlockSpec((tm, K), lambda i: (i, 0)),
                pl.BlockSpec((K, Do), lambda i: (0, 0)),
                pl.BlockSpec((1, Do), lambda i: (0, 0)),
            ],
            out_specs=pl.BlockSpec((tm, Do), lambda i: (i, 0)),
        ),
        compiler_params=pltpu.CompilerParams(dimension_semantics=("parallel",)),
        cost_estimate=pl.CostEstimate(
            flops=flops,
            transcendentals=(M * Do if act == "gelu" else 0),
            bytes_accessed=bytes_accessed),
    )(x2, w, bias.reshape(1, Do))


def linear_residual(x2, w, bias, res, *, tm_max=256):
    """out = res + x2 @ w + bias, row-tiled & pipelined (residual fused)."""
    M, K = x2.shape
    Do = w.shape[1]
    tm = _choose_tm(M, tm_max)
    flops = 2 * M * K * Do + M * Do
    bytes_accessed = (x2.size * x2.dtype.itemsize + w.size * w.dtype.itemsize
                      + res.size * res.dtype.itemsize + M * Do * 4 + Do * 4)
    return pl.pallas_call(
        _linear_res_kernel,
        out_shape=jax.ShapeDtypeStruct((M, Do), jnp.float32),
        grid_spec=pltpu.PrefetchScalarGridSpec(
            num_scalar_prefetch=0,
            grid=(M // tm,),
            in_specs=[
                pl.BlockSpec((tm, K), lambda i: (i, 0)),
                pl.BlockSpec((K, Do), lambda i: (0, 0)),
                pl.BlockSpec((1, Do), lambda i: (0, 0)),
                pl.BlockSpec((tm, Do), lambda i: (i, 0)),
            ],
            out_specs=pl.BlockSpec((tm, Do), lambda i: (i, 0)),
        ),
        compiler_params=pltpu.CompilerParams(dimension_semantics=("parallel",)),
        cost_estimate=pl.CostEstimate(
            flops=flops, transcendentals=0, bytes_accessed=bytes_accessed),
    )(x2, w, bias.reshape(1, Do), res)


def attention(qkv3, *, heads, head_dim, n_valid, scale):
    """qkv3: (B, Np, 3*D) in fused-QKV layout -> (B, Np, D) attention output."""
    B, Np, threeD = qkv3.shape
    D = heads * head_dim
    flops = 4 * B * Np * Np * D
    bytes_accessed = qkv3.size * qkv3.dtype.itemsize + B * Np * D * 4
    return pl.pallas_call(
        functools.partial(_attn_kernel, heads=heads, head_dim=head_dim,
                          n_valid=n_valid, scale=scale),
        out_shape=jax.ShapeDtypeStruct((B, Np, D), jnp.float32),
        grid_spec=pltpu.PrefetchScalarGridSpec(
            num_scalar_prefetch=0,
            grid=(B,),
            in_specs=[pl.BlockSpec((1, Np, threeD), lambda b: (b, 0, 0))],
            out_specs=pl.BlockSpec((1, Np, D), lambda b: (b, 0, 0)),
        ),
        compiler_params=pltpu.CompilerParams(dimension_semantics=("parallel",)),
        cost_estimate=pl.CostEstimate(
            flops=flops,
            transcendentals=B * heads * Np * Np,
            bytes_accessed=bytes_accessed),
    )(qkv3)


def pool_layernorm(tok, gamma, beta, *, n_valid):
    """Masked average over patch tokens + final LayerNorm (timm fc_norm), fused."""
    B, Np, D = tok.shape
    out = pl.pallas_call(
        functools.partial(_pool_ln_kernel, n_valid=n_valid),
        out_shape=jax.ShapeDtypeStruct((B, 1, D), jnp.float32),
        grid_spec=pltpu.PrefetchScalarGridSpec(
            num_scalar_prefetch=0,
            grid=(B,),
            in_specs=[
                pl.BlockSpec((1, Np, D), lambda b: (b, 0, 0)),
                pl.BlockSpec((1, 1, D), lambda b: (0, 0, 0)),
                pl.BlockSpec((1, 1, D), lambda b: (0, 0, 0)),
            ],
            out_specs=pl.BlockSpec((1, 1, D), lambda b: (b, 0, 0)),
        ),
        compiler_params=pltpu.CompilerParams(dimension_semantics=("parallel",)),
    )(tok, gamma.reshape(1, 1, D), beta.reshape(1, 1, D))
    return out.reshape(B, D)


# ----------------------------------------------------------------------------- full ViT forward
@functools.partial(jax.jit, static_argnames=("cfg", "tm_max"))
def vit_encode(params, x, cfg, tm_max=256):
    B, C, H, W = x.shape
    P, D, Hh = cfg.patch, cfg.dim, cfg.heads
    hd = D // Hh
    nH, nW = H // P, W // P
    n_patch = nH * nW
    N = n_patch + 1                       # + cls token
    N_pad = _round_up(N, 8)               # pad sequence so row tiles are 8-aligned
    scale = 1.0 / math.sqrt(hd)

    # --- patch embedding: unfold patches + Linear (Pallas) ---
    patches = (x.reshape(B, C, nH, P, nW, P)
                 .transpose(0, 2, 4, 1, 3, 5)
                 .reshape(B * n_patch, C * P * P))
    tok = linear(patches, params["patch_w"], params["patch_b"],
                 tm_max=tm_max).reshape(B, n_patch, D)

    # --- cls token + positional embedding, pad token axis ---
    cls = jnp.broadcast_to(params["cls"], (B, 1, D))
    tok = jnp.concatenate([cls, tok], axis=1) + params["pos"]
    tok = jnp.pad(tok, ((0, 0), (0, N_pad - N), (0, 0)))

    # --- transformer blocks ---
    for blk in params["blocks"]:
        xr = tok.reshape(B * N_pad, D)
        qkv = ln_linear(xr, blk["ln1_g"], blk["ln1_b"], blk["qkv_w"], blk["qkv_b"],
                        tm_max=tm_max)                                  # (B*Np, 3D)
        attn = attention(qkv.reshape(B, N_pad, 3 * D),
                         heads=Hh, head_dim=hd, n_valid=N, scale=scale)  # (B, Np, D)
        tok = linear_residual(attn.reshape(B * N_pad, D), blk["proj_w"], blk["proj_b"],
                              xr, tm_max=tm_max).reshape(B, N_pad, D)

        xr = tok.reshape(B * N_pad, D)
        h = ln_linear(xr, blk["ln2_g"], blk["ln2_b"], blk["fc1_w"], blk["fc1_b"],
                      act="gelu", tm_max=tm_max)
        tok = linear_residual(h, blk["fc2_w"], blk["fc2_b"], xr,
                              tm_max=tm_max).reshape(B, N_pad, D)

    # --- global_pool='avg' over patch tokens + fc_norm (num_classes=0) ---
    return pool_layernorm(tok, params["norm_g"], params["norm_b"], n_valid=N)


# ----------------------------------------------------------------------------- params
def init_params(key, cfg):
    C, P, D, depth, Dm = cfg.in_chans, cfg.patch, cfg.dim, cfg.depth, cfg.mlp_dim
    n_tok = (cfg.img // P) ** 2 + 1
    keys = iter(jax.random.split(key, 6 + 12 * depth))

    def wmat(shape, fan_in):
        w = jax.random.normal(next(keys), shape, dtype=jnp.float32) / math.sqrt(fan_in)
        return w.astype(jnp.bfloat16)     # weights kept in bf16 (MXU-native)

    def vec(shape, s):
        return s * jax.random.normal(next(keys), shape, dtype=jnp.float32)

    params = {
        "patch_w": wmat((C * P * P, D), C * P * P),
        "patch_b": vec((D,), 0.02),
        "cls": vec((1, 1, D), 0.02),
        "pos": vec((1, n_tok, D), 0.02),
        "norm_g": 1.0 + vec((D,), 0.05),
        "norm_b": vec((D,), 0.05),
        "blocks": [],
    }
    for _ in range(depth):
        params["blocks"].append({
            "ln1_g": 1.0 + vec((D,), 0.05),
            "ln1_b": vec((D,), 0.05),
            "qkv_w": wmat((D, 3 * D), D),
            "qkv_b": vec((3 * D,), 0.02),
            "proj_w": wmat((D, D), D),
            "proj_b": vec((D,), 0.02),
            "ln2_g": 1.0 + vec((D,), 0.05),
            "ln2_b": vec((D,), 0.05),
            "fc1_w": wmat((D, Dm), D),
            "fc1_b": vec((Dm,), 0.02),
            "fc2_w": wmat((Dm, D), Dm),
            "fc2_b": vec((D,), 0.02),
        })
    return params


# ----------------------------------------------------------------------------- pure-JAX reference
def _ref_ln(x, g, b):
    xf = x.astype(jnp.float32)
    mean = jnp.mean(xf, axis=-1, keepdims=True)
    xc = xf - mean
    var = jnp.mean(xc * xc, axis=-1, keepdims=True)
    return xc * jax.lax.rsqrt(var + LN_EPS) * g + b


def _ref_matmul(x, w_bf16, b):
    return jnp.dot(x.astype(jnp.bfloat16), w_bf16,
                   preferred_element_type=jnp.float32) + b


def reference_forward(params, x, cfg):
    B, C, H, W = x.shape
    P, D, Hh = cfg.patch, cfg.dim, cfg.heads
    hd = D // Hh
    nH, nW = H // P, W // P
    n_patch = nH * nW
    N = n_patch + 1
    scale = 1.0 / math.sqrt(hd)

    patches = (x.reshape(B, C, nH, P, nW, P)
                 .transpose(0, 2, 4, 1, 3, 5)
                 .reshape(B, n_patch, C * P * P))
    tok = _ref_matmul(patches, params["patch_w"], params["patch_b"])
    cls = jnp.broadcast_to(params["cls"], (B, 1, D))
    tok = jnp.concatenate([cls, tok], axis=1) + params["pos"]

    for blk in params["blocks"]:
        qkv = _ref_matmul(_ref_ln(tok, blk["ln1_g"], blk["ln1_b"]),
                          blk["qkv_w"], blk["qkv_b"])
        qkv = qkv.reshape(B, N, 3, Hh, hd).transpose(2, 0, 3, 1, 4)
        q, k, v = qkv[0], qkv[1], qkv[2]
        s = jnp.einsum("bhqd,bhkd->bhqk", q.astype(jnp.bfloat16), k.astype(jnp.bfloat16),
                       preferred_element_type=jnp.float32) * scale
        m = jnp.max(s, axis=-1, keepdims=True)
        p = jnp.exp(s - m)
        l = jnp.sum(p, axis=-1, keepdims=True)
        o = jnp.einsum("bhqk,bhkd->bhqd", p.astype(jnp.bfloat16), v.astype(jnp.bfloat16),
                       preferred_element_type=jnp.float32) / l
        o = o.transpose(0, 2, 1, 3).reshape(B, N, D)
        tok = tok + _ref_matmul(o, blk["proj_w"], blk["proj_b"])

        h = _ref_matmul(_ref_ln(tok, blk["ln2_g"], blk["ln2_b"]),
                        blk["fc1_w"], blk["fc1_b"])
        h = _gelu(h)
        tok = tok + _ref_matmul(h, blk["fc2_w"], blk["fc2_b"])

    pooled = jnp.mean(tok[:, 1:, :], axis=1)          # avg over patch tokens (excl. cls)
    return _ref_ln(pooled, params["norm_g"], params["norm_b"])   # fc_norm


# ----------------------------------------------------------------------------- demo
if __name__ == "__main__":
    # Scaled-down ViT: 32x32 image, 8x8 patches (16 patches + cls), dim 128, 4 heads,
    # 2 blocks, MLP 256 — same forward structure as vit_base_patch32_224.
    cfg = VitConfig(img=32, patch=8, in_chans=3, dim=128, depth=2, heads=4, mlp_dim=256)

    key = jax.random.PRNGKey(0)
    k_params, k_x = jax.random.split(key)
    params = init_params(k_params, cfg)
    x = jax.random.normal(k_x, (2, cfg.in_chans, cfg.img, cfg.img), dtype=jnp.float32)

    # tm_max=16 forces a multi-step row grid even at these toy sizes, exercising the
    # double-buffered pipeline; real sizes would use the default 256.
    out = vit_encode(params, x, cfg=cfg, tm_max=16)
    out = jax.block_until_ready(out)

    ref = reference_forward(params, x, cfg)
    assert out.shape == (2, cfg.dim), out.shape
    assert bool(jnp.all(jnp.isfinite(out)))
    max_err = float(jnp.max(jnp.abs(out - ref)))
    assert jnp.allclose(out, ref, atol=2e-2, rtol=2e-2), \
        f"mismatch vs reference (max abs err {max_err})"

    print("KERNEL_OK")
</pallas_src>

<mosaic_0001>
module attributes {stable_mosaic.version = 11 : i64} {
  func.func @_linear_kernel(%arg0: i32, %arg1: memref<16x192xf32, #tpu.memory_space<vmem>>, %arg2: memref<192x128xbf16, #tpu.memory_space<vmem>>, %arg3: memref<1x128xf32, #tpu.memory_space<vmem>>, %arg4: memref<16x128xf32, #tpu.memory_space<vmem>>) attributes {dimension_semantics = [#tpu.dimension_semantics<parallel>], iteration_bounds = array<i64: 2>, scalar_prefetch = 0 : i64, scratch_operands = 0 : i64, tpu.core_type = #tpu.core_type<tc>, window_params = [{transform_indices = @transform_0, window_bounds = array<i64: 16, 192>}, {pipeline_mode = #tpu.pipeline_mode<synchronous>, transform_indices = @transform_1, window_bounds = array<i64: 192, 128>}, {pipeline_mode = #tpu.pipeline_mode<synchronous>, transform_indices = @transform_2, window_bounds = array<i64: 1, 128>}, {transform_indices = @transform_3, window_bounds = array<i64: 16, 128>}]} {
    %c0 = arith.constant 0 : index
    %c0_0 = arith.constant 0 : index
    %0 = vector.load %arg1[%c0, %c0_0] : memref<16x192xf32, #tpu.memory_space<vmem>>, vector<16x192xf32>
    %1 = arith.truncf %0 : vector<16x192xf32> to vector<16x192xbf16>
    %c0_1 = arith.constant 0 : index
    %c0_2 = arith.constant 0 : index
    %2 = vector.load %arg2[%c0_1, %c0_2] : memref<192x128xbf16, #tpu.memory_space<vmem>>, vector<192x128xbf16>
    %cst = arith.constant dense<0.000000e+00> : vector<16x128xf32>
    %3 = tpu.matmul %1, %2, %cst {dimension_numbers = #tpu.dot_dimension_numbers<[1], [0], [0], [1], [0, 0, 1, 1], [], []>} : vector<16x192xbf16>, vector<192x128xbf16>, vector<16x128xf32> -> vector<16x128xf32>
    %c0_3 = arith.constant 0 : index
    %c0_4 = arith.constant 0 : index
    %4 = vector.load %arg3[%c0_3, %c0_4] : memref<1x128xf32, #tpu.memory_space<vmem>>, vector<1x128xf32>
    %5 = vector.broadcast %4 : vector<1x128xf32> to vector<16x128xf32>
    %6 = arith.addf %3, %5 : vector<16x128xf32>
    %c0_5 = arith.constant 0 : index
    %c0_6 = arith.constant 0 : index
    %7 = vector.load %arg4[%c0_5, %c0_6] : memref<16x128xf32, #tpu.memory_space<vmem>>, vector<16x128xf32>
    tpu.vector_store %arg4[%c0_5, %c0_6], %6 {strides = array<i32>} : memref<16x128xf32, #tpu.memory_space<vmem>>, vector<16x128xf32>,
    return
  }
  func.func @transform_0(%arg0: i32) -> (i32, i32) {
    %c0_i32 = arith.constant 0 : i32
    %c0_i32_0 = arith.constant 0 : i32
    return %arg0, %c0_i32 : i32, i32
  }
  func.func @transform_1(%arg0: i32) -> (i32, i32) {
    %c0_i32 = arith.constant 0 : i32
    %c0_i32_0 = arith.constant 0 : i32
    %c0_i32_1 = arith.constant 0 : i32
    return %c0_i32, %c0_i32_0 : i32, i32
  }
  func.func @transform_2(%arg0: i32) -> (i32, i32) {
    %c0_i32 = arith.constant 0 : i32
    %c0_i32_0 = arith.constant 0 : i32
    %c0_i32_1 = arith.constant 0 : i32
    return %c0_i32, %c0_i32_0 : i32, i32
  }
  func.func @transform_3(%arg0: i32) -> (i32, i32) {
    %c0_i32 = arith.constant 0 : i32
    %c0_i32_0 = arith.constant 0 : i32
    return %arg0, %c0_i32 : i32, i32
  }
}

module attributes {stable_mosaic.version = 11 : i64} {
  func.func @_ln_linear_kernel(%arg0: i32, %arg1: memref<16x128xf32, #tpu.memory_space<vmem>>, %arg2: memref<1x128xf32, #tpu.memory_space<vmem>>, %arg3: memref<1x128xf32, #tpu.memory_space<vmem>>, %arg4: memref<128x384xbf16, #tpu.memory_space<vmem>>, %arg5: memref<1x384xf32, #tpu.memory_space<vmem>>, %arg6: memref<16x384xf32, #tpu.memory_space<vmem>>) attributes {dimension_semantics = [#tpu.dimension_semantics<parallel>], iteration_bounds = array<i64: 3>, scalar_prefetch = 0 : i64, scratch_operands = 0 : i64, tpu.core_type = #tpu.core_type<tc>, window_params = [{transform_indices = @transform_0, window_bounds = array<i64: 16, 128>}, {pipeline_mode = #tpu.pipeline_mode<synchronous>, transform_indices = @transform_1, window_bounds = array<i64: 1, 128>}, {pipeline_mode = #tpu.pipeline_mode<synchronous>, transform_indices = @transform_2, window_bounds = array<i64: 1, 128>}, {pipeline_mode = #tpu.pipeline_mode<synchronous>, transform_indices = @transform_3, window_bounds = array<i64: 128, 384>}, {pipeline_mode = #tpu.pipeline_mode<synchronous>, transform_indices = @transform_4, window_bounds = array<i64: 1, 384>}, {transform_indices = @transform_5, window_bounds = array<i64: 16, 384>}]} {
    %c0 = arith.constant 0 : index
    %c0_0 = arith.constant 0 : index
    %0 = vector.load %arg1[%c0, %c0_0] : memref<16x128xf32, #tpu.memory_space<vmem>>, vector<16x128xf32>
    %c0_1 = arith.constant 0 : index
    %c0_2 = arith.constant 0 : index
    %1 = vector.load %arg2[%c0_1, %c0_2] : memref<1x128xf32, #tpu.memory_space<vmem>>, vector<1x128xf32>
    %c0_3 = arith.constant 0 : index
    %c0_4 = arith.constant 0 : index
    %2 = vector.load %arg3[%c0_3, %c0_4] : memref<1x128xf32, #tpu.memory_space<vmem>>, vector<1x128xf32>
    %c0_5 = arith.constant 0 : index
    %c0_6 = arith.constant 0 : index
    %3 = vector.load %arg5[%c0_5, %c0_6] : memref<1x384xf32, #tpu.memory_space<vmem>>, vector<1x384xf32>
    %cst = arith.constant dense<0.000000e+00> : vector<16xf32>
    %4 = vector.multi_reduction <add>, %0, %cst [1] : vector<16x128xf32> to vector<16xf32>
    %5 = vector.shape_cast %4 : vector<16xf32> to vector<16x1xf32>
    %cst_7 = arith.constant 1.280000e+02 : f32
    %6 = vector.broadcast %cst_7 : f32 to vector<16x1xf32>
    %7 = arith.divf %5, %6 : vector<16x1xf32>
    %8 = vector.broadcast %7 : vector<16x1xf32> to vector<16x128xf32>
    %9 = arith.subf %0, %8 : vector<16x128xf32>
    %10 = arith.mulf %9, %9 : vector<16x128xf32>
    %cst_8 = arith.constant dense<0.000000e+00> : vector<16xf32>
    %11 = vector.multi_reduction <add>, %10, %cst_8 [1] : vector<16x128xf32> to vector<16xf32>
    %12 = vector.shape_cast %11 : vector<16xf32> to vector<16x1xf32>
    %cst_9 = arith.constant 1.280000e+02 : f32
    %13 = vector.broadcast %cst_9 : f32 to vector<16x1xf32>
    %14 = arith.divf %12, %13 : vector<16x1xf32>
    %cst_10 = arith.constant 9.99999974E-6 : f32
    %15 = vector.broadcast %cst_10 : f32 to vector<16x1xf32>
    %16 = arith.addf %14, %15 : vector<16x1xf32>
    %17 = math.rsqrt %16 : vector<16x1xf32>
    %18 = vector.broadcast %17 : vector<16x1xf32> to vector<16x128xf32>
    %19 = arith.mulf %9, %18 : vector<16x128xf32>
    %20 = vector.broadcast %1 : vector<1x128xf32> to vector<16x128xf32>
    %21 = arith.mulf %19, %20 : vector<16x128xf32>
    %22 = vector.broadcast %2 : vector<1x128xf32> to vector<16x128xf32>
    %23 = arith.addf %21, %22 : vector<16x128xf32>
    %24 = arith.truncf %23 : vector<16x128xf32> to vector<16x128xbf16>
    %c0_11 = arith.constant 0 : index
    %c0_12 = arith.constant 0 : index
    %25 = vector.load %arg4[%c0_11, %c0_12] : memref<128x384xbf16, #tpu.memory_space<vmem>>, vector<128x384xbf16>
    %cst_13 = arith.constant dense<0.000000e+00> : vector<16x384xf32>
    %26 = tpu.matmul %24, %25, %cst_13 {dimension_numbers = #tpu.dot_dimension_numbers<[1], [0], [0], [1], [0, 0, 1, 1], [], []>} : vector<16x128xbf16>, vector<128x384xbf16>, vector<16x384xf32> -> vector<16x384xf32>
    %27 = vector.broadcast %3 : vector<1x384xf32> to vector<16x384xf32>
    %28 = arith.addf %26, %27 : vector<16x384xf32>
    %c0_14 = arith.constant 0 : index
    %c0_15 = arith.constant 0 : index
    %29 = vector.load %arg6[%c0_14, %c0_15] : memref<16x384xf32, #tpu.memory_space<vmem>>, vector<16x384xf32>
    tpu.vector_store %arg6[%c0_14, %c0_15], %28 {strides = array<i32>} : memref<16x384xf32, #tpu.memory_space<vmem>>, vector<16x384xf32>,
    return
  }
  func.func @transform_0(%arg0: i32) -> (i32, i32) {
    %c0_i32 = arith.constant 0 : i32
    %c0_i32_0 = arith.constant 0 : i32
    return %arg0, %c0_i32 : i32, i32
  }
  func.func @transform_1(%arg0: i32) -> (i32, i32) {
    %c0_i32 = arith.constant 0 : i32
    %c0_i32_0 = arith.constant 0 : i32
    %c0_i32_1 = arith.constant 0 : i32
    return %c0_i32, %c0_i32_0 : i32, i32
  }
  func.func @transform_2(%arg0: i32) -> (i32, i32) {
    %c0_i32 = arith.constant 0 : i32
    %c0_i32_0 = arith.constant 0 : i32
    %c0_i32_1 = arith.constant 0 : i32
    return %c0_i32, %c0_i32_0 : i32, i32
  }
  func.func @transform_3(%arg0: i32) -> (i32, i32) {
    %c0_i32 = arith.constant 0 : i32
    %c0_i32_0 = arith.constant 0 : i32
    %c0_i32_1 = arith.constant 0 : i32
    return %c0_i32, %c0_i32_0 : i32, i32
  }
  func.func @transform_4(%arg0: i32) -> (i32, i32) {
    %c0_i32 = arith.constant 0 : i32
    %c0_i32_0 = arith.constant 0 : i32
    %c0_i32_1 = arith.constant 0 : i32
    return %c0_i32, %c0_i32_0 : i32, i32
  }
  func.func @transform_5(%arg0: i32) -> (i32, i32) {
    %c0_i32 = arith.constant 0 : i32
    %c0_i32_0 = arith.constant 0 : i32
    return %arg0, %c0_i32 : i32, i32
  }
}

module attributes {stable_mosaic.version = 11 : i64} {
  func.func @_linear_res_kernel(%arg0: i32, %arg1: memref<16x128xf32, #tpu.memory_space<vmem>>, %arg2: memref<128x128xbf16, #tpu.memory_space<vmem>>, %arg3: memref<1x128xf32, #tpu.memory_space<vmem>>, %arg4: memref<16x128xf32, #tpu.memory_space<vmem>>, %arg5: memref<16x128xf32, #tpu.memory_space<vmem>>) attributes {dimension_semantics = [#tpu.dimension_semantics<parallel>], iteration_bounds = array<i64: 3>, scalar_prefetch = 0 : i64, scratch_operands = 0 : i64, tpu.core_type = #tpu.core_type<tc>, window_params = [{transform_indices = @transform_0, window_bounds = array<i64: 16, 128>}, {pipeline_mode = #tpu.pipeline_mode<synchronous>, transform_indices = @transform_1, window_bounds = array<i64: 128, 128>}, {pipeline_mode = #tpu.pipeline_mode<synchronous>, transform_indices = @transform_2, window_bounds = array<i64: 1, 128>}, {transform_indices = @transform_3, window_bounds = array<i64: 16, 128>}, {transform_indices = @transform_4, window_bounds = array<i64: 16, 128>}]} {
    %c0 = arith.constant 0 : index
    %c0_0 = arith.constant 0 : index
    %0 = vector.load %arg1[%c0, %c0_0] : memref<16x128xf32, #tpu.memory_space<vmem>>, vector<16x128xf32>
    %1 = arith.truncf %0 : vector<16x128xf32> to vector<16x128xbf16>
    %c0_1 = arith.constant 0 : index
    %c0_2 = arith.constant 0 : index
    %2 = vector.load %arg2[%c0_1, %c0_2] : memref<128x128xbf16, #tpu.memory_space<vmem>>, vector<128x128xbf16>
    %cst = arith.constant dense<0.000000e+00> : vector<16x128xf32>
    %3 = tpu.matmul %1, %2, %cst {dimension_numbers = #tpu.dot_dimension_numbers<[1], [0], [0], [1], [0, 0, 1, 1], [], []>} : vector<16x128xbf16>, vector<128x128xbf16>, vector<16x128xf32> -> vector<16x128xf32>
    %c0_3 = arith.constant 0 : index
    %c0_4 = arith.constant 0 : index
    %4 = vector.load %arg3[%c0_3, %c0_4] : memref<1x128xf32, #tpu.memory_space<vmem>>, vector<1x128xf32>
    %5 = vector.broadcast %4 : vector<1x128xf32> to vector<16x128xf32>
    %6 = arith.addf %3, %5 : vector<16x128xf32>
    %c0_5 = arith.constant 0 : index
    %c0_6 = arith.constant 0 : index
    %7 = vector.load %arg4[%c0_5, %c0_6] : memref<16x128xf32, #tpu.memory_space<vmem>>, vector<16x128xf32>
    %8 = arith.addf %6, %7 : vector<16x128xf32>
    %c0_7 = arith.constant 0 : index
    %c0_8 = arith.constant 0 : index
    %9 = vector.load %arg5[%c0_7, %c0_8] : memref<16x128xf32, #tpu.memory_space<vmem>>, vector<16x128xf32>
    tpu.vector_store %arg5[%c0_7, %c0_8], %8 {strides = array<i32>} : memref<16x128xf32, #tpu.memory_space<vmem>>, vector<16x128xf32>,
    return
  }
  func.func @transform_0(%arg0: i32) -> (i32, i32) {
    %c0_i32 = arith.constant 0 : i32
    %c0_i32_0 = arith.constant 0 : i32
    return %arg0, %c0_i32 : i32, i32
  }
  func.func @transform_1(%arg0: i32) -> (i32, i32) {
    %c0_i32 = arith.constant 0 : i32
    %c0_i32_0 = arith.constant 0 : i32
    %c0_i32_1 = arith.constant 0 : i32
    return %c0_i32, %c0_i32_0 : i32, i32
  }
  func.func @transform_2(%arg0: i32) -> (i32, i32) {
    %c0_i32 = arith.constant 0 : i32
    %c0_i32_0 = arith.constant 0 : i32
    %c0_i32_1 = arith.constant 0 : i32
    return %c0_i32, %c0_i32_0 : i32, i32
  }
  func.func @transform_3(%arg0: i32) -> (i32, i32) {
    %c0_i32 = arith.constant 0 : i32
    %c0_i32_0 = arith.constant 0 : i32
    return %arg0, %c0_i32 : i32, i32
  }
  func.func @transform_4(%arg0: i32) -> (i32, i32) {
    %c0_i32 = arith.constant 0 : i32
    %c0_i32_0 = arith.constant 0 : i32
    return %arg0, %c0_i32 : i32, i32
  }
}

module attributes {stable_mosaic.version = 11 : i64} {
  func.func @_attn_kernel(%arg0: i32, %arg1: memref<1x24x384xf32, #tpu.memory_space<vmem>>, %arg2: memref<1x24x128xf32, #tpu.memory_space<vmem>>) attributes {dimension_semantics = [#tpu.dimension_semantics<parallel>], iteration_bounds = array<i64: 2>, scalar_prefetch = 0 : i64, scratch_operands = 0 : i64, tpu.core_type = #tpu.core_type<tc>, window_params = [{transform_indices = @transform_0, window_bounds = array<i64: 1, 24, 384>}, {transform_indices = @transform_1, window_bounds = array<i64: 1, 24, 128>}]} {
    %0 = tpu.iota {dimensions = array<i32: 1>} : vector<24x24xi32>
    %c17_i32 = arith.constant 17 : i32
    %1 = vector.broadcast %c17_i32 : i32 to vector<24x24xi32>
    %2 = arith.cmpi slt, %0, %1 : vector<24x24xi32>
    %c0 = arith.constant 0 : index
    %c0_0 = arith.constant 0 : index
    %c0_1 = arith.constant 0 : index
    %3 = vector.load %arg1[%c0, %c0_0, %c0_1] : memref<1x24x384xf32, #tpu.memory_space<vmem>>, vector<1x24x32xf32>
    %4 = vector.shape_cast %3 : vector<1x24x32xf32> to vector<24x32xf32>
    %5 = arith.truncf %4 : vector<24x32xf32> to vector<24x32xbf16>
    %c0_2 = arith.constant 0 : index
    %c0_3 = arith.constant 0 : index
    %c128 = arith.constant 128 : index
    %6 = vector.load %arg1[%c0_2, %c0_3, %c128] : memref<1x24x384xf32, #tpu.memory_space<vmem>>, vector<1x24x32xf32>
    %7 = vector.shape_cast %6 : vector<1x24x32xf32> to vector<24x32xf32>
    %8 = arith.truncf %7 : vector<24x32xf32> to vector<24x32xbf16>
    %c0_4 = arith.constant 0 : index
    %c0_5 = arith.constant 0 : index
    %c256 = arith.constant 256 : index
    %9 = vector.load %arg1[%c0_4, %c0_5, %c256] : memref<1x24x384xf32, #tpu.memory_space<vmem>>, vector<1x24x32xf32>
    %10 = vector.shape_cast %9 : vector<1x24x32xf32> to vector<24x32xf32>
    %11 = arith.truncf %10 : vector<24x32xf32> to vector<24x32xbf16>
    "tpu.trace_start"() <{level = 10 : i32, message = "qd,kd->qk"}> : () -> ()
    %cst = arith.constant dense<0.000000e+00> : vector<24x24xf32>
    %12 = tpu.matmul %5, %8, %cst {dimension_numbers = #tpu.dot_dimension_numbers<[1], [1], [0], [0], [0, 0, 1, 0], [], []>} : vector<24x32xbf16>, vector<24x32xbf16>, vector<24x24xf32> -> vector<24x24xf32>
    "tpu.trace_stop"() : () -> ()
    %cst_6 = arith.constant 0.176776692 : f32
    %13 = vector.broadcast %cst_6 : f32 to vector<24x24xf32>
    %14 = arith.mulf %12, %13 : vector<24x24xf32>
    %cst_7 = arith.constant -1.000000e+30 : f32
    %15 = vector.broadcast %cst_7 : f32 to vector<24x24xf32>
    %16 = arith.select %2, %14, %15 : vector<24x24xi1>, vector<24x24xf32>
    %cst_8 = arith.constant dense<0xFF800000> : vector<24xf32>
    %17 = vector.multi_reduction <maximumf>, %16, %cst_8 [1] : vector<24x24xf32> to vector<24xf32>
    %18 = vector.shape_cast %17 : vector<24xf32> to vector<24x1xf32>
    %19 = vector.broadcast %18 : vector<24x1xf32> to vector<24x24xf32>
    %20 = arith.subf %16, %19 : vector<24x24xf32>
    %21 = math.exp %20 : vector<24x24xf32>
    %cst_9 = arith.constant dense<0.000000e+00> : vector<24xf32>
    %22 = vector.multi_reduction <add>, %21, %cst_9 [1] : vector<24x24xf32> to vector<24xf32>
    %23 = vector.shape_cast %22 : vector<24xf32> to vector<24x1xf32>
    %24 = arith.truncf %21 : vector<24x24xf32> to vector<24x24xbf16>
    "tpu.trace_start"() <{level = 10 : i32, message = "qk,kd->qd"}> : () -> ()
    %cst_10 = arith.constant dense<0.000000e+00> : vector<24x32xf32>
    %25 = tpu.matmul %24, %11, %cst_10 {dimension_numbers = #tpu.dot_dimension_numbers<[1], [0], [0], [1], [0, 0, 1, 1], [], []>} : vector<24x24xbf16>, vector<24x32xbf16>, vector<24x32xf32> -> vector<24x32xf32>
    "tpu.trace_stop"() : () -> ()
    %26 = tpu.reciprocal %23 {approx = true} : vector<24x1xf32> -> vector<24x1xf32>
    %27 = vector.broadcast %26 : vector<24x1xf32> to vector<24x32xf32>
    %28 = arith.mulf %25, %27 : vector<24x32xf32>
    %c0_11 = arith.constant 0 : index
    %c0_12 = arith.constant 0 : index
    %c32 = arith.constant 32 : index
    %29 = vector.load %arg1[%c0_11, %c0_12, %c32] : memref<1x24x384xf32, #tpu.memory_space<vmem>>, vector<1x24x32xf32>
    %30 = vector.shape_cast %29 : vector<1x24x32xf32> to vector<24x32xf32>
    %31 = arith.truncf %30 : vector<24x32xf32> to vector<24x32xbf16>
    %c0_13 = arith.constant 0 : index
    %c0_14 = arith.constant 0 : index
    %c160 = arith.constant 160 : index
    %32 = vector.load %arg1[%c0_13, %c0_14, %c160] : memref<1x24x384xf32, #tpu.memory_space<vmem>>, vector<1x24x32xf32>
    %33 = vector.shape_cast %32 : vector<1x24x32xf32> to vector<24x32xf32>
    %34 = arith.truncf %33 : vector<24x32xf32> to vector<24x32xbf16>
    %c0_15 = arith.constant 0 : index
    %c0_16 = arith.constant 0 : index
    %c288 = arith.constant 288 : index
    %35 = vector.load %arg1[%c0_15, %c0_16, %c288] : memref<1x24x384xf32, #tpu.memory_space<vmem>>, vector<1x24x32xf32>
    %36 = vector.shape_cast %35 : vector<1x24x32xf32> to vector<24x32xf32>
    %37 = arith.truncf %36 : vector<24x32xf32> to vector<24x32xbf16>
    "tpu.trace_start"() <{level = 10 : i32, message = "qd,kd->qk"}> : () -> ()
    %cst_17 = arith.constant dense<0.000000e+00> : vector<24x24xf32>
    %38 = tpu.matmul %31, %34, %cst_17 {dimension_numbers = #tpu.dot_dimension_numbers<[1], [1], [0], [0], [0, 0, 1, 0], [], []>} : vector<24x32xbf16>, vector<24x32xbf16>, vector<24x24xf32> -> vector<24x24xf32>
    "tpu.trace_stop"() : () -> ()
    %cst_18 = arith.constant 0.176776692 : f32
    %39 = vector.broadcast %cst_18 : f32 to vector<24x24xf32>
    %40 = arith.mulf %38, %39 : vector<24x24xf32>
    %cst_19 = arith.constant -1.000000e+30 : f32
    %41 = vector.broadcast %cst_19 : f32 to vector<24x24xf32>
    %42 = arith.select %2, %40, %41 : vector<24x24xi1>, vector<24x24xf32>
    %cst_20 = arith.constant dense<0xFF800000> : vector<24xf32>
    %43 = vector.multi_reduction <maximumf>, %42, %cst_20 [1] : vector<24x24xf32> to vector<24xf32>
    %44 = vector.shape_cast %43 : vector<24xf32> to vector<24x1xf32>
    %45 = vector.broadcast %44 : vector<24x1xf32> to vector<24x24xf32>
    %46 = arith.subf %42, %45 : vector<24x24xf32>
    %47 = math.exp %46 : vector<24x24xf32>
    %cst_21 = arith.constant dense<0.000000e+00> : vector<24xf32>
    %48 = vector.multi_reduction <add>, %47, %cst_21 [1] : vector<24x24xf32> to vector<24xf32>
    %49 = vector.shape_cast %48 : vector<24xf32> to vector<24x1xf32>
    %50 = arith.truncf %47 : vector<24x24xf32> to vector<24x24xbf16>
    "tpu.trace_start"() <{level = 10 : i32, message = "qk,kd->qd"}> : () -> ()
    %cst_22 = arith.constant dense<0.000000e+00> : vector<24x32xf32>
    %51 = tpu.matmul %50, %37, %cst_22 {dimension_numbers = #tpu.dot_dimension_numbers<[1], [0], [0], [1], [0, 0, 1, 1], [], []>} : vector<24x24xbf16>, vector<24x32xbf16>, vector<24x32xf32> -> vector<24x32xf32>
    "tpu.trace_stop"() : () -> ()
    %52 = tpu.reciprocal %49 {approx = true} : vector<24x1xf32> -> vector<24x1xf32>
    %53 = vector.broadcast %52 : vector<24x1xf32> to vector<24x32xf32>
    %54 = arith.mulf %51, %53 : vector<24x32xf32>
    %c0_23 = arith.constant 0 : index
    %c0_24 = arith.constant 0 : index
    %c64 = arith.constant 64 : index
    %55 = vector.load %arg1[%c0_23, %c0_24, %c64] : memref<1x24x384xf32, #tpu.memory_space<vmem>>, vector<1x24x32xf32>
    %56 = vector.shape_cast %55 : vector<1x24x32xf32> to vector<24x32xf32>
    %57 = arith.truncf %56 : vector<24x32xf32> to vector<24x32xbf16>
    %c0_25 = arith.constant 0 : index
    %c0_26 = arith.constant 0 : index
    %c192 = arith.constant 192 : index
    %58 = vector.load %arg1[%c0_25, %c0_26, %c192] : memref<1x24x384xf32, #tpu.memory_space<vmem>>, vector<1x24x32xf32>
    %59 = vector.shape_cast %58 : vector<1x24x32xf32> to vector<24x32xf32>
    %60 = arith.truncf %59 : vector<24x32xf32> to vector<24x32xbf16>
    %c0_27 = arith.constant 0 : index
    %c0_28 = arith.constant 0 : index
    %c320 = arith.constant 320 : index
    %61 = vector.load %arg1[%c0_27, %c0_28, %c320] : memref<1x24x384xf32, #tpu.memory_space<vmem>>, vector<1x24x32xf32>
    %62 = vector.shape_cast %61 : vector<1x24x32xf32> to vector<24x32xf32>
    %63 = arith.truncf %62 : vector<24x32xf32> to vector<24x32xbf16>
    "tpu.trace_start"() <{level = 10 : i32, message = "qd,kd->qk"}> : () -> ()
    %cst_29 = arith.constant dense<0.000000e+00> : vector<24x24xf32>
    %64 = tpu.matmul %57, %60, %cst_29 {dimension_numbers = #tpu.dot_dimension_numbers<[1], [1], [0], [0], [0, 0, 1, 0], [], []>} : vector<24x32xbf16>, vector<24x32xbf16>, vector<24x24xf32> -> vector<24x24xf32>
    "tpu.trace_stop"() : () -> ()
    %cst_30 = arith.constant 0.176776692 : f32
    %65 = vector.broadcast %cst_30 : f32 to vector<24x24xf32>
    %66 = arith.mulf %64, %65 : vector<24x24xf32>
    %cst_31 = arith.constant -1.000000e+30 : f32
    %67 = vector.broadcast %cst_31 : f32 to vector<24x24xf32>
    %68 = arith.select %2, %66, %67 : vector<24x24xi1>, vector<24x24xf32>
    %cst_32 = arith.constant dense<0xFF800000> : vector<24xf32>
    %69 = vector.multi_reduction <maximumf>, %68, %cst_32 [1] : vector<24x24xf32> to vector<24xf32>
    %70 = vector.shape_cast %69 : vector<24xf32> to vector<24x1xf32>
    %71 = vector.broadcast %70 : vector<24x1xf32> to vector<24x24xf32>
    %72 = arith.subf %68, %71 : vector<24x24xf32>
    %73 = math.exp %72 : vector<24x24xf32>
    %cst_33 = arith.constant dense<0.000000e+00> : vector<24xf32>
    %74 = vector.multi_reduction <add>, %73, %cst_33 [1] : vector<24x24xf32> to vector<24xf32>
    %75 = vector.shape_cast %74 : vector<24xf32> to vector<24x1xf32>
    %76 = arith.truncf %73 : vector<24x24xf32> to vector<24x24xbf16>
    "tpu.trace_start"() <{level = 10 : i32, message = "qk,kd->qd"}> : () -> ()
    %cst_34 = arith.constant dense<0.000000e+00> : vector<24x32xf32>
    %77 = tpu.matmul %76, %63, %cst_34 {dimension_numbers = #tpu.dot_dimension_numbers<[1], [0], [0], [1], [0, 0, 1, 1], [], []>} : vector<24x24xbf16>, vector<24x32xbf16>, vector<24x32xf32> -> vector<24x32xf32>
    "tpu.trace_stop"() : () -> ()
    %78 = tpu.reciprocal %75 {approx = true} : vector<24x1xf32> -> vector<24x1xf32>
    %79 = vector.broadcast %78 : vector<24x1xf32> to vector<24x32xf32>
    %80 = arith.mulf %77, %79 : vector<24x32xf32>
    %c0_35 = arith.constant 0 : index
    %c0_36 = arith.constant 0 : index
    %c96 = arith.constant 96 : index
    %81 = vector.load %arg1[%c0_35, %c0_36, %c96] : memref<1x24x384xf32, #tpu.memory_space<vmem>>, vector<1x24x32xf32>
    %82 = vector.shape_cast %81 : vector<1x24x32xf32> to vector<24x32xf32>
    %83 = arith.truncf %82 : vector<24x32xf32> to vector<24x32xbf16>
    %c0_37 = arith.constant 0 : index
    %c0_38 = arith.constant 0 : index
    %c224 = arith.constant 224 : index
    %84 = vector.load %arg1[%c0_37, %c0_38, %c224] : memref<1x24x384xf32, #tpu.memory_space<vmem>>, vector<1x24x32xf32>
    %85 = vector.shape_cast %84 : vector<1x24x32xf32> to vector<24x32xf32>
    %86 = arith.truncf %85 : vector<24x32xf32> to vector<24x32xbf16>
    %c0_39 = arith.constant 0 : index
    %c0_40 = arith.constant 0 : index
    %c352 = arith.constant 352 : index
    %87 = vector.load %arg1[%c0_39, %c0_40, %c352] : memref<1x24x384xf32, #tpu.memory_space<vmem>>, vector<1x24x32xf32>
    %88 = vector.shape_cast %87 : vector<1x24x32xf32> to vector<24x32xf32>
    %89 = arith.truncf %88 : vector<24x32xf32> to vector<24x32xbf16>
    "tpu.trace_start"() <{level = 10 : i32, message = "qd,kd->qk"}> : () -> ()
    %cst_41 = arith.constant dense<0.000000e+00> : vector<24x24xf32>
    %90 = tpu.matmul %83, %86, %cst_41 {dimension_numbers = #tpu.dot_dimension_numbers<[1], [1], [0], [0], [0, 0, 1, 0], [], []>} : vector<24x32xbf16>, vector<24x32xbf16>, vector<24x24xf32> -> vector<24x24xf32>
    "tpu.trace_stop"() : () -> ()
    %cst_42 = arith.constant 0.176776692 : f32
    %91 = vector.broadcast %cst_42 : f32 to vector<24x24xf32>
    %92 = arith.mulf %90, %91 : vector<24x24xf32>
    %cst_43 = arith.constant -1.000000e+30 : f32
    %93 = vector.broadcast %cst_43 : f32 to vector<24x24xf32>
    %94 = arith.select %2, %92, %93 : vector<24x24xi1>, vector<24x24xf32>
    %cst_44 = arith.constant dense<0xFF800000> : vector<24xf32>
    %95 = vector.multi_reduction <maximumf>, %94, %cst_44 [1] : vector<24x24xf32> to vector<24xf32>
    %96 = vector.shape_cast %95 : vector<24xf32> to vector<24x1xf32>
    %97 = vector.broadcast %96 : vector<24x1xf32> to vector<24x24xf32>
    %98 = arith.subf %94, %97 : vector<24x24xf32>
    %99 = math.exp %98 : vector<24x24xf32>
    %cst_45 = arith.constant dense<0.000000e+00> : vector<24xf32>
    %100 = vector.multi_reduction <add>, %99, %cst_45 [1] : vector<24x24xf32> to vector<24xf32>
    %101 = vector.shape_cast %100 : vector<24xf32> to vector<24x1xf32>
    %102 = arith.truncf %99 : vector<24x24xf32> to vector<24x24xbf16>
    "tpu.trace_start"() <{level = 10 : i32, message = "qk,kd->qd"}> : () -> ()
    %cst_46 = arith.constant dense<0.000000e+00> : vector<24x32xf32>
    %103 = tpu.matmul %102, %89, %cst_46 {dimension_numbers = #tpu.dot_dimension_numbers<[1], [0], [0], [1], [0, 0, 1, 1], [], []>} : vector<24x24xbf16>, vector<24x32xbf16>, vector<24x32xf32> -> vector<24x32xf32>
    "tpu.trace_stop"() : () -> ()
    %104 = tpu.reciprocal %101 {approx = true} : vector<24x1xf32> -> vector<24x1xf32>
    %105 = vector.broadcast %104 : vector<24x1xf32> to vector<24x32xf32>
    %106 = arith.mulf %103, %105 : vector<24x32xf32>
    %107 = tpu.concatenate %28, %54, %80, %106 in 1 : vector<24x32xf32>, vector<24x32xf32>, vector<24x32xf32>, vector<24x32xf32> -> vector<24x128xf32>
    %c0_47 = arith.constant 0 : index
    %c0_48 = arith.constant 0 : index
    %c0_49 = arith.constant 0 : index
    %108 = vector.load %arg2[%c0_47, %c0_48, %c0_49] : memref<1x24x128xf32, #tpu.memory_space<vmem>>, vector<1x24x128xf32>
    %109 = vector.shape_cast %108 : vector<1x24x128xf32> to vector<24x128xf32>
    %110 = vector.shape_cast %107 : vector<24x128xf32> to vector<1x24x128xf32>
    tpu.vector_store %arg2[%c0_47, %c0_48, %c0_49], %110 {strides = array<i32>} : memref<1x24x128xf32, #tpu.memory_space<vmem>>, vector<1x24x128xf32>,
    return
  }
  func.func @transform_0(%arg0: i32) -> (i32, i32, i32) {
    %c0_i32 = arith.constant 0 : i32
    %c0_i32_0 = arith.constant 0 : i32
    %c0_i32_1 = arith.constant 0 : i32
    return %arg0, %c0_i32, %c0_i32_0 : i32, i32, i32
  }
  func.func @transform_1(%arg0: i32) -> (i32, i32, i32) {
    %c0_i32 = arith.constant 0 : i32
    %c0_i32_0 = arith.constant 0 : i32
    %c0_i32_1 = arith.constant 0 : i32
    return %arg0, %c0_i32, %c0_i32_0 : i32, i32, i32
  }
}

module attributes {stable_mosaic.version = 11 : i64} {
  func.func @_linear_res_kernel(%arg0: i32, %arg1: memref<16x256xf32, #tpu.memory_space<vmem>>, %arg2: memref<256x128xbf16, #tpu.memory_space<vmem>>, %arg3: memref<1x128xf32, #tpu.memory_space<vmem>>, %arg4: memref<16x128xf32, #tpu.memory_space<vmem>>, %arg5: memref<16x128xf32, #tpu.memory_space<vmem>>) attributes {dimension_semantics = [#tpu.dimension_semantics<parallel>], iteration_bounds = array<i64: 3>, scalar_prefetch = 0 : i64, scratch_operands = 0 : i64, tpu.core_type = #tpu.core_type<tc>, window_params = [{transform_indices = @transform_0, window_bounds = array<i64: 16, 256>}, {pipeline_mode = #tpu.pipeline_mode<synchronous>, transform_indices = @transform_1, window_bounds = array<i64: 256, 128>}, {pipeline_mode = #tpu.pipeline_mode<synchronous>, transform_indices = @transform_2, window_bounds = array<i64: 1, 128>}, {transform_indices = @transform_3, window_bounds = array<i64: 16, 128>}, {transform_indices = @transform_4, window_bounds = array<i64: 16, 128>}]} {
    %c0 = arith.constant 0 : index
    %c0_0 = arith.constant 0 : index
    %0 = vector.load %arg1[%c0, %c0_0] : memref<16x256xf32, #tpu.memory_space<vmem>>, vector<16x256xf32>
    %1 = arith.truncf %0 : vector<16x256xf32> to vector<16x256xbf16>
    %c0_1 = arith.constant 0 : index
    %c0_2 = arith.constant 0 : index
    %2 = vector.load %arg2[%c0_1, %c0_2] : memref<256x128xbf16, #tpu.memory_space<vmem>>, vector<256x128xbf16>
    %cst = arith.constant dense<0.000000e+00> : vector<16x128xf32>
    %3 = tpu.matmul %1, %2, %cst {dimension_numbers = #tpu.dot_dimension_numbers<[1], [0], [0], [1], [0, 0, 1, 1], [], []>} : vector<16x256xbf16>, vector<256x128xbf16>, vector<16x128xf32> -> vector<16x128xf32>
    %c0_3 = arith.constant 0 : index
    %c0_4 = arith.constant 0 : index
    %4 = vector.load %arg3[%c0_3, %c0_4] : memref<1x128xf32, #tpu.memory_space<vmem>>, vector<1x128xf32>
    %5 = vector.broadcast %4 : vector<1x128xf32> to vector<16x128xf32>
    %6 = arith.addf %3, %5 : vector<16x128xf32>
    %c0_5 = arith.constant 0 : index
    %c0_6 = arith.constant 0 : index
    %7 = vector.load %arg4[%c0_5, %c0_6] : memref<16x128xf32, #tpu.memory_space<vmem>>, vector<16x128xf32>
    %8 = arith.addf %6, %7 : vector<16x128xf32>
    %c0_7 = arith.constant 0 : index
    %c0_8 = arith.constant 0 : index
    %9 = vector.load %arg5[%c0_7, %c0_8] : memref<16x128xf32, #tpu.memory_space<vmem>>, vector<16x128xf32>
    tpu.vector_store %arg5[%c0_7, %c0_8], %8 {strides = array<i32>} : memref<16x128xf32, #tpu.memory_space<vmem>>, vector<16x128xf32>,
    return
  }
  func.func @transform_0(%arg0: i32) -> (i32, i32) {
    %c0_i32 = arith.constant 0 : i32
    %c0_i32_0 = arith.constant 0 : i32
    return %arg0, %c0_i32 : i32, i32
  }
  func.func @transform_1(%arg0: i32) -> (i32, i32) {
    %c0_i32 = arith.constant 0 : i32
    %c0_i32_0 = arith.constant 0 : i32
    %c0_i32_1 = arith.constant 0 : i32
    return %c0_i32, %c0_i32_0 : i32, i32
  }
  func.func @transform_2(%arg0: i32) -> (i32, i32) {
    %c0_i32 = arith.constant 0 : i32
    %c0_i32_0 = arith.constant 0 : i32
    %c0_i32_1 = arith.constant 0 : i32
    return %c0_i32, %c0_i32_0 : i32, i32
  }
  func.func @transform_3(%arg0: i32) -> (i32, i32) {
    %c0_i32 = arith.constant 0 : i32
    %c0_i32_0 = arith.constant 0 : i32
    return %arg0, %c0_i32 : i32, i32
  }
  func.func @transform_4(%arg0: i32) -> (i32, i32) {
    %c0_i32 = arith.constant 0 : i32
    %c0_i32_0 = arith.constant 0 : i32
    return %arg0, %c0_i32 : i32, i32
  }
}

module attributes {stable_mosaic.version = 11 : i64} {
  func.func @_pool_ln_kernel(%arg0: i32, %arg1: memref<1x24x128xf32, #tpu.memory_space<vmem>>, %arg2: memref<1x1x128xf32, #tpu.memory_space<vmem>>, %arg3: memref<1x1x128xf32, #tpu.memory_space<vmem>>, %arg4: memref<1x1x128xf32, #tpu.memory_space<vmem>>) attributes {dimension_semantics = [#tpu.dimension_semantics<parallel>], iteration_bounds = array<i64: 2>, scalar_prefetch = 0 : i64, scratch_operands = 0 : i64, tpu.core_type = #tpu.core_type<tc>, window_params = [{transform_indices = @transform_0, window_bounds = array<i64: 1, 24, 128>}, {pipeline_mode = #tpu.pipeline_mode<synchronous>, transform_indices = @transform_1, window_bounds = array<i64: 1, 1, 128>}, {pipeline_mode = #tpu.pipeline_mode<synchronous>, transform_indices = @transform_2, window_bounds = array<i64: 1, 1, 128>}, {transform_indices = @transform_3, window_bounds = array<i64: 1, 1, 128>}]} {
    %c0 = arith.constant 0 : index
    %c0_0 = arith.constant 0 : index
    %c0_1 = arith.constant 0 : index
    %0 = vector.load %arg1[%c0, %c0_0, %c0_1] : memref<1x24x128xf32, #tpu.memory_space<vmem>>, vector<1x24x128xf32>
    %1 = vector.shape_cast %0 : vector<1x24x128xf32> to vector<24x128xf32>
    %2 = tpu.iota {dimensions = array<i32: 0>} : vector<24x128xi32>
    %c1_i32 = arith.constant 1 : i32
    %3 = vector.broadcast %c1_i32 : i32 to vector<24x128xi32>
    %4 = arith.cmpi sge, %2, %3 : vector<24x128xi32>
    %c17_i32 = arith.constant 17 : i32
    %5 = vector.broadcast %c17_i32 : i32 to vector<24x128xi32>
    %6 = arith.cmpi slt, %2, %5 : vector<24x128xi32>
    %7 = arith.andi %4, %6 : vector<24x128xi1>
    %cst = arith.constant 0.000000e+00 : f32
    %8 = vector.broadcast %cst : f32 to vector<24x128xf32>
    %9 = arith.select %7, %1, %8 : vector<24x128xi1>, vector<24x128xf32>
    %cst_2 = arith.constant dense<0.000000e+00> : vector<128xf32>
    %10 = vector.multi_reduction <add>, %9, %cst_2 [0] : vector<24x128xf32> to vector<128xf32>
    %11 = vector.shape_cast %10 : vector<128xf32> to vector<1x128xf32>
    %cst_3 = arith.constant 1.600000e+01 : f32
    %12 = vector.broadcast %cst_3 : f32 to vector<1x128xf32>
    %13 = arith.divf %11, %12 : vector<1x128xf32>
    %c0_4 = arith.constant 0 : index
    %c0_5 = arith.constant 0 : index
    %c0_6 = arith.constant 0 : index
    %14 = vector.load %arg2[%c0_4, %c0_5, %c0_6] : memref<1x1x128xf32, #tpu.memory_space<vmem>>, vector<1x1x128xf32>
    %15 = vector.shape_cast %14 : vector<1x1x128xf32> to vector<1x128xf32>
    %c0_7 = arith.constant 0 : index
    %c0_8 = arith.constant 0 : index
    %c0_9 = arith.constant 0 : index
    %16 = vector.load %arg3[%c0_7, %c0_8, %c0_9] : memref<1x1x128xf32, #tpu.memory_space<vmem>>, vector<1x1x128xf32>
    %17 = vector.shape_cast %16 : vector<1x1x128xf32> to vector<1x128xf32>
    %cst_10 = arith.constant dense<0.000000e+00> : vector<1xf32>
    %18 = vector.multi_reduction <add>, %13, %cst_10 [1] : vector<1x128xf32> to vector<1xf32>
    %19 = vector.shape_cast %18 : vector<1xf32> to vector<1x1xf32>
    %cst_11 = arith.constant 1.280000e+02 : f32
    %20 = vector.broadcast %cst_11 : f32 to vector<1x1xf32>
    %21 = arith.divf %19, %20 : vector<1x1xf32>
    %22 = vector.broadcast %21 : vector<1x1xf32> to vector<1x128xf32>
    %23 = arith.subf %13, %22 : vector<1x128xf32>
    %24 = arith.mulf %23, %23 : vector<1x128xf32>
    %cst_12 = arith.constant dense<0.000000e+00> : vector<1xf32>
    %25 = vector.multi_reduction <add>, %24, %cst_12 [1] : vector<1x128xf32> to vector<1xf32>
    %26 = vector.shape_cast %25 : vector<1xf32> to vector<1x1xf32>
    %cst_13 = arith.constant 1.280000e+02 : f32
    %27 = vector.broadcast %cst_13 : f32 to vector<1x1xf32>
    %28 = arith.divf %26, %27 : vector<1x1xf32>
    %cst_14 = arith.constant 9.99999974E-6 : f32
    %29 = vector.broadcast %cst_14 : f32 to vector<1x1xf32>
    %30 = arith.addf %28, %29 : vector<1x1xf32>
    %31 = math.rsqrt %30 : vector<1x1xf32>
    %32 = vector.broadcast %31 : vector<1x1xf32> to vector<1x128xf32>
    %33 = arith.mulf %23, %32 : vector<1x128xf32>
    %34 = arith.mulf %33, %15 : vector<1x128xf32>
    %35 = arith.addf %34, %17 : vector<1x128xf32>
    %c0_15 = arith.constant 0 : index
    %c0_16 = arith.constant 0 : index
    %c0_17 = arith.constant 0 : index
    %36 = vector.load %arg4[%c0_15, %c0_16, %c0_17] : memref<1x1x128xf32, #tpu.memory_space<vmem>>, vector<1x1x128xf32>
    %37 = vector.shape_cast %36 : vector<1x1x128xf32> to vector<1x128xf32>
    %38 = vector.shape_cast %35 : vector<1x128xf32> to vector<1x1x128xf32>
    tpu.vector_store %arg4[%c0_15, %c0_16, %c0_17], %38 {strides = array<i32>} : memref<1x1x128xf32, #tpu.memory_space<vmem>>, vector<1x1x128xf32>,
    return
  }
  func.func @transform_0(%arg0: i32) -> (i32, i32, i32) {
    %c0_i32 = arith.constant 0 : i32
    %c0_i32_0 = arith.constant 0 : i32
    %c0_i32_1 = arith.constant 0 : i32
    return %arg0, %c0_i32, %c0_i32_0 : i32, i32, i32
  }
  func.func @transform_1(%arg0: i32) -> (i32, i32, i32) {
    %c0_i32 = arith.constant 0 : i32
    %c0_i32_0 = arith.constant 0 : i32
    %c0_i32_1 = arith.constant 0 : i32
    %c0_i32_2 = arith.constant 0 : i32
    return %c0_i32, %c0_i32_0, %c0_i32_1 : i32, i32, i32
  }
  func.func @transform_2(%arg0: i32) -> (i32, i32, i32) {
    %c0_i32 = arith.constant 0 : i32
    %c0_i32_0 = arith.constant 0 : i32
    %c0_i32_1 = arith.constant 0 : i32
    %c0_i32_2 = arith.constant 0 : i32
    return %c0_i32, %c0_i32_0, %c0_i32_1 : i32, i32, i32
  }
  func.func @transform_3(%arg0: i32) -> (i32, i32, i32) {
    %c0_i32 = arith.constant 0 : i32
    %c0_i32_0 = arith.constant 0 : i32
    %c0_i32_1 = arith.constant 0 : i32
    return %arg0, %c0_i32, %c0_i32_0 : i32, i32, i32
  }
}

module attributes {stable_mosaic.version = 11 : i64} {
  func.func @_ln_linear_kernel(%arg0: i32, %arg1: memref<16x128xf32, #tpu.memory_space<vmem>>, %arg2: memref<1x128xf32, #tpu.memory_space<vmem>>, %arg3: memref<1x128xf32, #tpu.memory_space<vmem>>, %arg4: memref<128x256xbf16, #tpu.memory_space<vmem>>, %arg5: memref<1x256xf32, #tpu.memory_space<vmem>>, %arg6: memref<16x256xf32, #tpu.memory_space<vmem>>) attributes {dimension_semantics = [#tpu.dimension_semantics<parallel>], iteration_bounds = array<i64: 3>, scalar_prefetch = 0 : i64, scratch_operands = 0 : i64, tpu.core_type = #tpu.core_type<tc>, window_params = [{transform_indices = @transform_0, window_bounds = array<i64: 16, 128>}, {pipeline_mode = #tpu.pipeline_mode<synchronous>, transform_indices = @transform_1, window_bounds = array<i64: 1, 128>}, {pipeline_mode = #tpu.pipeline_mode<synchronous>, transform_indices = @transform_2, window_bounds = array<i64: 1, 128>}, {pipeline_mode = #tpu.pipeline_mode<synchronous>, transform_indices = @transform_3, window_bounds = array<i64: 128, 256>}, {pipeline_mode = #tpu.pipeline_mode<synchronous>, transform_indices = @transform_4, window_bounds = array<i64: 1, 256>}, {transform_indices = @transform_5, window_bounds = array<i64: 16, 256>}]} {
    %c0 = arith.constant 0 : index
    %c0_0 = arith.constant 0 : index
    %0 = vector.load %arg1[%c0, %c0_0] : memref<16x128xf32, #tpu.memory_space<vmem>>, vector<16x128xf32>
    %c0_1 = arith.constant 0 : index
    %c0_2 = arith.constant 0 : index
    %1 = vector.load %arg2[%c0_1, %c0_2] : memref<1x128xf32, #tpu.memory_space<vmem>>, vector<1x128xf32>
    %c0_3 = arith.constant 0 : index
    %c0_4 = arith.constant 0 : index
    %2 = vector.load %arg3[%c0_3, %c0_4] : memref<1x128xf32, #tpu.memory_space<vmem>>, vector<1x128xf32>
    %c0_5 = arith.constant 0 : index
    %c0_6 = arith.constant 0 : index
    %3 = vector.load %arg5[%c0_5, %c0_6] : memref<1x256xf32, #tpu.memory_space<vmem>>, vector<1x256xf32>
    %cst = arith.constant dense<0.000000e+00> : vector<16xf32>
    %4 = vector.multi_reduction <add>, %0, %cst [1] : vector<16x128xf32> to vector<16xf32>
    %5 = vector.shape_cast %4 : vector<16xf32> to vector<16x1xf32>
    %cst_7 = arith.constant 1.280000e+02 : f32
    %6 = vector.broadcast %cst_7 : f32 to vector<16x1xf32>
    %7 = arith.divf %5, %6 : vector<16x1xf32>
    %8 = vector.broadcast %7 : vector<16x1xf32> to vector<16x128xf32>
    %9 = arith.subf %0, %8 : vector<16x128xf32>
    %10 = arith.mulf %9, %9 : vector<16x128xf32>
    %cst_8 = arith.constant dense<0.000000e+00> : vector<16xf32>
    %11 = vector.multi_reduction <add>, %10, %cst_8 [1] : vector<16x128xf32> to vector<16xf32>
    %12 = vector.shape_cast %11 : vector<16xf32> to vector<16x1xf32>
    %cst_9 = arith.constant 1.280000e+02 : f32
    %13 = vector.broadcast %cst_9 : f32 to vector<16x1xf32>
    %14 = arith.divf %12, %13 : vector<16x1xf32>
    %cst_10 = arith.constant 9.99999974E-6 : f32
    %15 = vector.broadcast %cst_10 : f32 to vector<16x1xf32>
    %16 = arith.addf %14, %15 : vector<16x1xf32>
    %17 = math.rsqrt %16 : vector<16x1xf32>
    %18 = vector.broadcast %17 : vector<16x1xf32> to vector<16x128xf32>
    %19 = arith.mulf %9, %18 : vector<16x128xf32>
    %20 = vector.broadcast %1 : vector<1x128xf32> to vector<16x128xf32>
    %21 = arith.mulf %19, %20 : vector<16x128xf32>
    %22 = vector.broadcast %2 : vector<1x128xf32> to vector<16x128xf32>
    %23 = arith.addf %21, %22 : vector<16x128xf32>
    %24 = arith.truncf %23 : vector<16x128xf32> to vector<16x128xbf16>
    %c0_11 = arith.constant 0 : index
    %c0_12 = arith.constant 0 : index
    %25 = vector.load %arg4[%c0_11, %c0_12] : memref<128x256xbf16, #tpu.memory_space<vmem>>, vector<128x256xbf16>
    %cst_13 = arith.constant dense<0.000000e+00> : vector<16x256xf32>
    %26 = tpu.matmul %24, %25, %cst_13 {dimension_numbers = #tpu.dot_dimension_numbers<[1], [0], [0], [1], [0, 0, 1, 1], [], []>} : vector<16x128xbf16>, vector<128x256xbf16>, vector<16x256xf32> -> vector<16x256xf32>
    %27 = vector.broadcast %3 : vector<1x256xf32> to vector<16x256xf32>
    %28 = arith.addf %26, %27 : vector<16x256xf32>
    %cst_14 = arith.constant 5.000000e-01 : f32
    %29 = vector.broadcast %cst_14 : f32 to vector<16x256xf32>
    %30 = arith.mulf %29, %28 : vector<16x256xf32>
    %cst_15 = arith.constant 4.471500e-02 : f32
    %31 = vector.broadcast %cst_15 : f32 to vector<16x256xf32>
    %32 = arith.mulf %31, %28 : vector<16x256xf32>
    %33 = arith.mulf %32, %28 : vector<16x256xf32>
    %34 = arith.mulf %33, %28 : vector<16x256xf32>
    %35 = arith.addf %28, %34 : vector<16x256xf32>
    %cst_16 = arith.constant 0.797884583 : f32
    %36 = vector.broadcast %cst_16 : f32 to vector<16x256xf32>
    %37 = arith.mulf %36, %35 : vector<16x256xf32>
    %38 = math.tanh %37 : vector<16x256xf32>
    %cst_17 = arith.constant 1.000000e+00 : f32
    %39 = vector.broadcast %cst_17 : f32 to vector<16x256xf32>
    %40 = arith.addf %39, %38 : vector<16x256xf32>
    %41 = arith.mulf %30, %40 : vector<16x256xf32>
    %c0_18 = arith.constant 0 : index
    %c0_19 = arith.constant 0 : index
    %42 = vector.load %arg6[%c0_18, %c0_19] : memref<16x256xf32, #tpu.memory_space<vmem>>, vector<16x256xf32>
    tpu.vector_store %arg6[%c0_18, %c0_19], %41 {strides = array<i32>} : memref<16x256xf32, #tpu.memory_space<vmem>>, vector<16x256xf32>,
    return
  }
  func.func @transform_0(%arg0: i32) -> (i32, i32) {
    %c0_i32 = arith.constant 0 : i32
    %c0_i32_0 = arith.constant 0 : i32
    return %arg0, %c0_i32 : i32, i32
  }
  func.func @transform_1(%arg0: i32) -> (i32, i32) {
    %c0_i32 = arith.constant 0 : i32
    %c0_i32_0 = arith.constant 0 : i32
    %c0_i32_1 = arith.constant 0 : i32
    return %c0_i32, %c0_i32_0 : i32, i32
  }
  func.func @transform_2(%arg0: i32) -> (i32, i32) {
    %c0_i32 = arith.constant 0 : i32
    %c0_i32_0 = arith.constant 0 : i32
    %c0_i32_1 = arith.constant 0 : i32
    return %c0_i32, %c0_i32_0 : i32, i32
  }
  func.func @transform_3(%arg0: i32) -> (i32, i32) {
    %c0_i32 = arith.constant 0 : i32
    %c0_i32_0 = arith.constant 0 : i32
    %c0_i32_1 = arith.constant 0 : i32
    return %c0_i32, %c0_i32_0 : i32, i32
  }
  func.func @transform_4(%arg0: i32) -> (i32, i32) {
    %c0_i32 = arith.constant 0 : i32
    %c0_i32_0 = arith.constant 0 : i32
    %c0_i32_1 = arith.constant 0 : i32
    return %c0_i32, %c0_i32_0 : i32, i32
  }
  func.func @transform_5(%arg0: i32) -> (i32, i32) {
    %c0_i32 = arith.constant 0 : i32
    %c0_i32_0 = arith.constant 0 : i32
    return %arg0, %c0_i32 : i32, i32
  }
}

</mosaic_0001>

<llo_original>
// kernel: vit_encode.12
$region0: #{vit_encode.12}
  #allocation0 [shape = 'u32[]', space=smem, size = 0x4, offset = 0x4, fixed_abs, tag = 'smem constant byte address 0x4 - core index']
  #allocation1 [shape = 'u32[144,128]{1,0:T(1,128)}', space=vmem, size = 0x12000, scoped, tag = 'internal scratch']
  %s0 = inlined_call_operand.vmem [shape: f32[32,192], index: 0, kind: input, shape index: {}]
  %s1 = inlined_call_operand.vmem [shape: bf16[192,128], index: 1, kind: input, shape index: {}]
  %s2 = inlined_call_operand.vmem [shape: f32[1,128], index: 2, kind: input, shape index: {}]
  %s3 = inlined_call_operand.vmem [shape: f32[32,128], index: 3, kind: output, shape index: {}]
  %s4 = sld [smem:[#allocation0]]
  $region45: #{vit_encode.12} parent=0
    _
  %s6 = ssub.s32 1, %s4
  %s7 = scalar_select 0, %s6, %s4
  loop: start=0, step=1, limit=4
  $region2: #{vit_encode.12} parent=0 // loop_pre_header
    _
  $region3: #{vit_encode.12} parent=0 // loop_header
    %s9 = sphi 0, %s13
    %p10 = scmp.ge.s32.totalorder %s9, 4
    %s19 = sphi 0, %s21
    %s22 = sphi 0, %s19
    %s23 = sphi 0, %s22
    %s39 = sphi 0, %s23
    %s43 = sphi 0, %s43
    %s45 = sphi 0, %s43
    %s46 = sphi 0, %s45
    %s60 = sphi 0, %s46
    %s64 = sphi 0, %s64
    %s66 = sphi 0, %s64
    %s67 = sphi 0, %s66
    %s81 = sphi 0, %s67
    %s87 = sphi 0, %s89
    %s90 = sphi 0, %s87
    %s91 = sphi 0, %s90
    %s107 = sphi 0, %s91
  $region4: #{vit_encode.12} parent=0 // loop_header_branch
    %12 = sbr.rel (%p10) target = $region8
  $region5: #{vit_encode.12} parent=0 // loop_body
    %s14 = ssub.s32 %s9, 1
    %s15 = ssub.s32 %s9, 2
    %s16 = sadd.s32 %s9, 1
    %s17 = ssub.s32 %s9, %s16
    %p18 = scmp.eq.s32.totalorder %s17, 0
    %s20 = sadd.s32 %s19, 1
    %s21 = scalar_select %p18, %s19, %s20
    %p24 = pneg %p18
    %p25 = scmp.eq.s32.totalorder %s9, 1
    %p26 = por %p24, %p25
    %p27 = scmp.ne.s32.totalorder %s19, %s22
    %p28 = scmp.eq.s32.totalorder %s9, 0
    %p29 = por %p27, %p28
    %p30 = scmp.ne.s32.totalorder %s19, %s22
    %p31 = scmp.eq.s32.totalorder %s14, 1
    %p32 = por %p30, %p31
    %p33 = scmp.ne.s32.totalorder %s22, %s23
    %p34 = scmp.eq.s32.totalorder %s14, 0
    %p35 = por %p33, %p34
    %p36 = scmp.ne.s32.totalorder %s22, %s23
    %p37 = scmp.eq.s32.totalorder %s15, 1
    %p38 = por %p36, %p37
    %p40 = scmp.ne.s32.totalorder %s23, %s39
    %p41 = scmp.eq.s32.totalorder %s15, 0
    %p42 = por %p40, %p41
    %s44 = sadd.s32 %s43, 1
    %p47 = scmp.eq.s32.totalorder %s9, 1
    %p48 = scmp.ne.s32.totalorder %s43, %s45
    %p49 = scmp.eq.s32.totalorder %s9, 0
    %p50 = por %p48, %p49
    %p51 = scmp.ne.s32.totalorder %s43, %s45
    %p52 = scmp.eq.s32.totalorder %s14, 1
    %p53 = por %p51, %p52
    %p54 = scmp.ne.s32.totalorder %s45, %s46
    %p55 = scmp.eq.s32.totalorder %s14, 0
    %p56 = por %p54, %p55
    %p57 = scmp.ne.s32.totalorder %s45, %s46
    %p58 = scmp.eq.s32.totalorder %s15, 1
    %p59 = por %p57, %p58
    %p61 = scmp.ne.s32.totalorder %s46, %s60
    %p62 = scmp.eq.s32.totalorder %s15, 0
    %p63 = por %p61, %p62
    %s65 = sadd.s32 %s64, 1
    %p68 = scmp.eq.s32.totalorder %s9, 1
    %p69 = scmp.ne.s32.totalorder %s64, %s66
    %p70 = scmp.eq.s32.totalorder %s9, 0
    %p71 = por %p69, %p70
    %p72 = scmp.ne.s32.totalorder %s64, %s66
    %p73 = scmp.eq.s32.totalorder %s14, 1
    %p74 = por %p72, %p73
    %p75 = scmp.ne.s32.totalorder %s66, %s67
    %p76 = scmp.eq.s32.totalorder %s14, 0
    %p77 = por %p75, %p76
    %p78 = scmp.ne.s32.totalorder %s66, %s67
    %p79 = scmp.eq.s32.totalorder %s15, 1
    %p80 = por %p78, %p79
    %p82 = scmp.ne.s32.totalorder %s67, %s81
    %p83 = scmp.eq.s32.totalorder %s15, 0
    %p84 = por %p82, %p83
    %s85 = ssub.s32 %s9, %s16
    %p86 = scmp.eq.s32.totalorder %s85, 0
    %s88 = sadd.s32 %s87, 1
    %s89 = scalar_select %p86, %s87, %s88
    %p92 = pneg %p86
    %p93 = scmp.eq.s32.totalorder %s9, 1
    %p94 = por %p92, %p93
    %p95 = scmp.ne.s32.totalorder %s87, %s90
    %p96 = scmp.eq.s32.totalorder %s9, 0
    %p97 = por %p95, %p96
    %p98 = scmp.ne.s32.totalorder %s87, %s90
    %p99 = scmp.eq.s32.totalorder %s14, 1
    %p100 = por %p98, %p99
    %p101 = scmp.ne.s32.totalorder %s90, %s91
    %p102 = scmp.eq.s32.totalorder %s14, 0
    %p103 = por %p101, %p102
    %p104 = scmp.ne.s32.totalorder %s90, %s91
    %p105 = scmp.eq.s32.totalorder %s15, 1
    %p106 = por %p104, %p105
    %p108 = scmp.ne.s32.totalorder %s91, %s107
    %p109 = scmp.eq.s32.totalorder %s15, 0
    %p110 = por %p108, %p109
    %p111 = scmp.le.s32.totalorder 1, %s9
    %p112 = scmp.lt.s32.totalorder %s9, 3
    %p113 = pnand %p111, %p112
    %p114 = pneg %p113
    // Predicated region
    $region9: #{vit_encode.12} parent=5 // pred_check
      _
    $region10: #{vit_encode.12} parent=5 // pred_check_branch
      %116 = sbr.rel (%p113) target = $region12
    $region11: #{vit_encode.12} parent=5 // pred_region
      %s117 = ssub.s32 %s9, 1
      // Predicated region
      $region13: #{vit_encode.12} parent=11 // pred_check
        %p118 = pneg %p56
      $region14: #{vit_encode.12} parent=11 // pred_check_branch
        %120 = sbr.rel (%p118) target = $region16
      $region15: #{vit_encode.12} parent=11 // pred_region
        _
      $region16: #{vit_encode.12} parent=11 // pred_fallthru
        _
      // Predicated region
      $region17: #{vit_encode.12} parent=11 // pred_check
        %p121 = pneg %p77
      $region18: #{vit_encode.12} parent=11 // pred_check_branch
        %123 = sbr.rel (%p121) target = $region20
      $region19: #{vit_encode.12} parent=11 // pred_region
        _
      $region20: #{vit_encode.12} parent=11 // pred_fallthru
        _
    $region12: #{vit_encode.12} parent=5 // pred_fallthru
      _
    %p124 = scmp.lt.s32.totalorder %s9, 2
    // Predicated region
    $region21: #{vit_encode.12} parent=5 // pred_check
      %p125 = pneg %p124
    $region22: #{vit_encode.12} parent=5 // pred_check_branch
      %127 = sbr.rel (%p125) target = $region24
    $region23: #{vit_encode.12} parent=5 // pred_region
      // Predicated region
      $region25: #{vit_encode.12} parent=23 // pred_check
        %p128 = pneg %p29
      $region26: #{vit_encode.12} parent=23 // pred_check_branch
        %130 = sbr.rel (%p128) target = $region28
      $region27: #{vit_encode.12} parent=23 // pred_region
        %s131 = smul.u32 2, %s9
        %p132 = scmp.lt.s32.totalorder %s131, 3
        %s133 = scalar_select %p132, %s131, 3
        %s134 = smul.addr %s133, 2
        %s135 = smul.addr %s134, 8
        %s136 = scalar_lea.vmem %s0, %s135
        %s137 = smul.u32 2, %s9
      $region28: #{vit_encode.12} parent=23 // pred_fallthru
        _
    $region24: #{vit_encode.12} parent=5 // pred_fallthru
      _
    %p138 = scmp.le.s32.totalorder 1, %s9
    %p139 = scmp.lt.s32.totalorder %s9, 3
    %p140 = pnand %p138, %p139
    %p141 = pneg %p140
    // Predicated region
    $region29: #{vit_encode.12} parent=5 // pred_check
      _
    $region30: #{vit_encode.12} parent=5 // pred_check_branch
      %143 = sbr.rel (%p140) target = $region32
    $region31: #{vit_encode.12} parent=5 // pred_region
      %s144 = ssub.s32 %s9, 1
      %s145 = smul.u32 2, %s14
      %p146 = scmp.lt.s32.totalorder %s145, 3
      %s147 = scalar_select %p146, %s145, 3
      %s148 = smul.addr %s147, 2
      %s149 = smul.addr %s148, 8
      %s150 = scalar_lea.vmem %s0, %s149
      %p151 = pneg %p35
      %p152 = pneg %p32
      %p153 = pneg %p56
      %p154 = pneg %p53
      %p155 = pneg %p77
      %p156 = pneg %p74
      %p157 = pneg %p103
      %p158 = pneg %p100
      %s159 = smul.u32 2, %s14
      %p160 = scmp.lt.s32.totalorder %s159, 3
      %s161 = scalar_select %p160, %s159, 3
      %s162 = smul.addr %s161, 8
      %s163 = scalar_lea.vmem %s3, %s162
      %s164 = smul.u32 2, %s14
      %p165 = scmp.lt.s32.totalorder %s164, 3
      %s166 = scalar_select %p165, %s164, 3
      %s167 = smul.addr %s166, 2
      %s168 = smul.addr %s167, 8
      %s169 = scalar_lea.vmem %s0, %s168
      %s170 = smul.u32 2, %s14
      %s171 = smul.u32 2, %s14
      %p172 = scmp.lt.s32.totalorder %s171, 3
      %s173 = scalar_select %p172, %s171, 3
      %s174 = smul.addr %s173, 8
      %s175 = scalar_lea.vmem %s3, %s174
      %s176 = smul.u32 2, %s14
      %v178 = vld [vmem:[%s169] sm:$0xff]
      %v179 = vld [vmem:[%s169 + $0x8] sm:$0xff]
      %v180 = vld [vmem:[%s169 + $0x10] sm:$0xff]
      %v181 = vld [vmem:[%s169 + $0x18] sm:$0xff]
      %v182 = vpack.c.bf16 %v180, %v178
      %v183 = vpack.c.bf16 %v181, %v179
      %v184 = vld [vmem:[%s1] sm:$0xf]
      %v185 = vld [vmem:[%s1 + $0x4] sm:$0xf]
      %v186 = vld [vmem:[%s1 + $0x8] sm:$0xf]
      %v187 = vld [vmem:[%s1 + $0xc] sm:$0xf]
      %v188 = vld [vmem:[%s1 + $0x10] sm:$0xf]
      %v189 = vld [vmem:[%s1 + $0x14] sm:$0xf]
      %v190 = vld [vmem:[%s1 + $0x18] sm:$0xf]
      %v191 = vld [vmem:[%s1 + $0x1c] sm:$0xf]
      %v192 = vld [vmem:[%s1 + $0x20] sm:$0xf]
      %v193 = vld [vmem:[%s1 + $0x24] sm:$0xf]
      %v194 = vld [vmem:[%s1 + $0x28] sm:$0xf]
      %v195 = vld [vmem:[%s1 + $0x2c] sm:$0xf]
      %v196 = vld [vmem:[%s1 + $0x30] sm:$0xf]
      %v197 = vld [vmem:[%s1 + $0x34] sm:$0xf]
      %v198 = vld [vmem:[%s1 + $0x38] sm:$0xf]
      %v199 = vld [vmem:[%s1 + $0x3c] sm:$0xf]
      %v200 = vld [vmem:[%s1 + $0x40] sm:$0xf]
      %v201 = vld [vmem:[%s1 + $0x44] sm:$0xf]
      %v202 = vld [vmem:[%s1 + $0x48] sm:$0xf]
      %v203 = vld [vmem:[%s1 + $0x4c] sm:$0xf]
      %v204 = vld [vmem:[%s1 + $0x50] sm:$0xf]
      %v205 = vld [vmem:[%s1 + $0x54] sm:$0xf]
      %v206 = vld [vmem:[%s1 + $0x58] sm:$0xf]
      %v207 = vld [vmem:[%s1 + $0x5c] sm:$0xf]
      %v208 = vld [vmem:[%s2] sm:$0x1]
      %v210 = vlaneseq
      %v211 = vshrl.u32 %v210, 7
      %v212 = vsub.s32 0, %v211
      %v213 = vrot.slane %v208, %v212
      %v239 = vunpack.c.l.b16 %v184
      %v240 = vunpack.c.l.b16 %v185
      %v241 = vunpack.c.l.b16 %v186
      %v242 = vunpack.c.l.b16 %v187
      %v243 = vunpack.c.l.b16 %v188
      %v244 = vunpack.c.l.b16 %v189
      %v245 = vunpack.c.l.b16 %v190
      %v246 = vunpack.c.l.b16 %v191
      %v247 = vunpack.c.l.b16 %v192
      %v248 = vunpack.c.l.b16 %v193
      %v249 = vunpack.c.l.b16 %v194
      %v250 = vunpack.c.l.b16 %v195
      %v251 = vunpack.c.l.b16 %v196
      %v252 = vunpack.c.l.b16 %v197
      %v253 = vunpack.c.l.b16 %v198
      %v254 = vunpack.c.l.b16 %v199
      %v255 = vunpack.c.l.b16 %v200
      %v256 = vunpack.c.l.b16 %v201
      %v257 = vunpack.c.l.b16 %v202
      %v258 = vunpack.c.l.b16 %v203
      %v259 = vunpack.c.l.b16 %v204
      %v260 = vunpack.c.l.b16 %v205
      %v261 = vunpack.c.l.b16 %v206
      %v262 = vunpack.c.l.b16 %v207
      %v263 = vpack.c.b16 %v240, %v239
      %v264 = vpack.c.b16 %v242, %v241
      %v265 = vpack.c.b16 %v244, %v243
      %v266 = vpack.c.b16 %v246, %v245
      %v267 = vpack.c.b16 %v248, %v247
      %v268 = vpack.c.b16 %v250, %v249
      %v269 = vpack.c.b16 %v252, %v251
      %v270 = vpack.c.b16 %v254, %v253
      %v271 = vpack.c.b16 %v256, %v255
      %v272 = vpack.c.b16 %v258, %v257
      %v273 = vpack.c.b16 %v260, %v259
      %v274 = vpack.c.b16 %v262, %v261
      %vm287 = vcmask 523264
      %v289 = vsel %vm287, %v183, 0
      %291 = vmatprep.subr.bf16.mxu0 0
      %292 = vmatpush1.bf16.msra.mxu0 %v263
      %293 = vmatprep.subr.bf16.mxu0 0
      %294 = vmatpush1.bf16.msra.mxu0 %v264
      %295 = vmatprep.subr.bf16.mxu0 0
      %296 = vmatpush1.bf16.msra.mxu0 %v265
      %297 = vmatprep.subr.bf16.mxu0 0
      %298 = vmatpush1.bf16.msra.mxu0 %v266
      %299 = vmatprep.subr.bf16.mxu0 0
      %300 = vmatpush1.bf16.msra.mxu0 %v267
      %301 = vmatprep.subr.bf16.mxu0 0
      %302 = vmatpush1.bf16.msra.mxu0 %v268
      %303 = vmatprep.subr.bf16.mxu0 0
      %304 = vmatpush1.bf16.msra.mxu0 %v269
      %305 = vmatprep.subr.bf16.mxu0 0
      %306 = vmatpush1.bf16.msra.mxu0 %v270
      %307 = vmatprep.subr.bf16.mxu0 0
      %308 = vmatpush1.bf16.msra.mxu0 %v271
      %309 = vmatprep.subr.bf16.mxu0 0
      %310 = vmatpush1.bf16.msra.mxu0 %v272
      %311 = vmatprep.subr.bf16.mxu0 0
      %312 = vmatpush1.bf16.msra.mxu0 %v273
      %313 = vmatprep.subr.bf16.mxu0 0
      %314 = vmatpush1.bf16.msra.mxu0 %v274
      %315 = vmatprep.subr.bf16.mxu0 0
      %316 = vmatpush1.bf16.msra.mxu0 0
      %317 = vmatprep.subr.bf16.mxu0 0
      %318 = vmatpush1.bf16.msra.mxu0 0
      %319 = vmatprep.subr.bf16.mxu0 0
      %320 = vmatpush1.bf16.msra.mxu0 0
      %321 = vmatprep.subr.bf16.mxu0 0
      %322 = vmatpush1.bf16.msra.mxu0 0
      %323 = vmatprep.mubr.bf16.mxu0 %v289
      %324 = vmatmul.mubr.bf16.gmra.mrb[0].mxu0 %v182
      %v325 = vpop.f32.mrb[0].mxu0
      %v326 = vadd.f32 %v213, %v325
      %v327 = vpop.f32.mrb[0].mxu0
      %v328 = vpop.f32.mrb[0].mxu0
      %v329 = vadd.f32 %v213, %v328
      %v330 = vpop.f32.mrb[0].mxu0
      %331 = vdwg.mxu0
      %332 = vst [vmem:[%s175] sm:$0xff] %v326
      %333 = vst [vmem:[%s175 + $0x8] sm:$0xff] %v329
      %s334 = smul.u32 2, %s14
      %p335 = scmp.lt.s32.totalorder %s334, 3
      %s336 = scalar_select %p335, %s334, 3
      %s337 = smul.addr %s336, 8
      %s338 = scalar_lea.vmem %s3, %s337
      // Predicated region
      $region33: #{vit_encode.12} parent=31 // pred_check
        %p339 = pneg %p100
      $region34: #{vit_encode.12} parent=31 // pred_check_branch
        %341 = sbr.rel (%p339) target = $region36
      $region35: #{vit_encode.12} parent=31 // pred_region
        %s342 = smul.u32 2, %s14
      $region36: #{vit_encode.12} parent=31 // pred_fallthru
        _
    $region32: #{vit_encode.12} parent=5 // pred_fallthru
      _
    %p343 = scmp.le.s32.totalorder 2, %s9
    // Predicated region
    $region37: #{vit_encode.12} parent=5 // pred_check
      %p344 = pneg %p343
    $region38: #{vit_encode.12} parent=5 // pred_check_branch
      %346 = sbr.rel (%p344) target = $region40
    $region39: #{vit_encode.12} parent=5 // pred_region
      %s347 = ssub.s32 %s9, 2
      // Predicated region
      $region41: #{vit_encode.12} parent=39 // pred_check
        %p348 = pneg %p106
      $region42: #{vit_encode.12} parent=39 // pred_check_branch
        %350 = sbr.rel (%p348) target = $region44
      $region43: #{vit_encode.12} parent=39 // pred_region
        %s351 = smul.u32 2, %s15
        %p352 = scmp.lt.s32.totalorder %s351, 3
        %s353 = scalar_select %p352, %s351, 3
        %s354 = smul.addr %s353, 8
        %s355 = scalar_lea.vmem %s3, %s354
      $region44: #{vit_encode.12} parent=39 // pred_fallthru
        _
    $region40: #{vit_encode.12} parent=5 // pred_fallthru
      _
  $region6: #{vit_encode.12} parent=0 // loop_footer
    %s13 = sadd.s32 1, %s9
  $region7: #{vit_encode.12} parent=0 // loop_footer_branch
    %8 = sbr.rel target = $region3
  $region8: #{vit_encode.12} parent=0 // loop_exit
    _

// kernel: vit_encode.15
$region0: #{vit_encode.15}
  #allocation0 [shape = 'u32[]', space=smem, size = 0x4, offset = 0x4, fixed_abs, tag = 'smem constant byte address 0x4 - core index']
  #allocation1 [shape = 'u32[144,128]{1,0:T(1,128)}', space=vmem, size = 0x12000, scoped, tag = 'internal scratch']
  %s0 = inlined_call_operand.vmem [shape: f32[48,128], index: 0, kind: input, shape index: {}]
  %s1 = inlined_call_operand.vmem [shape: bf16[128,128], index: 1, kind: input, shape index: {}]
  %s2 = inlined_call_operand.vmem [shape: f32[1,128], index: 2, kind: input, shape index: {}]
  %s3 = inlined_call_operand.vmem [shape: f32[48,128], index: 3, kind: input, shape index: {}]
  %s4 = inlined_call_operand.vmem [shape: f32[48,128], index: 4, kind: output, shape index: {}]
  %s5 = sld [smem:[#allocation0]]
  $region49: #{vit_encode.15} parent=0
    _
  %s7 = ssub.s32 1, %s5
  %s8 = scalar_select 0, %s7, %s5
  loop: start=0, step=1, limit=5
  $region2: #{vit_encode.15} parent=0 // loop_pre_header
    _
  $region3: #{vit_encode.15} parent=0 // loop_header
    %s10 = sphi 0, %s14
    %p11 = scmp.ge.s32.totalorder %s10, 5
    %s20 = sphi 0, %s22
    %s23 = sphi 0, %s20
    %s24 = sphi 0, %s23
    %s40 = sphi 0, %s24
    %s44 = sphi 0, %s44
    %s46 = sphi 0, %s44
    %s47 = sphi 0, %s46
    %s61 = sphi 0, %s47
    %s65 = sphi 0, %s65
    %s67 = sphi 0, %s65
    %s68 = sphi 0, %s67
    %s82 = sphi 0, %s68
    %s88 = sphi 0, %s90
    %s91 = sphi 0, %s88
    %s92 = sphi 0, %s91
    %s108 = sphi 0, %s92
    %s114 = sphi 0, %s116
    %s117 = sphi 0, %s114
    %s118 = sphi 0, %s117
    %s134 = sphi 0, %s118
  $region4: #{vit_encode.15} parent=0 // loop_header_branch
    %13 = sbr.rel (%p11) target = $region8
  $region5: #{vit_encode.15} parent=0 // loop_body
    %s15 = ssub.s32 %s10, 1
    %s16 = ssub.s32 %s10, 2
    %s17 = sadd.s32 %s10, 1
    %s18 = ssub.s32 %s10, %s17
    %p19 = scmp.eq.s32.totalorder %s18, 0
    %s21 = sadd.s32 %s20, 1
    %s22 = scalar_select %p19, %s20, %s21
    %p25 = pneg %p19
    %p26 = scmp.eq.s32.totalorder %s10, 2
    %p27 = por %p25, %p26
    %p28 = scmp.ne.s32.totalorder %s20, %s23
    %p29 = scmp.eq.s32.totalorder %s10, 0
    %p30 = por %p28, %p29
    %p31 = scmp.ne.s32.totalorder %s20, %s23
    %p32 = scmp.eq.s32.totalorder %s15, 2
    %p33 = por %p31, %p32
    %p34 = scmp.ne.s32.totalorder %s23, %s24
    %p35 = scmp.eq.s32.totalorder %s15, 0
    %p36 = por %p34, %p35
    %p37 = scmp.ne.s32.totalorder %s23, %s24
    %p38 = scmp.eq.s32.totalorder %s16, 2
    %p39 = por %p37, %p38
    %p41 = scmp.ne.s32.totalorder %s24, %s40
    %p42 = scmp.eq.s32.totalorder %s16, 0
    %p43 = por %p41, %p42
    %s45 = sadd.s32 %s44, 1
    %p48 = scmp.eq.s32.totalorder %s10, 2
    %p49 = scmp.ne.s32.totalorder %s44, %s46
    %p50 = scmp.eq.s32.totalorder %s10, 0
    %p51 = por %p49, %p50
    %p52 = scmp.ne.s32.totalorder %s44, %s46
    %p53 = scmp.eq.s32.totalorder %s15, 2
    %p54 = por %p52, %p53
    %p55 = scmp.ne.s32.totalorder %s46, %s47
    %p56 = scmp.eq.s32.totalorder %s15, 0
    %p57 = por %p55, %p56
    %p58 = scmp.ne.s32.totalorder %s46, %s47
    %p59 = scmp.eq.s32.totalorder %s16, 2
    %p60 = por %p58, %p59
    %p62 = scmp.ne.s32.totalorder %s47, %s61
    %p63 = scmp.eq.s32.totalorder %s16, 0
    %p64 = por %p62, %p63
    %s66 = sadd.s32 %s65, 1
    %p69 = scmp.eq.s32.totalorder %s10, 2
    %p70 = scmp.ne.s32.totalorder %s65, %s67
    %p71 = scmp.eq.s32.totalorder %s10, 0
    %p72 = por %p70, %p71
    %p73 = scmp.ne.s32.totalorder %s65, %s67
    %p74 = scmp.eq.s32.totalorder %s15, 2
    %p75 = por %p73, %p74
    %p76 = scmp.ne.s32.totalorder %s67, %s68
    %p77 = scmp.eq.s32.totalorder %s15, 0
    %p78 = por %p76, %p77
    %p79 = scmp.ne.s32.totalorder %s67, %s68
    %p80 = scmp.eq.s32.totalorder %s16, 2
    %p81 = por %p79, %p80
    %p83 = scmp.ne.s32.totalorder %s68, %s82
    %p84 = scmp.eq.s32.totalorder %s16, 0
    %p85 = por %p83, %p84
    %s86 = ssub.s32 %s10, %s17
    %p87 = scmp.eq.s32.totalorder %s86, 0
    %s89 = sadd.s32 %s88, 1
    %s90 = scalar_select %p87, %s88, %s89
    %p93 = pneg %p87
    %p94 = scmp.eq.s32.totalorder %s10, 2
    %p95 = por %p93, %p94
    %p96 = scmp.ne.s32.totalorder %s88, %s91
    %p97 = scmp.eq.s32.totalorder %s10, 0
    %p98 = por %p96, %p97
    %p99 = scmp.ne.s32.totalorder %s88, %s91
    %p100 = scmp.eq.s32.totalorder %s15, 2
    %p101 = por %p99, %p100
    %p102 = scmp.ne.s32.totalorder %s91, %s92
    %p103 = scmp.eq.s32.totalorder %s15, 0
    %p104 = por %p102, %p103
    %p105 = scmp.ne.s32.totalorder %s91, %s92
    %p106 = scmp.eq.s32.totalorder %s16, 2
    %p107 = por %p105, %p106
    %p109 = scmp.ne.s32.totalorder %s92, %s108
    %p110 = scmp.eq.s32.totalorder %s16, 0
    %p111 = por %p109, %p110
    %s112 = ssub.s32 %s10, %s17
    %p113 = scmp.eq.s32.totalorder %s112, 0
    %s115 = sadd.s32 %s114, 1
    %s116 = scalar_select %p113, %s114, %s115
    %p119 = pneg %p113
    %p120 = scmp.eq.s32.totalorder %s10, 2
    %p121 = por %p119, %p120
    %p122 = scmp.ne.s32.totalorder %s114, %s117
    %p123 = scmp.eq.s32.totalorder %s10, 0
    %p124 = por %p122, %p123
    %p125 = scmp.ne.s32.totalorder %s114, %s117
    %p126 = scmp.eq.s32.totalorder %s15, 2
    %p127 = por %p125, %p126
    %p128 = scmp.ne.s32.totalorder %s117, %s118
    %p129 = scmp.eq.s32.totalorder %s15, 0
    %p130 = por %p128, %p129
    %p131 = scmp.ne.s32.totalorder %s117, %s118
    %p132 = scmp.eq.s32.totalorder %s16, 2
    %p133 = por %p131, %p132
    %p135 = scmp.ne.s32.totalorder %s118, %s134
    %p136 = scmp.eq.s32.totalorder %s16, 0
    %p137 = por %p135, %p136
    %p138 = scmp.le.s32.totalorder 1, %s10
    %p139 = scmp.lt.s32.totalorder %s10, 4
    %p140 = pnand %p138, %p139
    %p141 = pneg %p140
    // Predicated region
    $region9: #{vit_encode.15} parent=5 // pred_check
      _
    $region10: #{vit_encode.15} parent=5 // pred_check_branch
      %143 = sbr.rel (%p140) target = $region12
    $region11: #{vit_encode.15} parent=5 // pred_region
      %s144 = ssub.s32 %s10, 1
      // Predicated region
      $region13: #{vit_encode.15} parent=11 // pred_check
        %p145 = pneg %p57
      $region14: #{vit_encode.15} parent=11 // pred_check_branch
        %147 = sbr.rel (%p145) target = $region16
      $region15: #{vit_encode.15} parent=11 // pred_region
        _
      $region16: #{vit_encode.15} parent=11 // pred_fallthru
        _
      // Predicated region
      $region17: #{vit_encode.15} parent=11 // pred_check
        %p148 = pneg %p78
      $region18: #{vit_encode.15} parent=11 // pred_check_branch
        %150 = sbr.rel (%p148) target = $region20
      $region19: #{vit_encode.15} parent=11 // pred_region
        _
      $region20: #{vit_encode.15} parent=11 // pred_fallthru
        _
    $region12: #{vit_encode.15} parent=5 // pred_fallthru
      _
    %p151 = scmp.lt.s32.totalorder %s10, 3
    // Predicated region
    $region21: #{vit_encode.15} parent=5 // pred_check
      %p152 = pneg %p151
    $region22: #{vit_encode.15} parent=5 // pred_check_branch
      %154 = sbr.rel (%p152) target = $region24
    $region23: #{vit_encode.15} parent=5 // pred_region
      // Predicated region
      $region25: #{vit_encode.15} parent=23 // pred_check
        %p155 = pneg %p30
      $region26: #{vit_encode.15} parent=23 // pred_check_branch
        %157 = sbr.rel (%p155) target = $region28
      $region27: #{vit_encode.15} parent=23 // pred_region
        %s158 = smul.u32 2, %s10
        %p159 = scmp.lt.s32.totalorder %s158, 5
        %s160 = scalar_select %p159, %s158, 5
        %s161 = smul.addr %s160, 8
        %s162 = scalar_lea.vmem %s0, %s161
        %s163 = smul.u32 2, %s10
      $region28: #{vit_encode.15} parent=23 // pred_fallthru
        _
      // Predicated region
      $region29: #{vit_encode.15} parent=23 // pred_check
        %p164 = pneg %p98
      $region30: #{vit_encode.15} parent=23 // pred_check_branch
        %166 = sbr.rel (%p164) target = $region32
      $region31: #{vit_encode.15} parent=23 // pred_region
        %s167 = smul.u32 2, %s10
        %p168 = scmp.lt.s32.totalorder %s167, 5
        %s169 = scalar_select %p168, %s167, 5
        %s170 = smul.addr %s169, 8
        %s171 = scalar_lea.vmem %s3, %s170
        %s172 = smul.u32 2, %s10
      $region32: #{vit_encode.15} parent=23 // pred_fallthru
        _
    $region24: #{vit_encode.15} parent=5 // pred_fallthru
      _
    %p173 = scmp.le.s32.totalorder 1, %s10
    %p174 = scmp.lt.s32.totalorder %s10, 4
    %p175 = pnand %p173, %p174
    %p176 = pneg %p175
    // Predicated region
    $region33: #{vit_encode.15} parent=5 // pred_check
      _
    $region34: #{vit_encode.15} parent=5 // pred_check_branch
      %178 = sbr.rel (%p175) target = $region36
    $region35: #{vit_encode.15} parent=5 // pred_region
      %s179 = ssub.s32 %s10, 1
      %s180 = smul.u32 2, %s15
      %p181 = scmp.lt.s32.totalorder %s180, 5
      %s182 = scalar_select %p181, %s180, 5
      %s183 = smul.addr %s182, 8
      %s184 = scalar_lea.vmem %s0, %s183
      %p185 = pneg %p36
      %p186 = pneg %p33
      %p187 = pneg %p57
      %p188 = pneg %p54
      %p189 = pneg %p78
      %p190 = pneg %p75
      %s191 = smul.u32 2, %s15
      %p192 = scmp.lt.s32.totalorder %s191, 5
      %s193 = scalar_select %p192, %s191, 5
      %s194 = smul.addr %s193, 8
      %s195 = scalar_lea.vmem %s3, %s194
      %p196 = pneg %p104
      %p197 = pneg %p101
      %p198 = pneg %p130
      %p199 = pneg %p127
      %s200 = smul.u32 2, %s15
      %p201 = scmp.lt.s32.totalorder %s200, 5
      %s202 = scalar_select %p201, %s200, 5
      %s203 = smul.addr %s202, 8
      %s204 = scalar_lea.vmem %s4, %s203
      %s205 = smul.u32 2, %s15
      %p206 = scmp.lt.s32.totalorder %s205, 5
      %s207 = scalar_select %p206, %s205, 5
      %s208 = smul.addr %s207, 8
      %s209 = scalar_lea.vmem %s0, %s208
      %s210 = smul.u32 2, %s15
      %s211 = smul.u32 2, %s15
      %p212 = scmp.lt.s32.totalorder %s211, 5
      %s213 = scalar_select %p212, %s211, 5
      %s214 = smul.addr %s213, 8
      %s215 = scalar_lea.vmem %s3, %s214
      %s216 = smul.u32 2, %s15
      %s217 = smul.u32 2, %s15
      %p218 = scmp.lt.s32.totalorder %s217, 5
      %s219 = scalar_select %p218, %s217, 5
      %s220 = smul.addr %s219, 8
      %s221 = scalar_lea.vmem %s4, %s220
      %s222 = smul.u32 2, %s15
      %v224 = vld [vmem:[%s209] sm:$0xff]
      %v225 = vld [vmem:[%s209 + $0x8] sm:$0xff]
      %v226 = vpack.c.bf16 %v225, %v224
      %v227 = vld [vmem:[%s1] sm:$0xf]
      %v228 = vld [vmem:[%s1 + $0x4] sm:$0xf]
      %v229 = vld [vmem:[%s1 + $0x8] sm:$0xf]
      %v230 = vld [vmem:[%s1 + $0xc] sm:$0xf]
      %v231 = vld [vmem:[%s1 + $0x10] sm:$0xf]
      %v232 = vld [vmem:[%s1 + $0x14] sm:$0xf]
      %v233 = vld [vmem:[%s1 + $0x18] sm:$0xf]
      %v234 = vld [vmem:[%s1 + $0x1c] sm:$0xf]
      %v235 = vld [vmem:[%s1 + $0x20] sm:$0xf]
      %v236 = vld [vmem:[%s1 + $0x24] sm:$0xf]
      %v237 = vld [vmem:[%s1 + $0x28] sm:$0xf]
      %v238 = vld [vmem:[%s1 + $0x2c] sm:$0xf]
      %v239 = vld [vmem:[%s1 + $0x30] sm:$0xf]
      %v240 = vld [vmem:[%s1 + $0x34] sm:$0xf]
      %v241 = vld [vmem:[%s1 + $0x38] sm:$0xf]
      %v242 = vld [vmem:[%s1 + $0x3c] sm:$0xf]
      %v243 = vld [vmem:[%s2] sm:$0x1]
      %v245 = vlaneseq
      %v246 = vshrl.u32 %v245, 7
      %v247 = vsub.s32 0, %v246
      %v248 = vrot.slane %v243, %v247
      %v266 = vunpack.c.l.b16 %v227
      %v267 = vunpack.c.l.b16 %v228
      %v268 = vunpack.c.l.b16 %v229
      %v269 = vunpack.c.l.b16 %v230
      %v270 = vunpack.c.l.b16 %v231
      %v271 = vunpack.c.l.b16 %v232
      %v272 = vunpack.c.l.b16 %v233
      %v273 = vunpack.c.l.b16 %v234
      %v274 = vunpack.c.l.b16 %v235
      %v275 = vunpack.c.l.b16 %v236
      %v276 = vunpack.c.l.b16 %v237
      %v277 = vunpack.c.l.b16 %v238
      %v278 = vunpack.c.l.b16 %v239
      %v279 = vunpack.c.l.b16 %v240
      %v280 = vunpack.c.l.b16 %v241
      %v281 = vunpack.c.l.b16 %v242
      %v282 = vpack.c.b16 %v267, %v266
      %v283 = vpack.c.b16 %v269, %v268
      %v284 = vpack.c.b16 %v271, %v270
      %v285 = vpack.c.b16 %v273, %v272
      %v286 = vpack.c.b16 %v275, %v274
      %v287 = vpack.c.b16 %v277, %v276
      %v288 = vpack.c.b16 %v279, %v278
      %v289 = vpack.c.b16 %v281, %v280
      %298 = vmatprep.subr.bf16.mxu0 0
      %299 = vmatpush1.bf16.msra.mxu0 %v282
      %300 = vmatprep.subr.bf16.mxu0 0
      %301 = vmatpush1.bf16.msra.mxu0 %v283
      %302 = vmatprep.subr.bf16.mxu0 0
      %303 = vmatpush1.bf16.msra.mxu0 %v284
      %304 = vmatprep.subr.bf16.mxu0 0
      %305 = vmatpush1.bf16.msra.mxu0 %v285
      %306 = vmatprep.subr.bf16.mxu0 0
      %307 = vmatpush1.bf16.msra.mxu0 %v286
      %308 = vmatprep.subr.bf16.mxu0 0
      %309 = vmatpush1.bf16.msra.mxu0 %v287
      %310 = vmatprep.subr.bf16.mxu0 0
      %311 = vmatpush1.bf16.msra.mxu0 %v288
      %312 = vmatprep.subr.bf16.mxu0 0
      %313 = vmatpush1.bf16.msra.mxu0 %v289
      %314 = vmatprep.subr.bf16.mxu0 0
      %315 = vmatpush1.bf16.msra.mxu0 0
      %316 = vmatprep.subr.bf16.mxu0 0
      %317 = vmatpush1.bf16.msra.mxu0 0
      %318 = vmatprep.subr.bf16.mxu0 0
      %319 = vmatpush1.bf16.msra.mxu0 0
      %320 = vmatprep.subr.bf16.mxu0 0
      %321 = vmatpush1.bf16.msra.mxu0 0
      %322 = vmatprep.subr.bf16.mxu0 0
      %323 = vmatpush1.bf16.msra.mxu0 0
      %324 = vmatprep.subr.bf16.mxu0 0
      %325 = vmatpush1.bf16.msra.mxu0 0
      %326 = vmatprep.subr.bf16.mxu0 0
      %327 = vmatpush1.bf16.msra.mxu0 0
      %328 = vmatprep.subr.bf16.mxu0 0
      %329 = vmatpush1.bf16.msra.mxu0 0
      %330 = vmatprep.mubr.bf16.mxu0 0
      %331 = vmatmul.mubr.bf16.gmra.mrb[0].mxu0 %v226
      %v332 = vpop.f32.mrb[0].mxu0
      %v333 = vadd.f32 %v248, %v332
      %v334 = vpop.f32.mrb[0].mxu0
      %v335 = vpop.f32.mrb[0].mxu0
      %v336 = vadd.f32 %v248, %v335
      %v337 = vpop.f32.mrb[0].mxu0
      %338 = vdwg.mxu0
      %v339 = vld [vmem:[%s215] sm:$0xff]
      %v340 = vld [vmem:[%s215 + $0x8] sm:$0xff]
      %v341 = vadd.f32 %v333, %v339
      %v342 = vadd.f32 %v336, %v340
      %343 = vst [vmem:[%s221] sm:$0xff] %v341
      %344 = vst [vmem:[%s221 + $0x8] sm:$0xff] %v342
      %s345 = smul.u32 2, %s15
      %p346 = scmp.lt.s32.totalorder %s345, 5
      %s347 = scalar_select %p346, %s345, 5
      %s348 = smul.addr %s347, 8
      %s349 = scalar_lea.vmem %s4, %s348
      // Predicated region
      $region37: #{vit_encode.15} parent=35 // pred_check
        %p350 = pneg %p127
      $region38: #{vit_encode.15} parent=35 // pred_check_branch
        %352 = sbr.rel (%p350) target = $region40
      $region39: #{vit_encode.15} parent=35 // pred_region
        %s353 = smul.u32 2, %s15
      $region40: #{vit_encode.15} parent=35 // pred_fallthru
        _
    $region36: #{vit_encode.15} parent=5 // pred_fallthru
      _
    %p354 = scmp.le.s32.totalorder 2, %s10
    // Predicated region
    $region41: #{vit_encode.15} parent=5 // pred_check
      %p355 = pneg %p354
    $region42: #{vit_encode.15} parent=5 // pred_check_branch
      %357 = sbr.rel (%p355) target = $region44
    $region43: #{vit_encode.15} parent=5 // pred_region
      %s358 = ssub.s32 %s10, 2
      // Predicated region
      $region45: #{vit_encode.15} parent=43 // pred_check
        %p359 = pneg %p133
      $region46: #{vit_encode.15} parent=43 // pred_check_branch
        %361 = sbr.rel (%p359) target = $region48
      $region47: #{vit_encode.15} parent=43 // pred_region
        %s362 = smul.u32 2, %s16
        %p363 = scmp.lt.s32.totalorder %s362, 5
        %s364 = scalar_select %p363, %s362, 5
        %s365 = smul.addr %s364, 8
        %s366 = scalar_lea.vmem %s4, %s365
      $region48: #{vit_encode.15} parent=43 // pred_fallthru
        _
    $region44: #{vit_encode.15} parent=5 // pred_fallthru
      _
  $region6: #{vit_encode.15} parent=0 // loop_footer
    %s14 = sadd.s32 1, %s10
  $region7: #{vit_encode.15} parent=0 // loop_footer_branch
    %9 = sbr.rel target = $region3
  $region8: #{vit_encode.15} parent=0 // loop_exit
    _

// kernel: vit_encode.13
$region0: #{vit_encode.13}
  #allocation0 [shape = 'u32[]', space=smem, size = 0x4, offset = 0x4, fixed_abs, tag = 'smem constant byte address 0x4 - core index']
  #allocation1 [shape = 'u32[144,128]{1,0:T(1,128)}', space=vmem, size = 0x12000, scoped, tag = 'internal scratch']
  %s0 = inlined_call_operand.vmem [shape: f32[48,128], index: 0, kind: input, shape index: {}]
  %s1 = inlined_call_operand.vmem [shape: f32[1,128], index: 1, kind: input, shape index: {}]
  %s2 = inlined_call_operand.vmem [shape: f32[1,128], index: 2, kind: input, shape index: {}]
  %s3 = inlined_call_operand.vmem [shape: bf16[128,384], index: 3, kind: input, shape index: {}]
  %s4 = inlined_call_operand.vmem [shape: f32[1,384], index: 4, kind: input, shape index: {}]
  %s5 = inlined_call_operand.vmem [shape: f32[48,384], index: 5, kind: output, shape index: {}]
  %s6 = sld [smem:[#allocation0]]
  $region53: #{vit_encode.13} parent=0
    _
  %s8 = ssub.s32 1, %s6
  %s9 = scalar_select 0, %s8, %s6
  loop: start=0, step=1, limit=5
  $region2: #{vit_encode.13} parent=0 // loop_pre_header
    _
  $region3: #{vit_encode.13} parent=0 // loop_header
    %s11 = sphi 0, %s15
    %p12 = scmp.ge.s32.totalorder %s11, 5
    %s21 = sphi 0, %s23
    %s24 = sphi 0, %s21
    %s25 = sphi 0, %s24
    %s41 = sphi 0, %s25
    %s45 = sphi 0, %s45
    %s47 = sphi 0, %s45
    %s48 = sphi 0, %s47
    %s62 = sphi 0, %s48
    %s66 = sphi 0, %s66
    %s68 = sphi 0, %s66
    %s69 = sphi 0, %s68
    %s83 = sphi 0, %s69
    %s87 = sphi 0, %s87
    %s89 = sphi 0, %s87
    %s90 = sphi 0, %s89
    %s104 = sphi 0, %s90
    %s108 = sphi 0, %s108
    %s110 = sphi 0, %s108
    %s111 = sphi 0, %s110
    %s125 = sphi 0, %s111
    %s131 = sphi 0, %s133
    %s134 = sphi 0, %s131
    %s135 = sphi 0, %s134
    %s151 = sphi 0, %s135
  $region4: #{vit_encode.13} parent=0 // loop_header_branch
    %14 = sbr.rel (%p12) target = $region8
  $region5: #{vit_encode.13} parent=0 // loop_body
    %s16 = ssub.s32 %s11, 1
    %s17 = ssub.s32 %s11, 2
    %s18 = sadd.s32 %s11, 1
    %s19 = ssub.s32 %s11, %s18
    %p20 = scmp.eq.s32.totalorder %s19, 0
    %s22 = sadd.s32 %s21, 1
    %s23 = scalar_select %p20, %s21, %s22
    %p26 = pneg %p20
    %p27 = scmp.eq.s32.totalorder %s11, 2
    %p28 = por %p26, %p27
    %p29 = scmp.ne.s32.totalorder %s21, %s24
    %p30 = scmp.eq.s32.totalorder %s11, 0
    %p31 = por %p29, %p30
    %p32 = scmp.ne.s32.totalorder %s21, %s24
    %p33 = scmp.eq.s32.totalorder %s16, 2
    %p34 = por %p32, %p33
    %p35 = scmp.ne.s32.totalorder %s24, %s25
    %p36 = scmp.eq.s32.totalorder %s16, 0
    %p37 = por %p35, %p36
    %p38 = scmp.ne.s32.totalorder %s24, %s25
    %p39 = scmp.eq.s32.totalorder %s17, 2
    %p40 = por %p38, %p39
    %p42 = scmp.ne.s32.totalorder %s25, %s41
    %p43 = scmp.eq.s32.totalorder %s17, 0
    %p44 = por %p42, %p43
    %s46 = sadd.s32 %s45, 1
    %p49 = scmp.eq.s32.totalorder %s11, 2
    %p50 = scmp.ne.s32.totalorder %s45, %s47
    %p51 = scmp.eq.s32.totalorder %s11, 0
    %p52 = por %p50, %p51
    %p53 = scmp.ne.s32.totalorder %s45, %s47
    %p54 = scmp.eq.s32.totalorder %s16, 2
    %p55 = por %p53, %p54
    %p56 = scmp.ne.s32.totalorder %s47, %s48
    %p57 = scmp.eq.s32.totalorder %s16, 0
    %p58 = por %p56, %p57
    %p59 = scmp.ne.s32.totalorder %s47, %s48
    %p60 = scmp.eq.s32.totalorder %s17, 2
    %p61 = por %p59, %p60
    %p63 = scmp.ne.s32.totalorder %s48, %s62
    %p64 = scmp.eq.s32.totalorder %s17, 0
    %p65 = por %p63, %p64
    %s67 = sadd.s32 %s66, 1
    %p70 = scmp.eq.s32.totalorder %s11, 2
    %p71 = scmp.ne.s32.totalorder %s66, %s68
    %p72 = scmp.eq.s32.totalorder %s11, 0
    %p73 = por %p71, %p72
    %p74 = scmp.ne.s32.totalorder %s66, %s68
    %p75 = scmp.eq.s32.totalorder %s16, 2
    %p76 = por %p74, %p75
    %p77 = scmp.ne.s32.totalorder %s68, %s69
    %p78 = scmp.eq.s32.totalorder %s16, 0
    %p79 = por %p77, %p78
    %p80 = scmp.ne.s32.totalorder %s68, %s69
    %p81 = scmp.eq.s32.totalorder %s17, 2
    %p82 = por %p80, %p81
    %p84 = scmp.ne.s32.totalorder %s69, %s83
    %p85 = scmp.eq.s32.totalorder %s17, 0
    %p86 = por %p84, %p85
    %s88 = sadd.s32 %s87, 1
    %p91 = scmp.eq.s32.totalorder %s11, 2
    %p92 = scmp.ne.s32.totalorder %s87, %s89
    %p93 = scmp.eq.s32.totalorder %s11, 0
    %p94 = por %p92, %p93
    %p95 = scmp.ne.s32.totalorder %s87, %s89
    %p96 = scmp.eq.s32.totalorder %s16, 2
    %p97 = por %p95, %p96
    %p98 = scmp.ne.s32.totalorder %s89, %s90
    %p99 = scmp.eq.s32.totalorder %s16, 0
    %p100 = por %p98, %p99
    %p101 = scmp.ne.s32.totalorder %s89, %s90
    %p102 = scmp.eq.s32.totalorder %s17, 2
    %p103 = por %p101, %p102
    %p105 = scmp.ne.s32.totalorder %s90, %s104
    %p106 = scmp.eq.s32.totalorder %s17, 0
    %p107 = por %p105, %p106
    %s109 = sadd.s32 %s108, 1
    %p112 = scmp.eq.s32.totalorder %s11, 2
    %p113 = scmp.ne.s32.totalorder %s108, %s110
    %p114 = scmp.eq.s32.totalorder %s11, 0
    %p115 = por %p113, %p114
    %p116 = scmp.ne.s32.totalorder %s108, %s110
    %p117 = scmp.eq.s32.totalorder %s16, 2
    %p118 = por %p116, %p117
    %p119 = scmp.ne.s32.totalorder %s110, %s111
    %p120 = scmp.eq.s32.totalorder %s16, 0
    %p121 = por %p119, %p120
    %p122 = scmp.ne.s32.totalorder %s110, %s111
    %p123 = scmp.eq.s32.totalorder %s17, 2
    %p124 = por %p122, %p123
    %p126 = scmp.ne.s32.totalorder %s111, %s125
    %p127 = scmp.eq.s32.totalorder %s17, 0
    %p128 = por %p126, %p127
    %s129 = ssub.s32 %s11, %s18
    %p130 = scmp.eq.s32.totalorder %s129, 0
    %s132 = sadd.s32 %s131, 1
    %s133 = scalar_select %p130, %s131, %s132
    %p136 = pneg %p130
    %p137 = scmp.eq.s32.totalorder %s11, 2
    %p138 = por %p136, %p137
    %p139 = scmp.ne.s32.totalorder %s131, %s134
    %p140 = scmp.eq.s32.totalorder %s11, 0
    %p141 = por %p139, %p140
    %p142 = scmp.ne.s32.totalorder %s131, %s134
    %p143 = scmp.eq.s32.totalorder %s16, 2
    %p144 = por %p142, %p143
    %p145 = scmp.ne.s32.totalorder %s134, %s135
    %p146 = scmp.eq.s32.totalorder %s16, 0
    %p147 = por %p145, %p146
    %p148 = scmp.ne.s32.totalorder %s134, %s135
    %p149 = scmp.eq.s32.totalorder %s17, 2
    %p150 = por %p148, %p149
    %p152 = scmp.ne.s32.totalorder %s135, %s151
    %p153 = scmp.eq.s32.totalorder %s17, 0
    %p154 = por %p152, %p153
    %p155 = scmp.le.s32.totalorder 1, %s11
    %p156 = scmp.lt.s32.totalorder %s11, 4
    %p157 = pnand %p155, %p156
    %p158 = pneg %p157
    // Predicated region
    $region9: #{vit_encode.13} parent=5 // pred_check
      _
    $region10: #{vit_encode.13} parent=5 // pred_check_branch
      %160 = sbr.rel (%p157) target = $region12
    $region11: #{vit_encode.13} parent=5 // pred_region
      %s161 = ssub.s32 %s11, 1
      // Predicated region
      $region13: #{vit_encode.13} parent=11 // pred_check
        %p162 = pneg %p58
      $region14: #{vit_encode.13} parent=11 // pred_check_branch
        %164 = sbr.rel (%p162) target = $region16
      $region15: #{vit_encode.13} parent=11 // pred_region
        _
      $region16: #{vit_encode.13} parent=11 // pred_fallthru
        _
      // Predicated region
      $region17: #{vit_encode.13} parent=11 // pred_check
        %p165 = pneg %p79
      $region18: #{vit_encode.13} parent=11 // pred_check_branch
        %167 = sbr.rel (%p165) target = $region20
      $region19: #{vit_encode.13} parent=11 // pred_region
        _
      $region20: #{vit_encode.13} parent=11 // pred_fallthru
        _
      // Predicated region
      $region21: #{vit_encode.13} parent=11 // pred_check
        %p168 = pneg %p100
      $region22: #{vit_encode.13} parent=11 // pred_check_branch
        %170 = sbr.rel (%p168) target = $region24
      $region23: #{vit_encode.13} parent=11 // pred_region
        _
      $region24: #{vit_encode.13} parent=11 // pred_fallthru
        _
      // Predicated region
      $region25: #{vit_encode.13} parent=11 // pred_check
        %p171 = pneg %p121
      $region26: #{vit_encode.13} parent=11 // pred_check_branch
        %173 = sbr.rel (%p171) target = $region28
      $region27: #{vit_encode.13} parent=11 // pred_region
        _
      $region28: #{vit_encode.13} parent=11 // pred_fallthru
        _
    $region12: #{vit_encode.13} parent=5 // pred_fallthru
      _
    %p174 = scmp.lt.s32.totalorder %s11, 3
    // Predicated region
    $region29: #{vit_encode.13} parent=5 // pred_check
      %p175 = pneg %p174
    $region30: #{vit_encode.13} parent=5 // pred_check_branch
      %177 = sbr.rel (%p175) target = $region32
    $region31: #{vit_encode.13} parent=5 // pred_region
      // Predicated region
      $region33: #{vit_encode.13} parent=31 // pred_check
        %p178 = pneg %p31
      $region34: #{vit_encode.13} parent=31 // pred_check_branch
        %180 = sbr.rel (%p178) target = $region36
      $region35: #{vit_encode.13} parent=31 // pred_region
        %s181 = smul.u32 2, %s11
        %p182 = scmp.lt.s32.totalorder %s181, 5
        %s183 = scalar_select %p182, %s181, 5
        %s184 = smul.addr %s183, 8
        %s185 = scalar_lea.vmem %s0, %s184
        %s186 = smul.u32 2, %s11
      $region36: #{vit_encode.13} parent=31 // pred_fallthru
        _
    $region32: #{vit_encode.13} parent=5 // pred_fallthru
      _
    %p187 = scmp.le.s32.totalorder 1, %s11
    %p188 = scmp.lt.s32.totalorder %s11, 4
    %p189 = pnand %p187, %p188
    %p190 = pneg %p189
    // Predicated region
    $region37: #{vit_encode.13} parent=5 // pred_check
      _
    $region38: #{vit_encode.13} parent=5 // pred_check_branch
      %192 = sbr.rel (%p189) target = $region40
    $region39: #{vit_encode.13} parent=5 // pred_region
      %s193 = ssub.s32 %s11, 1
      %s194 = smul.u32 2, %s16
      %p195 = scmp.lt.s32.totalorder %s194, 5
      %s196 = scalar_select %p195, %s194, 5
      %s197 = smul.addr %s196, 8
      %s198 = scalar_lea.vmem %s0, %s197
      %p199 = pneg %p37
      %p200 = pneg %p34
      %p201 = pneg %p58
      %p202 = pneg %p55
      %p203 = pneg %p79
      %p204 = pneg %p76
      %p205 = pneg %p100
      %p206 = pneg %p97
      %p207 = pneg %p121
      %p208 = pneg %p118
      %p209 = pneg %p147
      %p210 = pneg %p144
      %s211 = smul.u32 2, %s16
      %p212 = scmp.lt.s32.totalorder %s211, 5
      %s213 = scalar_select %p212, %s211, 5
      %s214 = smul.addr %s213, 3
      %s215 = smul.addr %s214, 8
      %s216 = scalar_lea.vmem %s5, %s215
      %s217 = smul.u32 2, %s16
      %p218 = scmp.lt.s32.totalorder %s217, 5
      %s219 = scalar_select %p218, %s217, 5
      %s220 = smul.addr %s219, 8
      %s221 = scalar_lea.vmem %s0, %s220
      %s222 = smul.u32 2, %s16
      %s223 = smul.u32 2, %s16
      %p224 = scmp.lt.s32.totalorder %s223, 5
      %s225 = scalar_select %p224, %s223, 5
      %s226 = smul.addr %s225, 3
      %s227 = smul.addr %s226, 8
      %s228 = scalar_lea.vmem %s5, %s227
      %s229 = smul.u32 2, %s16
      %v231 = vld [vmem:[%s221] sm:$0xff]
      %v232 = vld [vmem:[%s221 + $0x8] sm:$0xff]
      %v233 = vld [vmem:[%s1] sm:$0x1]
      %v234 = vld [vmem:[%s2] sm:$0x1]
      %v235 = vld [vmem:[%s4] sm:$0x7]
      %236 = vadd.xlane.f32.xlu0 %v231
      %v237 = vpop.xlane.xlu0 %236
      %238 = vadd.xlane.f32.xlu0 %v232
      %v239 = vpop.xlane.xlu0 %238
      %v240 = vrcp.pop 128.0
      %v241 = vmul.f32 %v237, %v240
      %v242 = vmul.f32 %v239, %v240
      %v243 = vsub.f32 %v231, %v241
      %v244 = vsub.f32 %v232, %v242
      %v245 = vmul.f32 %v243, %v243
      %v246 = vmul.f32 %v244, %v244
      %247 = vadd.xlane.f32.xlu0 %v245
      %v248 = vpop.xlane.xlu0 %247
      %249 = vadd.xlane.f32.xlu0 %v246
      %v250 = vpop.xlane.xlu0 %249
      %v251 = vmul.f32 %v248, %v240
      %v252 = vmul.f32 %v250, %v240
      %v253 = vadd.f32 %v251, 1e-05
      %v254 = vadd.f32 %v252, 1e-05
      %v255 = vrsqrt.pop %v253
      %v256 = vrsqrt.pop %v254
      %v257 = vmul.f32 %v243, %v255
      %v258 = vmul.f32 %v244, %v256
      %v260 = vlaneseq
      %v261 = vshrl.u32 %v260, 7
      %v262 = vsub.s32 0, %v261
      %v263 = vrot.slane %v233, %v262
      %v265 = vmul.f32 %v257, %v263
      %v266 = vmul.f32 %v258, %v263
      %v268 = vlaneseq
      %v269 = vshrl.u32 %v268, 7
      %v270 = vsub.s32 0, %v269
      %v271 = vrot.slane %v234, %v270
      %v273 = vadd.f32 %v265, %v271
      %v274 = vadd.f32 %v266, %v271
      %v275 = vpack.c.bf16 %v274, %v273
      %v276 = vld [vmem:[%s3] sm:$0xff]
      %v277 = vld [vmem:[%s3 + $0x8] sm:$0xf]
      %v278 = vld [vmem:[%s3 + $0xc] sm:$0xff]
      %v279 = vld [vmem:[%s3 + $0x14] sm:$0xf]
      %v280 = vld [vmem:[%s3 + $0x18] sm:$0xff]
      %v281 = vld [vmem:[%s3 + $0x20] sm:$0xf]
      %v282 = vld [vmem:[%s3 + $0x24] sm:$0xff]
      %v283 = vld [vmem:[%s3 + $0x2c] sm:$0xf]
      %v284 = vld [vmem:[%s3 + $0x30] sm:$0xff]
      %v285 = vld [vmem:[%s3 + $0x38] sm:$0xf]
      %v286 = vld [vmem:[%s3 + $0x3c] sm:$0xff]
      %v287 = vld [vmem:[%s3 + $0x44] sm:$0xf]
      %v288 = vld [vmem:[%s3 + $0x48] sm:$0xff]
      %v289 = vld [vmem:[%s3 + $0x50] sm:$0xf]
      %v290 = vld [vmem:[%s3 + $0x54] sm:$0xff]
      %v291 = vld [vmem:[%s3 + $0x5c] sm:$0xf]
      %v292 = vld [vmem:[%s3 + $0x60] sm:$0xff]
      %v293 = vld [vmem:[%s3 + $0x68] sm:$0xf]
      %v294 = vld [vmem:[%s3 + $0x6c] sm:$0xff]
      %v295 = vld [vmem:[%s3 + $0x74] sm:$0xf]
      %v296 = vld [vmem:[%s3 + $0x78] sm:$0xff]
      %v297 = vld [vmem:[%s3 + $0x80] sm:$0xf]
      %v298 = vld [vmem:[%s3 + $0x84] sm:$0xff]
      %v299 = vld [vmem:[%s3 + $0x8c] sm:$0xf]
      %v300 = vld [vmem:[%s3 + $0x90] sm:$0xff]
      %v301 = vld [vmem:[%s3 + $0x98] sm:$0xf]
      %v302 = vld [vmem:[%s3 + $0x9c] sm:$0xff]
      %v303 = vld [vmem:[%s3 + $0xa4] sm:$0xf]
      %v304 = vld [vmem:[%s3 + $0xa8] sm:$0xff]
      %v305 = vld [vmem:[%s3 + $0xb0] sm:$0xf]
      %v306 = vld [vmem:[%s3 + $0xb4] sm:$0xff]
      %v307 = vld [vmem:[%s3 + $0xbc] sm:$0xf]
      %v309 = vlaneseq
      %v310 = vshrl.u32 %v309, 7
      %v311 = vsub.s32 0, %v310
      %v312 = vrot.slane %v235, %v311
      %v313 = vlaneseq
      %v314 = vshrl.u32 %v313, 7
      %v315 = vsub.s32 1, %v314
      %v316 = vrot.slane %v235, %v315
      %v317 = vlaneseq
      %v318 = vshrl.u32 %v317, 7
      %v319 = vsub.s32 2, %v318
      %v320 = vrot.slane %v235, %v319
      %v356 = vunpack.c.l.b16 %v276
      %v357 = vunpack.c.h.b16 %v276
      %v358 = vunpack.c.l.b16 %v277
      %v359 = vunpack.c.l.b16 %v278
      %v360 = vunpack.c.h.b16 %v278
      %v361 = vunpack.c.l.b16 %v279
      %v362 = vunpack.c.l.b16 %v280
      %v363 = vunpack.c.h.b16 %v280
      %v364 = vunpack.c.l.b16 %v281
      %v365 = vunpack.c.l.b16 %v282
      %v366 = vunpack.c.h.b16 %v282
      %v367 = vunpack.c.l.b16 %v283
      %v368 = vunpack.c.l.b16 %v284
      %v369 = vunpack.c.h.b16 %v284
      %v370 = vunpack.c.l.b16 %v285
      %v371 = vunpack.c.l.b16 %v286
      %v372 = vunpack.c.h.b16 %v286
      %v373 = vunpack.c.l.b16 %v287
      %v374 = vunpack.c.l.b16 %v288
      %v375 = vunpack.c.h.b16 %v288
      %v376 = vunpack.c.l.b16 %v289
      %v377 = vunpack.c.l.b16 %v290
      %v378 = vunpack.c.h.b16 %v290
      %v379 = vunpack.c.l.b16 %v291
      %v380 = vunpack.c.l.b16 %v292
      %v381 = vunpack.c.h.b16 %v292
      %v382 = vunpack.c.l.b16 %v293
      %v383 = vunpack.c.l.b16 %v294
      %v384 = vunpack.c.h.b16 %v294
      %v385 = vunpack.c.l.b16 %v295
      %v386 = vunpack.c.l.b16 %v296
      %v387 = vunpack.c.h.b16 %v296
      %v388 = vunpack.c.l.b16 %v297
      %v389 = vunpack.c.l.b16 %v298
      %v390 = vunpack.c.h.b16 %v298
      %v391 = vunpack.c.l.b16 %v299
      %v392 = vunpack.c.l.b16 %v300
      %v393 = vunpack.c.h.b16 %v300
      %v394 = vunpack.c.l.b16 %v301
      %v395 = vunpack.c.l.b16 %v302
      %v396 = vunpack.c.h.b16 %v302
      %v397 = vunpack.c.l.b16 %v303
      %v398 = vunpack.c.l.b16 %v304
      %v399 = vunpack.c.h.b16 %v304
      %v400 = vunpack.c.l.b16 %v305
      %v401 = vunpack.c.l.b16 %v306
      %v402 = vunpack.c.h.b16 %v306
      %v403 = vunpack.c.l.b16 %v307
      %v404 = vpack.c.b16 %v359, %v356
      %v405 = vpack.c.b16 %v360, %v357
      %v406 = vpack.c.b16 %v361, %v358
      %v407 = vpack.c.b16 %v365, %v362
      %v408 = vpack.c.b16 %v366, %v363
      %v409 = vpack.c.b16 %v367, %v364
      %v410 = vpack.c.b16 %v371, %v368
      %v411 = vpack.c.b16 %v372, %v369
      %v412 = vpack.c.b16 %v373, %v370
      %v413 = vpack.c.b16 %v377, %v374
      %v414 = vpack.c.b16 %v378, %v375
      %v415 = vpack.c.b16 %v379, %v376
      %v416 = vpack.c.b16 %v383, %v380
      %v417 = vpack.c.b16 %v384, %v381
      %v418 = vpack.c.b16 %v385, %v382
      %v419 = vpack.c.b16 %v389, %v386
      %v420 = vpack.c.b16 %v390, %v387
      %v421 = vpack.c.b16 %v391, %v388
      %v422 = vpack.c.b16 %v395, %v392
      %v423 = vpack.c.b16 %v396, %v393
      %v424 = vpack.c.b16 %v397, %v394
      %v425 = vpack.c.b16 %v401, %v398
      %v426 = vpack.c.b16 %v402, %v399
      %v427 = vpack.c.b16 %v403, %v400
      %452 = vmatprep.subr.bf16.mxu0 %v405
      %453 = vmatpush1.bf16.msra.mxu0 %v404
      %454 = vmatprep.subr.bf16.mxu0 %v408
      %455 = vmatpush1.bf16.msra.mxu0 %v407
      %456 = vmatprep.subr.bf16.mxu0 %v411
      %457 = vmatpush1.bf16.msra.mxu0 %v410
      %458 = vmatprep.subr.bf16.mxu0 %v414
      %459 = vmatpush1.bf16.msra.mxu0 %v413
      %460 = vmatprep.subr.bf16.mxu0 %v417
      %461 = vmatpush1.bf16.msra.mxu0 %v416
      %462 = vmatprep.subr.bf16.mxu0 %v420
      %463 = vmatpush1.bf16.msra.mxu0 %v419
      %464 = vmatprep.subr.bf16.mxu0 %v423
      %465 = vmatpush1.bf16.msra.mxu0 %v422
      %466 = vmatprep.subr.bf16.mxu0 %v426
      %467 = vmatpush1.bf16.msra.mxu0 %v425
      %468 = vmatprep.subr.bf16.mxu0 0
      %469 = vmatpush1.bf16.msra.mxu0 0
      %470 = vmatprep.subr.bf16.mxu0 0
      %471 = vmatpush1.bf16.msra.mxu0 0
      %472 = vmatprep.subr.bf16.mxu0 0
      %473 = vmatpush1.bf16.msra.mxu0 0
      %474 = vmatprep.subr.bf16.mxu0 0
      %475 = vmatpush1.bf16.msra.mxu0 0
      %476 = vmatprep.subr.bf16.mxu0 0
      %477 = vmatpush1.bf16.msra.mxu0 0
      %478 = vmatprep.subr.bf16.mxu0 0
      %479 = vmatpush1.bf16.msra.mxu0 0
      %480 = vmatprep.subr.bf16.mxu0 0
      %481 = vmatpush1.bf16.msra.mxu0 0
      %482 = vmatprep.subr.bf16.mxu0 0
      %483 = vmatpush1.bf16.msra.mxu0 0
      %484 = vmatprep.mubr.bf16.mxu0 0
      %485 = vmatmul.mubr.bf16.gmra.mrb[0].mxu0 %v275
      %v486 = vpop.f32.mrb[0].mxu0
      %v487 = vadd.f32 %v312, %v486
      %v488 = vpop.f32.mrb[0].mxu0
      %v489 = vadd.f32 %v316, %v488
      %v490 = vpop.f32.mrb[0].mxu0
      %v491 = vadd.f32 %v312, %v490
      %v492 = vpop.f32.mrb[0].mxu0
      %v493 = vadd.f32 %v316, %v492
      %494 = vdwg.mxu0
      %495 = vmatprep.subr.bf16.mxu0 0
      %496 = vmatpush1.bf16.msra.mxu0 %v406
      %497 = vmatprep.subr.bf16.mxu0 0
      %498 = vmatpush1.bf16.msra.mxu0 %v409
      %499 = vmatprep.subr.bf16.mxu0 0
      %500 = vmatpush1.bf16.msra.mxu0 %v412
      %501 = vmatprep.subr.bf16.mxu0 0
      %502 = vmatpush1.bf16.msra.mxu0 %v415
      %503 = vmatprep.subr.bf16.mxu0 0
      %504 = vmatpush1.bf16.msra.mxu0 %v418
      %505 = vmatprep.subr.bf16.mxu0 0
      %506 = vmatpush1.bf16.msra.mxu0 %v421
      %507 = vmatprep.subr.bf16.mxu0 0
      %508 = vmatpush1.bf16.msra.mxu0 %v424
      %509 = vmatprep.subr.bf16.mxu0 0
      %510 = vmatpush1.bf16.msra.mxu0 %v427
      %511 = vmatprep.subr.bf16.mxu0 0
      %512 = vmatpush1.bf16.msra.mxu0 0
      %513 = vmatprep.subr.bf16.mxu0 0
      %514 = vmatpush1.bf16.msra.mxu0 0
      %515 = vmatprep.subr.bf16.mxu0 0
      %516 = vmatpush1.bf16.msra.mxu0 0
      %517 = vmatprep.subr.bf16.mxu0 0
      %518 = vmatpush1.bf16.msra.mxu0 0
      %519 = vmatprep.subr.bf16.mxu0 0
      %520 = vmatpush1.bf16.msra.mxu0 0
      %521 = vmatprep.subr.bf16.mxu0 0
      %522 = vmatpush1.bf16.msra.mxu0 0
      %523 = vmatprep.subr.bf16.mxu0 0
      %524 = vmatpush1.bf16.msra.mxu0 0
      %525 = vmatprep.subr.bf16.mxu0 0
      %526 = vmatpush1.bf16.msra.mxu0 0
      %527 = vmatprep.mubr.bf16.mxu0 0
      %528 = vmatmul.mubr.bf16.gmra.mrb[0].mxu0 %v275
      %v529 = vpop.f32.mrb[0].mxu0
      %v530 = vadd.f32 %v320, %v529
      %v531 = vpop.f32.mrb[0].mxu0
      %v532 = vpop.f32.mrb[0].mxu0
      %v533 = vadd.f32 %v320, %v532
      %v534 = vpop.f32.mrb[0].mxu0
      %535 = vdwg.mxu0
      %536 = vst [vmem:[%s228] sm:$0xff] %v487
      %537 = vst [vmem:[%s228 + $0x8] sm:$0xff] %v489
      %538 = vst [vmem:[%s228 + $0x10] sm:$0xff] %v530
      %539 = vst [vmem:[%s228 + $0x18] sm:$0xff] %v491
      %540 = vst [vmem:[%s228 + $0x20] sm:$0xff] %v493
      %541 = vst [vmem:[%s228 + $0x28] sm:$0xff] %v533
      %s542 = smul.u32 2, %s16
      %p543 = scmp.lt.s32.totalorder %s542, 5
      %s544 = scalar_select %p543, %s542, 5
      %s545 = smul.addr %s544, 3
      %s546 = smul.addr %s545, 8
      %s547 = scalar_lea.vmem %s5, %s546
      // Predicated region
      $region41: #{vit_encode.13} parent=39 // pred_check
        %p548 = pneg %p144
      $region42: #{vit_encode.13} parent=39 // pred_check_branch
        %550 = sbr.rel (%p548) target = $region44
      $region43: #{vit_encode.13} parent=39 // pred_region
        %s551 = smul.u32 2, %s16
      $region44: #{vit_encode.13} parent=39 // pred_fallthru
        _
    $region40: #{vit_encode.13} parent=5 // pred_fallthru
      _
    %p552 = scmp.le.s32.totalorder 2, %s11
    // Predicated region
    $region45: #{vit_encode.13} parent=5 // pred_check
      %p553 = pneg %p552
    $region46: #{vit_encode.13} parent=5 // pred_check_branch
      %555 = sbr.rel (%p553) target = $region48
    $region47: #{vit_encode.13} parent=5 // pred_region
      %s556 = ssub.s32 %s11, 2
      // Predicated region
      $region49: #{vit_encode.13} parent=47 // pred_check
        %p557 = pneg %p150
      $region50: #{vit_encode.13} parent=47 // pred_check_branch
        %559 = sbr.rel (%p557) target = $region52
      $region51: #{vit_encode.13} parent=47 // pred_region
        %s560 = smul.u32 2, %s17
        %p561 = scmp.lt.s32.totalorder %s560, 5
        %s562 = scalar_select %p561, %s560, 5
        %s563 = smul.addr %s562, 3
        %s564 = smul.addr %s563, 8
        %s565 = scalar_lea.vmem %s5, %s564
      $region52: #{vit_encode.13} parent=47 // pred_fallthru
        _
    $region48: #{vit_encode.13} parent=5 // pred_fallthru
      _
  $region6: #{vit_encode.13} parent=0 // loop_footer
    %s15 = sadd.s32 1, %s11
  $region7: #{vit_encode.13} parent=0 // loop_footer_branch
    %10 = sbr.rel target = $region3
  $region8: #{vit_encode.13} parent=0 // loop_exit
    _

// kernel: vit_encode.14
$region0: #{vit_encode.14}
  #allocation0 [shape = 'u32[]', space=smem, size = 0x4, offset = 0x4, fixed_abs, tag = 'smem constant byte address 0x4 - core index']
  #allocation1 [shape = 'u32[144,128]{1,0:T(1,128)}', space=vmem, size = 0x12000, scoped, tag = 'internal scratch']
  %s0 = inlined_call_operand.vmem [shape: f32[2,24,384], index: 0, kind: input, shape index: {}]
  %s1 = inlined_call_operand.vmem [shape: f32[2,24,128], index: 1, kind: output, shape index: {}]
  %s2 = sld [smem:[#allocation0]]
  $region37: #{vit_encode.14} parent=0
    _
  %s4 = ssub.s32 1, %s2
  %s5 = scalar_select 0, %s4, %s2
  loop: start=0, step=1, limit=4
  $region2: #{vit_encode.14} parent=0 // loop_pre_header
    _
  $region3: #{vit_encode.14} parent=0 // loop_header
    %s7 = sphi 0, %s11
    %p8 = scmp.ge.s32.totalorder %s7, 4
    %s17 = sphi 0, %s19
    %s20 = sphi 0, %s17
    %s21 = sphi 0, %s20
    %s37 = sphi 0, %s21
    %s43 = sphi 0, %s45
    %s46 = sphi 0, %s43
    %s47 = sphi 0, %s46
    %s63 = sphi 0, %s47
  $region4: #{vit_encode.14} parent=0 // loop_header_branch
    %10 = sbr.rel (%p8) target = $region8
  $region5: #{vit_encode.14} parent=0 // loop_body
    %s12 = ssub.s32 %s7, 1
    %s13 = ssub.s32 %s7, 2
    %s14 = sadd.s32 %s7, 1
    %s15 = ssub.s32 %s7, %s14
    %p16 = scmp.eq.s32.totalorder %s15, 0
    %s18 = sadd.s32 %s17, 1
    %s19 = scalar_select %p16, %s17, %s18
    %p22 = pneg %p16
    %p23 = scmp.eq.s32.totalorder %s7, 1
    %p24 = por %p22, %p23
    %p25 = scmp.ne.s32.totalorder %s17, %s20
    %p26 = scmp.eq.s32.totalorder %s7, 0
    %p27 = por %p25, %p26
    %p28 = scmp.ne.s32.totalorder %s17, %s20
    %p29 = scmp.eq.s32.totalorder %s12, 1
    %p30 = por %p28, %p29
    %p31 = scmp.ne.s32.totalorder %s20, %s21
    %p32 = scmp.eq.s32.totalorder %s12, 0
    %p33 = por %p31, %p32
    %p34 = scmp.ne.s32.totalorder %s20, %s21
    %p35 = scmp.eq.s32.totalorder %s13, 1
    %p36 = por %p34, %p35
    %p38 = scmp.ne.s32.totalorder %s21, %s37
    %p39 = scmp.eq.s32.totalorder %s13, 0
    %p40 = por %p38, %p39
    %s41 = ssub.s32 %s7, %s14
    %p42 = scmp.eq.s32.totalorder %s41, 0
    %s44 = sadd.s32 %s43, 1
    %s45 = scalar_select %p42, %s43, %s44
    %p48 = pneg %p42
    %p49 = scmp.eq.s32.totalorder %s7, 1
    %p50 = por %p48, %p49
    %p51 = scmp.ne.s32.totalorder %s43, %s46
    %p52 = scmp.eq.s32.totalorder %s7, 0
    %p53 = por %p51, %p52
    %p54 = scmp.ne.s32.totalorder %s43, %s46
    %p55 = scmp.eq.s32.totalorder %s12, 1
    %p56 = por %p54, %p55
    %p57 = scmp.ne.s32.totalorder %s46, %s47
    %p58 = scmp.eq.s32.totalorder %s12, 0
    %p59 = por %p57, %p58
    %p60 = scmp.ne.s32.totalorder %s46, %s47
    %p61 = scmp.eq.s32.totalorder %s13, 1
    %p62 = por %p60, %p61
    %p64 = scmp.ne.s32.totalorder %s47, %s63
    %p65 = scmp.eq.s32.totalorder %s13, 0
    %p66 = por %p64, %p65
    %p67 = scmp.le.s32.totalorder 1, %s7
    %p68 = scmp.lt.s32.totalorder %s7, 3
    %p69 = pnand %p67, %p68
    %p70 = pneg %p69
    // Predicated region
    $region9: #{vit_encode.14} parent=5 // pred_check
      _
    $region10: #{vit_encode.14} parent=5 // pred_check_branch
      %72 = sbr.rel (%p69) target = $region12
    $region11: #{vit_encode.14} parent=5 // pred_region
      %s73 = ssub.s32 %s7, 1
    $region12: #{vit_encode.14} parent=5 // pred_fallthru
      _
    %p74 = scmp.lt.s32.totalorder %s7, 2
    // Predicated region
    $region13: #{vit_encode.14} parent=5 // pred_check
      %p75 = pneg %p74
    $region14: #{vit_encode.14} parent=5 // pred_check_branch
      %77 = sbr.rel (%p75) target = $region16
    $region15: #{vit_encode.14} parent=5 // pred_region
      // Predicated region
      $region17: #{vit_encode.14} parent=15 // pred_check
        %p78 = pneg %p27
      $region18: #{vit_encode.14} parent=15 // pred_check_branch
        %80 = sbr.rel (%p78) target = $region20
      $region19: #{vit_encode.14} parent=15 // pred_region
        %p81 = scmp.lt.s32.totalorder %s7, 1
        %s82 = scalar_select %p81, %s7, 1
        %s83 = smul.addr %s82, 9
        %s84 = smul.addr %s83, 8
        %s85 = scalar_lea.vmem %s0, %s84
      $region20: #{vit_encode.14} parent=15 // pred_fallthru
        _
    $region16: #{vit_encode.14} parent=5 // pred_fallthru
      _
    %p86 = scmp.le.s32.totalorder 1, %s7
    %p87 = scmp.lt.s32.totalorder %s7, 3
    %p88 = pnand %p86, %p87
    %p89 = pneg %p88
    // Predicated region
    $region21: #{vit_encode.14} parent=5 // pred_check
      _
    $region22: #{vit_encode.14} parent=5 // pred_check_branch
      %91 = sbr.rel (%p88) target = $region24
    $region23: #{vit_encode.14} parent=5 // pred_region
      %s92 = ssub.s32 %s7, 1
      %p93 = scmp.lt.s32.totalorder %s12, 1
      %s94 = scalar_select %p93, %s12, 1
      %s95 = smul.addr %s94, 9
      %s96 = smul.addr %s95, 8
      %s97 = scalar_lea.vmem %s0, %s96
      %p98 = pneg %p33
      %p99 = pneg %p30
      %p100 = pneg %p59
      %p101 = pneg %p56
      %p102 = scmp.lt.s32.totalorder %s12, 1
      %s103 = scalar_select %p102, %s12, 1
      %s104 = smul.addr %s103, 3
      %s105 = smul.addr %s104, 8
      %s106 = scalar_lea.vmem %s1, %s105
      %p107 = scmp.lt.s32.totalorder %s12, 1
      %s108 = scalar_select %p107, %s12, 1
      %s109 = smul.addr %s108, 9
      %s110 = smul.addr %s109, 8
      %s111 = scalar_lea.vmem %s0, %s110
      %p112 = scmp.lt.s32.totalorder %s12, 1
      %s113 = scalar_select %p112, %s12, 1
      %s114 = smul.addr %s113, 3
      %s115 = smul.addr %s114, 8
      %s116 = scalar_lea.vmem %s1, %s115
      %v118 = vlaneseq
      %v119 = vand.u32 %v118, 127
      %vm120 = vcmp.lt.s32.totalorder %v119, 17
      %v121 = vld [vmem:[%s111] sm:$0xff]
      %v122 = vld [vmem:[%s111 + $0x18] sm:$0xff]
      %v123 = vld [vmem:[%s111 + $0x30] sm:$0xff]
      %v124 = vpack.c.bf16 %v122, %v121
      %v125 = vpack.c.bf16 %v123, %v123
      %v126 = vld [vmem:[%s111 + $0x8] sm:$0xff]
      %v127 = vld [vmem:[%s111 + $0x20] sm:$0xff]
      %v128 = vld [vmem:[%s111 + $0x38] sm:$0xff]
      %v129 = vpack.c.bf16 %v127, %v126
      %v130 = vpack.c.bf16 %v128, %v128
      %v131 = vld [vmem:[%s111 + $0x10] sm:$0xff]
      %v132 = vld [vmem:[%s111 + $0x28] sm:$0xff]
      %v133 = vld [vmem:[%s111 + $0x40] sm:$0xff]
      %v134 = vpack.c.bf16 %v132, %v131
      %v135 = vpack.c.bf16 %v133, %v133
      %vm136 = vcmask 261120
      %v138 = vsel %vm136, %v124, 0
      %v141 = vsel %vm136, %v125, 0
      %v144 = vsel %vm136, %v129, 0
      %v147 = vsel %vm136, %v130, 0
      %149 = vmatprep.subr.bf16.mxu0 0
      %150 = vmatpush1.bf16.xpose.msra.mxu0 %v144
      %151 = vmatprep.subr.bf16.mxu0 0
      %152 = vmatpush1.bf16.xpose.msra.mxu0 %v147
      %153 = vmatprep.subr.bf16.mxu0 0
      %154 = vmatpush1.bf16.xpose.msra.mxu0 0
      %155 = vmatprep.subr.bf16.mxu0 0
      %156 = vmatpush1.bf16.xpose.msra.mxu0 0
      %157 = vmatprep.subr.bf16.mxu0 0
      %158 = vmatpush1.bf16.xpose.msra.mxu0 0
      %159 = vmatprep.subr.bf16.mxu0 0
      %160 = vmatpush1.bf16.xpose.msra.mxu0 0
      %161 = vmatprep.subr.bf16.mxu0 0
      %162 = vmatpush1.bf16.xpose.msra.mxu0 0
      %163 = vmatprep.subr.bf16.mxu0 0
      %164 = vmatpush1.bf16.xpose.msra.mxu0 0
      %165 = vmatprep.subr.bf16.mxu0 0
      %166 = vmatpush1.bf16.xpose.msra.mxu0 0
      %167 = vmatprep.subr.bf16.mxu0 0
      %168 = vmatpush1.bf16.xpose.msra.mxu0 0
      %169 = vmatprep.subr.bf16.mxu0 0
      %170 = vmatpush1.bf16.xpose.msra.mxu0 0
      %171 = vmatprep.subr.bf16.mxu0 0
      %172 = vmatpush1.bf16.xpose.msra.mxu0 0
      %173 = vmatprep.subr.bf16.mxu0 0
      %174 = vmatpush1.bf16.xpose.msra.mxu0 0
      %175 = vmatprep.subr.bf16.mxu0 0
      %176 = vmatpush1.bf16.xpose.msra.mxu0 0
      %177 = vmatprep.subr.bf16.mxu0 0
      %178 = vmatpush1.bf16.xpose.msra.mxu0 0
      %179 = vmatprep.subr.bf16.mxu0 0
      %180 = vmatpush1.bf16.xpose.msra.mxu0 0
      %181 = vmatprep.mubr.bf16.mxu0 0
      %182 = vmatmul.mubr.bf16.gmra.mrb[0].mxu0 %v138
      %v183 = vpop.f32.mrb[0].mxu0
      %v184 = vadd.f32 0.0, %v183
      %v185 = vpop.f32.mrb[0].mxu0
      %v186 = vpop.f32.mrb[0].mxu0
      %v187 = vadd.f32 0.0, %v186
      %v188 = vpop.f32.mrb[0].mxu0
      %189 = vmatprep.mubr.bf16.mxu0 0
      %190 = vmatmul.mubr.bf16.gmra.mrb[0].mxu0 %v141
      %v191 = vpop.f32.mrb[0].mxu0
      %v192 = vadd.f32 0.0, %v191
      %v193 = vpop.f32.mrb[0].mxu0
      %v194 = vpop.f32.mrb[0].mxu0
      %v195 = vpop.f32.mrb[0].mxu0
      %196 = vdwg.mxu0
      %v197 = vmul.f32 %v184, 0.17677669
      %v198 = vmul.f32 %v187, 0.17677669
      %v199 = vmul.f32 %v192, 0.17677669
      %v200 = vsel %vm120, %v197, -1e+30
      %v201 = vsel %vm120, %v198, -1e+30
      %v202 = vsel %vm120, %v199, -1e+30
      %vm203 = vcmask 195584
      %v204 = vsel %vm203, %v200, -inf
      %205 = vmax.xlane.f32.xlu0 %v204
      %v206 = vpop.xlane.xlu0 %205
      %v207 = vsel %vm203, %v201, -inf
      %208 = vmax.xlane.f32.xlu0 %v207
      %v209 = vpop.xlane.xlu0 %208
      %v210 = vsel %vm203, %v202, -inf
      %211 = vmax.xlane.f32.xlu0 %v210
      %v212 = vpop.xlane.xlu0 %211
      %v213 = vsub.f32 %v200, %v206
      %v214 = vsub.f32 %v201, %v209
      %v215 = vsub.f32 %v202, %v212
      %v216 = vmul.f32 %v213, 1.442695
      %v217 = vpow.pop %v216
      %v218 = vmul.f32 %v214, 1.442695
      %v219 = vpow.pop %v218
      %v220 = vmul.f32 %v215, 1.442695
      %v221 = vpow.pop %v220
      %v222 = vsel %vm203, %v217, 0.0
      %223 = vadd.xlane.f32.xlu0 %v222
      %v224 = vpop.xlane.xlu0 %223
      %v225 = vsel %vm203, %v219, 0.0
      %226 = vadd.xlane.f32.xlu0 %v225
      %v227 = vpop.xlane.xlu0 %226
      %v228 = vsel %vm203, %v221, 0.0
      %229 = vadd.xlane.f32.xlu0 %v228
      %v230 = vpop.xlane.xlu0 %229
      %v231 = vpack.c.bf16 %v219, %v217
      %v232 = vpack.c.bf16 %v221, %v221
      %v234 = vsel %vm203, %v231, 0
      %v237 = vsel %vm203, %v232, 0
      %vm239 = vcmask 1043456
      %v241 = vsel %vm239, %v135, 0
      %243 = vmatprep.subr.bf16.mxu0 0
      %244 = vmatpush1.bf16.msra.mxu0 %v134
      %245 = vmatprep.subr.bf16.mxu0 0
      %246 = vmatpush1.bf16.msra.mxu0 %v241
      %247 = vmatprep.subr.bf16.mxu0 0
      %248 = vmatpush1.bf16.msra.mxu0 0
      %249 = vmatprep.subr.bf16.mxu0 0
      %250 = vmatpush1.bf16.msra.mxu0 0
      %251 = vmatprep.subr.bf16.mxu0 0
      %252 = vmatpush1.bf16.msra.mxu0 0
      %253 = vmatprep.subr.bf16.mxu0 0
      %254 = vmatpush1.bf16.msra.mxu0 0
      %255 = vmatprep.subr.bf16.mxu0 0
      %256 = vmatpush1.bf16.msra.mxu0 0
      %257 = vmatprep.subr.bf16.mxu0 0
      %258 = vmatpush1.bf16.msra.mxu0 0
      %259 = vmatprep.subr.bf16.mxu0 0
      %260 = vmatpush1.bf16.msra.mxu0 0
      %261 = vmatprep.subr.bf16.mxu0 0
      %262 = vmatpush1.bf16.msra.mxu0 0
      %263 = vmatprep.subr.bf16.mxu0 0
      %264 = vmatpush1.bf16.msra.mxu0 0
      %265 = vmatprep.subr.bf16.mxu0 0
      %266 = vmatpush1.bf16.msra.mxu0 0
      %267 = vmatprep.subr.bf16.mxu0 0
      %268 = vmatpush1.bf16.msra.mxu0 0
      %269 = vmatprep.subr.bf16.mxu0 0
      %270 = vmatpush1.bf16.msra.mxu0 0
      %271 = vmatprep.subr.bf16.mxu0 0
      %272 = vmatpush1.bf16.msra.mxu0 0
      %273 = vmatprep.subr.bf16.mxu0 0
      %274 = vmatpush1.bf16.msra.mxu0 0
      %275 = vmatprep.mubr.bf16.mxu0 0
      %276 = vmatmul.mubr.bf16.gmra.mrb[0].mxu0 %v234
      %v277 = vpop.f32.mrb[0].mxu0
      %v278 = vadd.f32 0.0, %v277
      %v279 = vpop.f32.mrb[0].mxu0
      %v280 = vpop.f32.mrb[0].mxu0
      %v281 = vadd.f32 0.0, %v280
      %v282 = vpop.f32.mrb[0].mxu0
      %283 = vmatprep.mubr.bf16.mxu0 0
      %284 = vmatmul.mubr.bf16.gmra.mrb[0].mxu0 %v237
      %v285 = vpop.f32.mrb[0].mxu0
      %v286 = vadd.f32 0.0, %v285
      %v287 = vpop.f32.mrb[0].mxu0
      %v288 = vpop.f32.mrb[0].mxu0
      %v289 = vpop.f32.mrb[0].mxu0
      %290 = vdwg.mxu0
      %v291 = vrcp.pop %v224
      %v292 = vrcp.pop %v227
      %v293 = vrcp.pop %v230
      %v294 = vmul.f32 %v278, %v291
      %v295 = vmul.f32 %v281, %v292
      %v296 = vmul.f32 %v286, %v293
      %v297 = vld [vmem:[%s111] sm:$0xff]
      %v298 = vld [vmem:[%s111 + $0x18] sm:$0xff]
      %v299 = vld [vmem:[%s111 + $0x30] sm:$0xff]
      %v300 = vpack.c.bf16 %v298, %v297
      %v301 = vpack.c.bf16 %v299, %v299
      %v302 = vld [vmem:[%s111 + $0x8] sm:$0xff]
      %v303 = vld [vmem:[%s111 + $0x20] sm:$0xff]
      %v304 = vld [vmem:[%s111 + $0x38] sm:$0xff]
      %v305 = vpack.c.bf16 %v303, %v302
      %v306 = vpack.c.bf16 %v304, %v304
      %v307 = vld [vmem:[%s111 + $0x10] sm:$0xff]
      %v308 = vld [vmem:[%s111 + $0x28] sm:$0xff]
      %v309 = vld [vmem:[%s111 + $0x40] sm:$0xff]
      %v310 = vpack.c.bf16 %v308, %v307
      %v311 = vpack.c.bf16 %v309, %v309
      %314 = vrot.lane.b32.xlu0 %v300, 96
      %v315 = vpop.permute.xlu0 %314
      %316 = vrot.lane.b32.xlu0 %v301, 96
      %v317 = vpop.permute.xlu0 %316
      %320 = vrot.lane.b32.xlu0 %v305, 96
      %v321 = vpop.permute.xlu0 %320
      %322 = vrot.lane.b32.xlu0 %v306, 96
      %v323 = vpop.permute.xlu0 %322
      %v325 = vsel %vm136, %v315, 0
      %v328 = vsel %vm136, %v317, 0
      %v331 = vsel %vm136, %v321, 0
      %v334 = vsel %vm136, %v323, 0
      %336 = vmatprep.subr.bf16.mxu0 0
      %337 = vmatpush1.bf16.xpose.msra.mxu0 %v331
      %338 = vmatprep.subr.bf16.mxu0 0
      %339 = vmatpush1.bf16.xpose.msra.mxu0 %v334
      %340 = vmatprep.subr.bf16.mxu0 0
      %341 = vmatpush1.bf16.xpose.msra.mxu0 0
      %342 = vmatprep.subr.bf16.mxu0 0
      %343 = vmatpush1.bf16.xpose.msra.mxu0 0
      %344 = vmatprep.subr.bf16.mxu0 0
      %345 = vmatpush1.bf16.xpose.msra.mxu0 0
      %346 = vmatprep.subr.bf16.mxu0 0
      %347 = vmatpush1.bf16.xpose.msra.mxu0 0
      %348 = vmatprep.subr.bf16.mxu0 0
      %349 = vmatpush1.bf16.xpose.msra.mxu0 0
      %350 = vmatprep.subr.bf16.mxu0 0
      %351 = vmatpush1.bf16.xpose.msra.mxu0 0
      %352 = vmatprep.subr.bf16.mxu0 0
      %353 = vmatpush1.bf16.xpose.msra.mxu0 0
      %354 = vmatprep.subr.bf16.mxu0 0
      %355 = vmatpush1.bf16.xpose.msra.mxu0 0
      %356 = vmatprep.subr.bf16.mxu0 0
      %357 = vmatpush1.bf16.xpose.msra.mxu0 0
      %358 = vmatprep.subr.bf16.mxu0 0
      %359 = vmatpush1.bf16.xpose.msra.mxu0 0
      %360 = vmatprep.subr.bf16.mxu0 0
      %361 = vmatpush1.bf16.xpose.msra.mxu0 0
      %362 = vmatprep.subr.bf16.mxu0 0
      %363 = vmatpush1.bf16.xpose.msra.mxu0 0
      %364 = vmatprep.subr.bf16.mxu0 0
      %365 = vmatpush1.bf16.xpose.msra.mxu0 0
      %366 = vmatprep.subr.bf16.mxu0 0
      %367 = vmatpush1.bf16.xpose.msra.mxu0 0
      %368 = vmatprep.mubr.bf16.mxu0 0
      %369 = vmatmul.mubr.bf16.gmra.mrb[0].mxu0 %v325
      %v370 = vpop.f32.mrb[0].mxu0
      %v371 = vadd.f32 0.0, %v370
      %v372 = vpop.f32.mrb[0].mxu0
      %v373 = vpop.f32.mrb[0].mxu0
      %v374 = vadd.f32 0.0, %v373
      %v375 = vpop.f32.mrb[0].mxu0
      %376 = vmatprep.mubr.bf16.mxu0 0
      %377 = vmatmul.mubr.bf16.gmra.mrb[0].mxu0 %v328
      %v378 = vpop.f32.mrb[0].mxu0
      %v379 = vadd.f32 0.0, %v378
      %v380 = vpop.f32.mrb[0].mxu0
      %v381 = vpop.f32.mrb[0].mxu0
      %v382 = vpop.f32.mrb[0].mxu0
      %383 = vdwg.mxu0
      %v384 = vmul.f32 %v371, 0.17677669
      %v385 = vmul.f32 %v374, 0.17677669
      %v386 = vmul.f32 %v379, 0.17677669
      %v387 = vsel %vm120, %v384, -1e+30
      %v388 = vsel %vm120, %v385, -1e+30
      %v389 = vsel %vm120, %v386, -1e+30
      %v390 = vsel %vm203, %v387, -inf
      %391 = vmax.xlane.f32.xlu0 %v390
      %v392 = vpop.xlane.xlu0 %391
      %v393 = vsel %vm203, %v388, -inf
      %394 = vmax.xlane.f32.xlu0 %v393
      %v395 = vpop.xlane.xlu0 %394
      %v396 = vsel %vm203, %v389, -inf
      %397 = vmax.xlane.f32.xlu0 %v396
      %v398 = vpop.xlane.xlu0 %397
      %v399 = vsub.f32 %v387, %v392
      %v400 = vsub.f32 %v388, %v395
      %v401 = vsub.f32 %v389, %v398
      %v402 = vmul.f32 %v399, 1.442695
      %v403 = vpow.pop %v402
      %v404 = vmul.f32 %v400, 1.442695
      %v405 = vpow.pop %v404
      %v406 = vmul.f32 %v401, 1.442695
      %v407 = vpow.pop %v406
      %v408 = vsel %vm203, %v403, 0.0
      %409 = vadd.xlane.f32.xlu0 %v408
      %v410 = vpop.xlane.xlu0 %409
      %v411 = vsel %vm203, %v405, 0.0
      %412 = vadd.xlane.f32.xlu0 %v411
      %v413 = vpop.xlane.xlu0 %412
      %v414 = vsel %vm203, %v407, 0.0
      %415 = vadd.xlane.f32.xlu0 %v414
      %v416 = vpop.xlane.xlu0 %415
      %v417 = vpack.c.bf16 %v405, %v403
      %v418 = vpack.c.bf16 %v407, %v407
      %421 = vrot.lane.b32.xlu0 %v310, 96
      %v422 = vpop.permute.xlu0 %421
      %423 = vrot.lane.b32.xlu0 %v311, 96
      %v424 = vpop.permute.xlu0 %423
      %v427 = vsel %vm203, %v417, 0
      %v430 = vsel %vm203, %v418, 0
      %v433 = vsel %vm239, %v424, 0
      %435 = vmatprep.subr.bf16.mxu0 0
      %436 = vmatpush1.bf16.msra.mxu0 %v422
      %437 = vmatprep.subr.bf16.mxu0 0
      %438 = vmatpush1.bf16.msra.mxu0 %v433
      %439 = vmatprep.subr.bf16.mxu0 0
      %440 = vmatpush1.bf16.msra.mxu0 0
      %441 = vmatprep.subr.bf16.mxu0 0
      %442 = vmatpush1.bf16.msra.mxu0 0
      %443 = vmatprep.subr.bf16.mxu0 0
      %444 = vmatpush1.bf16.msra.mxu0 0
      %445 = vmatprep.subr.bf16.mxu0 0
      %446 = vmatpush1.bf16.msra.mxu0 0
      %447 = vmatprep.subr.bf16.mxu0 0
      %448 = vmatpush1.bf16.msra.mxu0 0
      %449 = vmatprep.subr.bf16.mxu0 0
      %450 = vmatpush1.bf16.msra.mxu0 0
      %451 = vmatprep.subr.bf16.mxu0 0
      %452 = vmatpush1.bf16.msra.mxu0 0
      %453 = vmatprep.subr.bf16.mxu0 0
      %454 = vmatpush1.bf16.msra.mxu0 0
      %455 = vmatprep.subr.bf16.mxu0 0
      %456 = vmatpush1.bf16.msra.mxu0 0
      %457 = vmatprep.subr.bf16.mxu0 0
      %458 = vmatpush1.bf16.msra.mxu0 0
      %459 = vmatprep.subr.bf16.mxu0 0
      %460 = vmatpush1.bf16.msra.mxu0 0
      %461 = vmatprep.subr.bf16.mxu0 0
      %462 = vmatpush1.bf16.msra.mxu0 0
      %463 = vmatprep.subr.bf16.mxu0 0
      %464 = vmatpush1.bf16.msra.mxu0 0
      %465 = vmatprep.subr.bf16.mxu0 0
      %466 = vmatpush1.bf16.msra.mxu0 0
      %467 = vmatprep.mubr.bf16.mxu0 0
      %468 = vmatmul.mubr.bf16.gmra.mrb[0].mxu0 %v427
      %v469 = vpop.f32.mrb[0].mxu0
      %v470 = vadd.f32 0.0, %v469
      %v471 = vpop.f32.mrb[0].mxu0
      %v472 = vpop.f32.mrb[0].mxu0
      %v473 = vadd.f32 0.0, %v472
      %v474 = vpop.f32.mrb[0].mxu0
      %475 = vmatprep.mubr.bf16.mxu0 0
      %476 = vmatmul.mubr.bf16.gmra.mrb[0].mxu0 %v430
      %v477 = vpop.f32.mrb[0].mxu0
      %v478 = vadd.f32 0.0, %v477
      %v479 = vpop.f32.mrb[0].mxu0
      %v480 = vpop.f32.mrb[0].mxu0
      %v481 = vpop.f32.mrb[0].mxu0
      %482 = vdwg.mxu0
      %v483 = vrcp.pop %v410
      %v484 = vrcp.pop %v413
      %v485 = vrcp.pop %v416
      %v486 = vmul.f32 %v470, %v483
      %v487 = vmul.f32 %v473, %v484
      %v488 = vmul.f32 %v478, %v485
      %v489 = vld [vmem:[%s111] sm:$0xff]
      %v490 = vld [vmem:[%s111 + $0x18] sm:$0xff]
      %v491 = vld [vmem:[%s111 + $0x30] sm:$0xff]
      %v492 = vpack.c.bf16 %v490, %v489
      %v493 = vpack.c.bf16 %v491, %v491
      %v494 = vld [vmem:[%s111 + $0x8] sm:$0xff]
      %v495 = vld [vmem:[%s111 + $0x20] sm:$0xff]
      %v496 = vld [vmem:[%s111 + $0x38] sm:$0xff]
      %v497 = vpack.c.bf16 %v495, %v494
      %v498 = vpack.c.bf16 %v496, %v496
      %v499 = vld [vmem:[%s111 + $0x10] sm:$0xff]
      %v500 = vld [vmem:[%s111 + $0x28] sm:$0xff]
      %v501 = vld [vmem:[%s111 + $0x40] sm:$0xff]
      %v502 = vpack.c.bf16 %v500, %v499
      %v503 = vpack.c.bf16 %v501, %v501
      %506 = vrot.lane.b32.xlu0 %v492, 64
      %v507 = vpop.permute.xlu0 %506
      %508 = vrot.lane.b32.xlu0 %v493, 64
      %v509 = vpop.permute.xlu0 %508
      %512 = vrot.lane.b32.xlu0 %v497, 64
      %v513 = vpop.permute.xlu0 %512
      %514 = vrot.lane.b32.xlu0 %v498, 64
      %v515 = vpop.permute.xlu0 %514
      %v517 = vsel %vm136, %v507, 0
      %v520 = vsel %vm136, %v509, 0
      %v523 = vsel %vm136, %v513, 0
      %v526 = vsel %vm136, %v515, 0
      %528 = vmatprep.subr.bf16.mxu0 0
      %529 = vmatpush1.bf16.xpose.msra.mxu0 %v523
      %530 = vmatprep.subr.bf16.mxu0 0
      %531 = vmatpush1.bf16.xpose.msra.mxu0 %v526
      %532 = vmatprep.subr.bf16.mxu0 0
      %533 = vmatpush1.bf16.xpose.msra.mxu0 0
      %534 = vmatprep.subr.bf16.mxu0 0
      %535 = vmatpush1.bf16.xpose.msra.mxu0 0
      %536 = vmatprep.subr.bf16.mxu0 0
      %537 = vmatpush1.bf16.xpose.msra.mxu0 0
      %538 = vmatprep.subr.bf16.mxu0 0
      %539 = vmatpush1.bf16.xpose.msra.mxu0 0
      %540 = vmatprep.subr.bf16.mxu0 0
      %541 = vmatpush1.bf16.xpose.msra.mxu0 0
      %542 = vmatprep.subr.bf16.mxu0 0
      %543 = vmatpush1.bf16.xpose.msra.mxu0 0
      %544 = vmatprep.subr.bf16.mxu0 0
      %545 = vmatpush1.bf16.xpose.msra.mxu0 0
      %546 = vmatprep.subr.bf16.mxu0 0
      %547 = vmatpush1.bf16.xpose.msra.mxu0 0
      %548 = vmatprep.subr.bf16.mxu0 0
      %549 = vmatpush1.bf16.xpose.msra.mxu0 0
      %550 = vmatprep.subr.bf16.mxu0 0
      %551 = vmatpush1.bf16.xpose.msra.mxu0 0
      %552 = vmatprep.subr.bf16.mxu0 0
      %553 = vmatpush1.bf16.xpose.msra.mxu0 0
      %554 = vmatprep.subr.bf16.mxu0 0
      %555 = vmatpush1.bf16.xpose.msra.mxu0 0
      %556 = vmatprep.subr.bf16.mxu0 0
      %557 = vmatpush1.bf16.xpose.msra.mxu0 0
      %558 = vmatprep.subr.bf16.mxu0 0
      %559 = vmatpush1.bf16.xpose.msra.mxu0 0
      %560 = vmatprep.mubr.bf16.mxu0 0
      %561 = vmatmul.mubr.bf16.gmra.mrb[0].mxu0 %v517
      %v562 = vpop.f32.mrb[0].mxu0
      %v563 = vadd.f32 0.0, %v562
      %v564 = vpop.f32.mrb[0].mxu0
      %v565 = vpop.f32.mrb[0].mxu0
      %v566 = vadd.f32 0.0, %v565
      %v567 = vpop.f32.mrb[0].mxu0
      %568 = vmatprep.mubr.bf16.mxu0 0
      %569 = vmatmul.mubr.bf16.gmra.mrb[0].mxu0 %v520
      %v570 = vpop.f32.mrb[0].mxu0
      %v571 = vadd.f32 0.0, %v570
      %v572 = vpop.f32.mrb[0].mxu0
      %v573 = vpop.f32.mrb[0].mxu0
      %v574 = vpop.f32.mrb[0].mxu0
      %575 = vdwg.mxu0
      %v576 = vmul.f32 %v563, 0.17677669
      %v577 = vmul.f32 %v566, 0.17677669
      %v578 = vmul.f32 %v571, 0.17677669
      %v579 = vsel %vm120, %v576, -1e+30
      %v580 = vsel %vm120, %v577, -1e+30
      %v581 = vsel %vm120, %v578, -1e+30
      %v582 = vsel %vm203, %v579, -inf
      %583 = vmax.xlane.f32.xlu0 %v582
      %v584 = vpop.xlane.xlu0 %583
      %v585 = vsel %vm203, %v580, -inf
      %586 = vmax.xlane.f32.xlu0 %v585
      %v587 = vpop.xlane.xlu0 %586
      %v588 = vsel %vm203, %v581, -inf
      %589 = vmax.xlane.f32.xlu0 %v588
      %v590 = vpop.xlane.xlu0 %589
      %v591 = vsub.f32 %v579, %v584
      %v592 = vsub.f32 %v580, %v587
      %v593 = vsub.f32 %v581, %v590
      %v594 = vmul.f32 %v591, 1.442695
      %v595 = vpow.pop %v594
      %v596 = vmul.f32 %v592, 1.442695
      %v597 = vpow.pop %v596
      %v598 = vmul.f32 %v593, 1.442695
      %v599 = vpow.pop %v598
      %v600 = vsel %vm203, %v595, 0.0
      %601 = vadd.xlane.f32.xlu0 %v600
      %v602 = vpop.xlane.xlu0 %601
      %v603 = vsel %vm203, %v597, 0.0
      %604 = vadd.xlane.f32.xlu0 %v603
      %v605 = vpop.xlane.xlu0 %604
      %v606 = vsel %vm203, %v599, 0.0
      %607 = vadd.xlane.f32.xlu0 %v606
      %v608 = vpop.xlane.xlu0 %607
      %v609 = vpack.c.bf16 %v597, %v595
      %v610 = vpack.c.bf16 %v599, %v599
      %613 = vrot.lane.b32.xlu0 %v502, 64
      %v614 = vpop.permute.xlu0 %613
      %615 = vrot.lane.b32.xlu0 %v503, 64
      %v616 = vpop.permute.xlu0 %615
      %v619 = vsel %vm203, %v609, 0
      %v622 = vsel %vm203, %v610, 0
      %v625 = vsel %vm239, %v616, 0
      %627 = vmatprep.subr.bf16.mxu0 0
      %628 = vmatpush1.bf16.msra.mxu0 %v614
      %629 = vmatprep.subr.bf16.mxu0 0
      %630 = vmatpush1.bf16.msra.mxu0 %v625
      %631 = vmatprep.subr.bf16.mxu0 0
      %632 = vmatpush1.bf16.msra.mxu0 0
      %633 = vmatprep.subr.bf16.mxu0 0
      %634 = vmatpush1.bf16.msra.mxu0 0
      %635 = vmatprep.subr.bf16.mxu0 0
      %636 = vmatpush1.bf16.msra.mxu0 0
      %637 = vmatprep.subr.bf16.mxu0 0
      %638 = vmatpush1.bf16.msra.mxu0 0
      %639 = vmatprep.subr.bf16.mxu0 0
      %640 = vmatpush1.bf16.msra.mxu0 0
      %641 = vmatprep.subr.bf16.mxu0 0
      %642 = vmatpush1.bf16.msra.mxu0 0
      %643 = vmatprep.subr.bf16.mxu0 0
      %644 = vmatpush1.bf16.msra.mxu0 0
      %645 = vmatprep.subr.bf16.mxu0 0
      %646 = vmatpush1.bf16.msra.mxu0 0
      %647 = vmatprep.subr.bf16.mxu0 0
      %648 = vmatpush1.bf16.msra.mxu0 0
      %649 = vmatprep.subr.bf16.mxu0 0
      %650 = vmatpush1.bf16.msra.mxu0 0
      %651 = vmatprep.subr.bf16.mxu0 0
      %652 = vmatpush1.bf16.msra.mxu0 0
      %653 = vmatprep.subr.bf16.mxu0 0
      %654 = vmatpush1.bf16.msra.mxu0 0
      %655 = vmatprep.subr.bf16.mxu0 0
      %656 = vmatpush1.bf16.msra.mxu0 0
      %657 = vmatprep.subr.bf16.mxu0 0
      %658 = vmatpush1.bf16.msra.mxu0 0
      %659 = vmatprep.mubr.bf16.mxu0 0
      %660 = vmatmul.mubr.bf16.gmra.mrb[0].mxu0 %v619
      %v661 = vpop.f32.mrb[0].mxu0
      %v662 = vadd.f32 0.0, %v661
      %v663 = vpop.f32.mrb[0].mxu0
      %v664 = vpop.f32.mrb[0].mxu0
      %v665 = vadd.f32 0.0, %v664
      %v666 = vpop.f32.mrb[0].mxu0
      %667 = vmatprep.mubr.bf16.mxu0 0
      %668 = vmatmul.mubr.bf16.gmra.mrb[0].mxu0 %v622
      %v669 = vpop.f32.mrb[0].mxu0
      %v670 = vadd.f32 0.0, %v669
      %v671 = vpop.f32.mrb[0].mxu0
      %v672 = vpop.f32.mrb[0].mxu0
      %v673 = vpop.f32.mrb[0].mxu0
      %674 = vdwg.mxu0
      %v675 = vrcp.pop %v602
      %v676 = vrcp.pop %v605
      %v677 = vrcp.pop %v608
      %v678 = vmul.f32 %v662, %v675
      %v679 = vmul.f32 %v665, %v676
      %v680 = vmul.f32 %v670, %v677
      %v681 = vld [vmem:[%s111] sm:$0xff]
      %v682 = vld [vmem:[%s111 + $0x18] sm:$0xff]
      %v683 = vld [vmem:[%s111 + $0x30] sm:$0xff]
      %v684 = vpack.c.bf16 %v682, %v681
      %v685 = vpack.c.bf16 %v683, %v683
      %v686 = vld [vmem:[%s111 + $0x8] sm:$0xff]
      %v687 = vld [vmem:[%s111 + $0x20] sm:$0xff]
      %v688 = vld [vmem:[%s111 + $0x38] sm:$0xff]
      %v689 = vpack.c.bf16 %v687, %v686
      %v690 = vpack.c.bf16 %v688, %v688
      %v691 = vld [vmem:[%s111 + $0x10] sm:$0xff]
      %v692 = vld [vmem:[%s111 + $0x28] sm:$0xff]
      %v693 = vld [vmem:[%s111 + $0x40] sm:$0xff]
      %v694 = vpack.c.bf16 %v692, %v691
      %v695 = vpack.c.bf16 %v693, %v693
      %698 = vrot.lane.b32.xlu0 %v684, 32
      %v699 = vpop.permute.xlu0 %698
      %700 = vrot.lane.b32.xlu0 %v685, 32
      %v701 = vpop.permute.xlu0 %700
      %704 = vrot.lane.b32.xlu0 %v689, 32
      %v705 = vpop.permute.xlu0 %704
      %706 = vrot.lane.b32.xlu0 %v690, 32
      %v707 = vpop.permute.xlu0 %706
      %v709 = vsel %vm136, %v699, 0
      %v712 = vsel %vm136, %v701, 0
      %v715 = vsel %vm136, %v705, 0
      %v718 = vsel %vm136, %v707, 0
      %720 = vmatprep.subr.bf16.mxu0 0
      %721 = vmatpush1.bf16.xpose.msra.mxu0 %v715
      %722 = vmatprep.subr.bf16.mxu0 0
      %723 = vmatpush1.bf16.xpose.msra.mxu0 %v718
      %724 = vmatprep.subr.bf16.mxu0 0
      %725 = vmatpush1.bf16.xpose.msra.mxu0 0
      %726 = vmatprep.subr.bf16.mxu0 0
      %727 = vmatpush1.bf16.xpose.msra.mxu0 0
      %728 = vmatprep.subr.bf16.mxu0 0
      %729 = vmatpush1.bf16.xpose.msra.mxu0 0
      %730 = vmatprep.subr.bf16.mxu0 0
      %731 = vmatpush1.bf16.xpose.msra.mxu0 0
      %732 = vmatprep.subr.bf16.mxu0 0
      %733 = vmatpush1.bf16.xpose.msra.mxu0 0
      %734 = vmatprep.subr.bf16.mxu0 0
      %735 = vmatpush1.bf16.xpose.msra.mxu0 0
      %736 = vmatprep.subr.bf16.mxu0 0
      %737 = vmatpush1.bf16.xpose.msra.mxu0 0
      %738 = vmatprep.subr.bf16.mxu0 0
      %739 = vmatpush1.bf16.xpose.msra.mxu0 0
      %740 = vmatprep.subr.bf16.mxu0 0
      %741 = vmatpush1.bf16.xpose.msra.mxu0 0
      %742 = vmatprep.subr.bf16.mxu0 0
      %743 = vmatpush1.bf16.xpose.msra.mxu0 0
      %744 = vmatprep.subr.bf16.mxu0 0
      %745 = vmatpush1.bf16.xpose.msra.mxu0 0
      %746 = vmatprep.subr.bf16.mxu0 0
      %747 = vmatpush1.bf16.xpose.msra.mxu0 0
      %748 = vmatprep.subr.bf16.mxu0 0
      %749 = vmatpush1.bf16.xpose.msra.mxu0 0
      %750 = vmatprep.subr.bf16.mxu0 0
      %751 = vmatpush1.bf16.xpose.msra.mxu0 0
      %752 = vmatprep.mubr.bf16.mxu0 0
      %753 = vmatmul.mubr.bf16.gmra.mrb[0].mxu0 %v709
      %v754 = vpop.f32.mrb[0].mxu0
      %v755 = vadd.f32 0.0, %v754
      %v756 = vpop.f32.mrb[0].mxu0
      %v757 = vpop.f32.mrb[0].mxu0
      %v758 = vadd.f32 0.0, %v757
      %v759 = vpop.f32.mrb[0].mxu0
      %760 = vmatprep.mubr.bf16.mxu0 0
      %761 = vmatmul.mubr.bf16.gmra.mrb[0].mxu0 %v712
      %v762 = vpop.f32.mrb[0].mxu0
      %v763 = vadd.f32 0.0, %v762
      %v764 = vpop.f32.mrb[0].mxu0
      %v765 = vpop.f32.mrb[0].mxu0
      %v766 = vpop.f32.mrb[0].mxu0
      %767 = vdwg.mxu0
      %v768 = vmul.f32 %v755, 0.17677669
      %v769 = vmul.f32 %v758, 0.17677669
      %v770 = vmul.f32 %v763, 0.17677669
      %v771 = vsel %vm120, %v768, -1e+30
      %v772 = vsel %vm120, %v769, -1e+30
      %v773 = vsel %vm120, %v770, -1e+30
      %v774 = vsel %vm203, %v771, -inf
      %775 = vmax.xlane.f32.xlu0 %v774
      %v776 = vpop.xlane.xlu0 %775
      %v777 = vsel %vm203, %v772, -inf
      %778 = vmax.xlane.f32.xlu0 %v777
      %v779 = vpop.xlane.xlu0 %778
      %v780 = vsel %vm203, %v773, -inf
      %781 = vmax.xlane.f32.xlu0 %v780
      %v782 = vpop.xlane.xlu0 %781
      %v783 = vsub.f32 %v771, %v776
      %v784 = vsub.f32 %v772, %v779
      %v785 = vsub.f32 %v773, %v782
      %v786 = vmul.f32 %v783, 1.442695
      %v787 = vpow.pop %v786
      %v788 = vmul.f32 %v784, 1.442695
      %v789 = vpow.pop %v788
      %v790 = vmul.f32 %v785, 1.442695
      %v791 = vpow.pop %v790
      %v792 = vsel %vm203, %v787, 0.0
      %793 = vadd.xlane.f32.xlu0 %v792
      %v794 = vpop.xlane.xlu0 %793
      %v795 = vsel %vm203, %v789, 0.0
      %796 = vadd.xlane.f32.xlu0 %v795
      %v797 = vpop.xlane.xlu0 %796
      %v798 = vsel %vm203, %v791, 0.0
      %799 = vadd.xlane.f32.xlu0 %v798
      %v800 = vpop.xlane.xlu0 %799
      %v801 = vpack.c.bf16 %v789, %v787
      %v802 = vpack.c.bf16 %v791, %v791
      %805 = vrot.lane.b32.xlu0 %v694, 32
      %v806 = vpop.permute.xlu0 %805
      %807 = vrot.lane.b32.xlu0 %v695, 32
      %v808 = vpop.permute.xlu0 %807
      %v811 = vsel %vm203, %v801, 0
      %v814 = vsel %vm203, %v802, 0
      %v817 = vsel %vm239, %v808, 0
      %819 = vmatprep.subr.bf16.mxu0 0
      %820 = vmatpush1.bf16.msra.mxu0 %v806
      %821 = vmatprep.subr.bf16.mxu0 0
      %822 = vmatpush1.bf16.msra.mxu0 %v817
      %823 = vmatprep.subr.bf16.mxu0 0
      %824 = vmatpush1.bf16.msra.mxu0 0
      %825 = vmatprep.subr.bf16.mxu0 0
      %826 = vmatpush1.bf16.msra.mxu0 0
      %827 = vmatprep.subr.bf16.mxu0 0
      %828 = vmatpush1.bf16.msra.mxu0 0
      %829 = vmatprep.subr.bf16.mxu0 0
      %830 = vmatpush1.bf16.msra.mxu0 0
      %831 = vmatprep.subr.bf16.mxu0 0
      %832 = vmatpush1.bf16.msra.mxu0 0
      %833 = vmatprep.subr.bf16.mxu0 0
      %834 = vmatpush1.bf16.msra.mxu0 0
      %835 = vmatprep.subr.bf16.mxu0 0
      %836 = vmatpush1.bf16.msra.mxu0 0
      %837 = vmatprep.subr.bf16.mxu0 0
      %838 = vmatpush1.bf16.msra.mxu0 0
      %839 = vmatprep.subr.bf16.mxu0 0
      %840 = vmatpush1.bf16.msra.mxu0 0
      %841 = vmatprep.subr.bf16.mxu0 0
      %842 = vmatpush1.bf16.msra.mxu0 0
      %843 = vmatprep.subr.bf16.mxu0 0
      %844 = vmatpush1.bf16.msra.mxu0 0
      %845 = vmatprep.subr.bf16.mxu0 0
      %846 = vmatpush1.bf16.msra.mxu0 0
      %847 = vmatprep.subr.bf16.mxu0 0
      %848 = vmatpush1.bf16.msra.mxu0 0
      %849 = vmatprep.subr.bf16.mxu0 0
      %850 = vmatpush1.bf16.msra.mxu0 0
      %851 = vmatprep.mubr.bf16.mxu0 0
      %852 = vmatmul.mubr.bf16.gmra.mrb[0].mxu0 %v811
      %v853 = vpop.f32.mrb[0].mxu0
      %v854 = vadd.f32 0.0, %v853
      %v855 = vpop.f32.mrb[0].mxu0
      %v856 = vpop.f32.mrb[0].mxu0
      %v857 = vadd.f32 0.0, %v856
      %v858 = vpop.f32.mrb[0].mxu0
      %859 = vmatprep.mubr.bf16.mxu0 0
      %860 = vmatmul.mubr.bf16.gmra.mrb[0].mxu0 %v814
      %v861 = vpop.f32.mrb[0].mxu0
      %v862 = vadd.f32 0.0, %v861
      %v863 = vpop.f32.mrb[0].mxu0
      %v864 = vpop.f32.mrb[0].mxu0
      %v865 = vpop.f32.mrb[0].mxu0
      %866 = vdwg.mxu0
      %v867 = vrcp.pop %v794
      %v868 = vrcp.pop %v797
      %v869 = vrcp.pop %v800
      %v870 = vmul.f32 %v854, %v867
      %v871 = vmul.f32 %v857, %v868
      %v872 = vmul.f32 %v862, %v869
      %876 = vrot.lane.b32.xlu0 %v486, 32
      %v877 = vpop.permute.xlu0 %876
      %878 = vrot.lane.b32.xlu0 %v487, 32
      %v879 = vpop.permute.xlu0 %878
      %880 = vrot.lane.b32.xlu0 %v488, 32
      %v881 = vpop.permute.xlu0 %880
      %888 = vrot.lane.b32.xlu0 %v678, 64
      %v889 = vpop.permute.xlu0 %888
      %890 = vrot.lane.b32.xlu0 %v679, 64
      %v891 = vpop.permute.xlu0 %890
      %892 = vrot.lane.b32.xlu0 %v680, 64
      %v893 = vpop.permute.xlu0 %892
      %900 = vrot.lane.b32.xlu0 %v870, 96
      %v901 = vpop.permute.xlu0 %900
      %902 = vrot.lane.b32.xlu0 %v871, 96
      %v903 = vpop.permute.xlu0 %902
      %904 = vrot.lane.b32.xlu0 %v872, 96
      %v905 = vpop.permute.xlu0 %904
      %v909 = vsel %vm136, %v294, %v877
      %v910 = vsel %vm136, %v295, %v879
      %v911 = vsel %vm136, %v296, %v881
      %vm912 = vcmask 523264
      %v913 = vsel %vm912, %v909, %v889
      %v914 = vsel %vm912, %v910, %v891
      %v915 = vsel %vm912, %v911, %v893
      %vm916 = vcmask 785408
      %v917 = vsel %vm916, %v913, %v901
      %v918 = vsel %vm916, %v914, %v903
      %v919 = vsel %vm916, %v915, %v905
      %920 = vst [vmem:[%s116] sm:$0xff] %v917
      %921 = vst [vmem:[%s116 + $0x8] sm:$0xff] %v918
      %922 = vst [vmem:[%s116 + $0x10] sm:$0xff] %v919
      %p923 = scmp.lt.s32.totalorder %s12, 1
      %s924 = scalar_select %p923, %s12, 1
      %s925 = smul.addr %s924, 3
      %s926 = smul.addr %s925, 8
      %s927 = scalar_lea.vmem %s1, %s926
      // Predicated region
      $region25: #{vit_encode.14} parent=23 // pred_check
        %p928 = pneg %p56
      $region26: #{vit_encode.14} parent=23 // pred_check_branch
        %930 = sbr.rel (%p928) target = $region28
      $region27: #{vit_encode.14} parent=23 // pred_region
        _
      $region28: #{vit_encode.14} parent=23 // pred_fallthru
        _
    $region24: #{vit_encode.14} parent=5 // pred_fallthru
      _
    %p931 = scmp.le.s32.totalorder 2, %s7
    // Predicated region
    $region29: #{vit_encode.14} parent=5 // pred_check
      %p932 = pneg %p931
    $region30: #{vit_encode.14} parent=5 // pred_check_branch
      %934 = sbr.rel (%p932) target = $region32
    $region31: #{vit_encode.14} parent=5 // pred_region
      %s935 = ssub.s32 %s7, 2
      // Predicated region
      $region33: #{vit_encode.14} parent=31 // pred_check
        %p936 = pneg %p62
      $region34: #{vit_encode.14} parent=31 // pred_check_branch
        %938 = sbr.rel (%p936) target = $region36
      $region35: #{vit_encode.14} parent=31 // pred_region
        %p939 = scmp.lt.s32.totalorder %s13, 1
        %s940 = scalar_select %p939, %s13, 1
        %s941 = smul.addr %s940, 3
        %s942 = smul.addr %s941, 8
        %s943 = scalar_lea.vmem %s1, %s942
      $region36: #{vit_encode.14} parent=31 // pred_fallthru
        _
    $region32: #{vit_encode.14} parent=5 // pred_fallthru
      _
  $region6: #{vit_encode.14} parent=0 // loop_footer
    %s11 = sadd.s32 1, %s7
  $region7: #{vit_encode.14} parent=0 // loop_footer_branch
    %6 = sbr.rel target = $region3
  $region8: #{vit_encode.14} parent=0 // loop_exit
    _

// kernel: vit_encode.23
$region0: #{vit_encode.23}
  #allocation0 [shape = 'u32[]', space=smem, size = 0x4, offset = 0x4, fixed_abs, tag = 'smem constant byte address 0x4 - core index']
  #allocation1 [shape = 'u32[144,128]{1,0:T(1,128)}', space=vmem, size = 0x12000, scoped, tag = 'internal scratch']
  %s0 = inlined_call_operand.vmem [shape: f32[2,24,128], index: 0, kind: input, shape index: {}]
  %s1 = inlined_call_operand.vmem [shape: f32[1,1,128], index: 1, kind: input, shape index: {}]
  %s2 = inlined_call_operand.vmem [shape: f32[1,1,128], index: 2, kind: input, shape index: {}]
  %s3 = inlined_call_operand.hbm [shape: f32[2,1,128], index: 3, kind: output, shape index: {}]
  %s4 = sld [smem:[#allocation0]]
  $region45: #{vit_encode.23} parent=0
    _
  %s6 = ssub.s32 1, %s4
  %s7 = scalar_select 0, %s6, %s4
  $region1: #{vit_encode.23} parent=0
    #allocation2 [shape = 'u8[1024]{0}', space=vmem, size = 0x400, scoped, tag = 'output window, operand 0']
    #allocation3 [shape = 's32[2]{0}', space=sflag, size = 0x8, scoped, tag = 'scoped memory for vit_encode.23']
    %8 = vsyncpa [#allocation3], 0
    %s9 = scalar_lea.sflag [#allocation3], 1
    %10 = vsyncpa %s9, 0
    loop: start=0, step=1, limit=4
    $region2: #{vit_encode.23} parent=1 // loop_pre_header
      _
    $region3: #{vit_encode.23} parent=1 // loop_header
      %s12 = sphi 0, %s16
      %p13 = scmp.ge.s32.totalorder %s12, 4
      %s22 = sphi 0, %s24
      %s25 = sphi 0, %s22
      %s26 = sphi 0, %s25
      %s42 = sphi 0, %s26
      %s46 = sphi 0, %s46
      %s48 = sphi 0, %s46
      %s49 = sphi 0, %s48
      %s63 = sphi 0, %s49
      %s67 = sphi 0, %s67
      %s69 = sphi 0, %s67
      %s70 = sphi 0, %s69
      %s84 = sphi 0, %s70
      %s90 = sphi 0, %s92
      %s93 = sphi 0, %s90
      %s94 = sphi 0, %s93
      %s110 = sphi 0, %s94
    $region4: #{vit_encode.23} parent=1 // loop_header_branch
      %15 = sbr.rel (%p13) target = $region8
    $region5: #{vit_encode.23} parent=1 // loop_body
      %s17 = ssub.s32 %s12, 1
      %s18 = ssub.s32 %s12, 2
      %s19 = sadd.s32 %s12, 1
      %s20 = ssub.s32 %s12, %s19
      %p21 = scmp.eq.s32.totalorder %s20, 0
      %s23 = sadd.s32 %s22, 1
      %s24 = scalar_select %p21, %s22, %s23
      %p27 = pneg %p21
      %p28 = scmp.eq.s32.totalorder %s12, 1
      %p29 = por %p27, %p28
      %p30 = scmp.ne.s32.totalorder %s22, %s25
      %p31 = scmp.eq.s32.totalorder %s12, 0
      %p32 = por %p30, %p31
      %p33 = scmp.ne.s32.totalorder %s22, %s25
      %p34 = scmp.eq.s32.totalorder %s17, 1
      %p35 = por %p33, %p34
      %p36 = scmp.ne.s32.totalorder %s25, %s26
      %p37 = scmp.eq.s32.totalorder %s17, 0
      %p38 = por %p36, %p37
      %p39 = scmp.ne.s32.totalorder %s25, %s26
      %p40 = scmp.eq.s32.totalorder %s18, 1
      %p41 = por %p39, %p40
      %p43 = scmp.ne.s32.totalorder %s26, %s42
      %p44 = scmp.eq.s32.totalorder %s18, 0
      %p45 = por %p43, %p44
      %s47 = sadd.s32 %s46, 1
      %p50 = scmp.eq.s32.totalorder %s12, 1
      %p51 = scmp.ne.s32.totalorder %s46, %s48
      %p52 = scmp.eq.s32.totalorder %s12, 0
      %p53 = por %p51, %p52
      %p54 = scmp.ne.s32.totalorder %s46, %s48
      %p55 = scmp.eq.s32.totalorder %s17, 1
      %p56 = por %p54, %p55
      %p57 = scmp.ne.s32.totalorder %s48, %s49
      %p58 = scmp.eq.s32.totalorder %s17, 0
      %p59 = por %p57, %p58
      %p60 = scmp.ne.s32.totalorder %s48, %s49
      %p61 = scmp.eq.s32.totalorder %s18, 1
      %p62 = por %p60, %p61
      %p64 = scmp.ne.s32.totalorder %s49, %s63
      %p65 = scmp.eq.s32.totalorder %s18, 0
      %p66 = por %p64, %p65
      %s68 = sadd.s32 %s67, 1
      %p71 = scmp.eq.s32.totalorder %s12, 1
      %p72 = scmp.ne.s32.totalorder %s67, %s69
      %p73 = scmp.eq.s32.totalorder %s12, 0
      %p74 = por %p72, %p73
      %p75 = scmp.ne.s32.totalorder %s67, %s69
      %p76 = scmp.eq.s32.totalorder %s17, 1
      %p77 = por %p75, %p76
      %p78 = scmp.ne.s32.totalorder %s69, %s70
      %p79 = scmp.eq.s32.totalorder %s17, 0
      %p80 = por %p78, %p79
      %p81 = scmp.ne.s32.totalorder %s69, %s70
      %p82 = scmp.eq.s32.totalorder %s18, 1
      %p83 = por %p81, %p82
      %p85 = scmp.ne.s32.totalorder %s70, %s84
      %p86 = scmp.eq.s32.totalorder %s18, 0
      %p87 = por %p85, %p86
      %s88 = ssub.s32 %s12, %s19
      %p89 = scmp.eq.s32.totalorder %s88, 0
      %s91 = sadd.s32 %s90, 1
      %s92 = scalar_select %p89, %s90, %s91
      %p95 = pneg %p89
      %p96 = scmp.eq.s32.totalorder %s12, 1
      %p97 = por %p95, %p96
      %p98 = scmp.ne.s32.totalorder %s90, %s93
      %p99 = scmp.eq.s32.totalorder %s12, 0
      %p100 = por %p98, %p99
      %p101 = scmp.ne.s32.totalorder %s90, %s93
      %p102 = scmp.eq.s32.totalorder %s17, 1
      %p103 = por %p101, %p102
      %p104 = scmp.ne.s32.totalorder %s93, %s94
      %p105 = scmp.eq.s32.totalorder %s17, 0
      %p106 = por %p104, %p105
      %p107 = scmp.ne.s32.totalorder %s93, %s94
      %p108 = scmp.eq.s32.totalorder %s18, 1
      %p109 = por %p107, %p108
      %p111 = scmp.ne.s32.totalorder %s94, %s110
      %p112 = scmp.eq.s32.totalorder %s18, 0
      %p113 = por %p111, %p112
      %p114 = scmp.le.s32.totalorder 1, %s12
      %p115 = scmp.lt.s32.totalorder %s12, 3
      %p116 = pnand %p114, %p115
      %p117 = pneg %p116
      // Predicated region
      $region9: #{vit_encode.23} parent=5 // pred_check
        _
      $region10: #{vit_encode.23} parent=5 // pred_check_branch
        %119 = sbr.rel (%p116) target = $region12
      $region11: #{vit_encode.23} parent=5 // pred_region
        %s120 = ssub.s32 %s12, 1
        // Predicated region
        $region13: #{vit_encode.23} parent=11 // pred_check
          %p121 = pneg %p59
        $region14: #{vit_encode.23} parent=11 // pred_check_branch
          %123 = sbr.rel (%p121) target = $region16
        $region15: #{vit_encode.23} parent=11 // pred_region
          _
        $region16: #{vit_encode.23} parent=11 // pred_fallthru
          _
        // Predicated region
        $region17: #{vit_encode.23} parent=11 // pred_check
          %p124 = pneg %p80
        $region18: #{vit_encode.23} parent=11 // pred_check_branch
          %126 = sbr.rel (%p124) target = $region20
        $region19: #{vit_encode.23} parent=11 // pred_region
          _
        $region20: #{vit_encode.23} parent=11 // pred_fallthru
          _
      $region12: #{vit_encode.23} parent=5 // pred_fallthru
        _
      %p127 = scmp.lt.s32.totalorder %s12, 2
      // Predicated region
      $region21: #{vit_encode.23} parent=5 // pred_check
        %p128 = pneg %p127
      $region22: #{vit_encode.23} parent=5 // pred_check_branch
        %130 = sbr.rel (%p128) target = $region24
      $region23: #{vit_encode.23} parent=5 // pred_region
        // Predicated region
        $region25: #{vit_encode.23} parent=23 // pred_check
          %p131 = pneg %p32
        $region26: #{vit_encode.23} parent=23 // pred_check_branch
          %133 = sbr.rel (%p131) target = $region28
        $region27: #{vit_encode.23} parent=23 // pred_region
          %p134 = scmp.lt.s32.totalorder %s12, 1
          %s135 = scalar_select %p134, %s12, 1
          %s136 = smul.addr %s135, 3
          %s137 = smul.addr %s136, 8
          %s138 = scalar_lea.vmem %s0, %s137
        $region28: #{vit_encode.23} parent=23 // pred_fallthru
          _
      $region24: #{vit_encode.23} parent=5 // pred_fallthru
        _
      %p139 = scmp.le.s32.totalorder 1, %s12
      %p140 = scmp.lt.s32.totalorder %s12, 3
      %p141 = pnand %p139, %p140
      %p142 = pneg %p141
      // Predicated region
      $region29: #{vit_encode.23} parent=5 // pred_check
        _
      $region30: #{vit_encode.23} parent=5 // pred_check_branch
        %144 = sbr.rel (%p141) target = $region32
      $region31: #{vit_encode.23} parent=5 // pred_region
        %s145 = ssub.s32 %s12, 1
        %p146 = scmp.lt.s32.totalorder %s17, 1
        %s147 = scalar_select %p146, %s17, 1
        %s148 = smul.addr %s147, 3
        %s149 = smul.addr %s148, 8
        %s150 = scalar_lea.vmem %s0, %s149
        %p151 = pneg %p38
        %p152 = pneg %p35
        %p153 = pneg %p59
        %p154 = pneg %p56
        %p155 = pneg %p80
        %p156 = pneg %p77
        %p157 = pneg %p106
        %p158 = pneg %p103
        %s159 = sand.u32 %s93, 1
        %s160 = scalar_lea.sflag [#allocation3], %s159
        %s161 = sand.u32 %s93, 1
        %s162 = scalar_lea.vmem [#allocation2], %s161
        %p163 = scmp.lt.s32.totalorder %s17, 1
        %s164 = scalar_select %p163, %s17, 1
        %s165 = smul.addr %s164, 3
        %s166 = smul.addr %s165, 8
        %s167 = scalar_lea.vmem %s0, %s166
        %v168 = vld [vmem:[%s167] sm:$0xff]
        %v169 = vld [vmem:[%s167 + $0x8] sm:$0xff]
        %v170 = vld [vmem:[%s167 + $0x10] sm:$0xff]
        %v171 = vlaneseq
        %v172 = vshrl.u32 %v171, 7
        %v173 = vadd.s32 %v172, 8
        %v174 = vadd.s32 %v172, 16
        %vm175 = vcmp.ge.s32.totalorder %v172, 1
        %vm176 = vcmp.ge.s32.totalorder %v173, 1
        %vm177 = vcmp.ge.s32.totalorder %v174, 1
        %vm178 = vcmp.lt.s32.totalorder %v172, 17
        %vm179 = vcmp.lt.s32.totalorder %v173, 17
        %vm180 = vcmp.lt.s32.totalorder %v174, 17
        %vm181 = vmand %vm175, %vm178
        %vm182 = vmand %vm176, %vm179
        %vm183 = vmand %vm177, %vm180
        %v184 = vsel %vm181, %v168, 0.0
        %v185 = vsel %vm182, %v169, 0.0
        %v186 = vsel %vm183, %v170, 0.0
        %v187 = vadd.f32 %v184, %v185
        %v188 = vadd.f32 %v187, %v186
        %v189 = vrot.slane %v188, 4
        %v190 = vadd.f32 %v188, %v189
        %v191 = vrot.slane %v190, 2
        %v192 = vadd.f32 %v190, %v191
        %v193 = vrot.slane %v192, 1
        %v194 = vadd.f32 %v192, %v193
        %v195 = vrcp.pop 16.0
        %v196 = vmul.f32 %v194, %v195
        %v197 = vld [vmem:[%s1] sm:$0x1]
        %v198 = vld [vmem:[%s2] sm:$0x1]
        %199 = vadd.xlane.f32.xlu0 %v196
        %v200 = vpop.xlane.xlu0 %199
        %v201 = vrcp.pop 128.0
        %v202 = vmul.f32 %v200, %v201
        %v203 = vsub.f32 %v196, %v202
        %v204 = vmul.f32 %v203, %v203
        %205 = vadd.xlane.f32.xlu0 %v204
        %v206 = vpop.xlane.xlu0 %205
        %v207 = vmul.f32 %v206, %v201
        %v208 = vadd.f32 %v207, 1e-05
        %v209 = vrsqrt.pop %v208
        %v210 = vmul.f32 %v203, %v209
        %v211 = vmul.f32 %v210, %v197
        %v212 = vadd.f32 %v211, %v198
        %213 = vst [vmem:[%s162] sm:$0x1] %v212
        %s214 = sand.u32 %s93, 1
        %s215 = scalar_lea.sflag [#allocation3], %s214
        %s216 = sand.u32 %s93, 1
        %s217 = scalar_lea.vmem [#allocation2], %s216
        // Predicated region
        $region33: #{vit_encode.23} parent=31 // pred_check
          %p218 = pneg %p103
        $region34: #{vit_encode.23} parent=31 // pred_check_branch
          %220 = sbr.rel (%p218) target = $region36
        $region35: #{vit_encode.23} parent=31 // pred_region
          %s222 = ssub.s32 16, 16
          %223 = vsyncadd %s215, %s222
          %s224 = smul.addr %s17, 16
          %s225 = scalar_lea.hbm %s3, %s224
          %s227 = sshll.u32 %s217, 4
          %s228 = int_to_ptr.vmem [resolvable:$true] %s227
          %230 = dma.vmem_to_hbm [thread:$0]  %s228, 16, %s225, %s215
        $region36: #{vit_encode.23} parent=31 // pred_fallthru
          _
      $region32: #{vit_encode.23} parent=5 // pred_fallthru
        _
      %p231 = scmp.le.s32.totalorder 2, %s12
      // Predicated region
      $region37: #{vit_encode.23} parent=5 // pred_check
        %p232 = pneg %p231
      $region38: #{vit_encode.23} parent=5 // pred_check_branch
        %234 = sbr.rel (%p232) target = $region40
      $region39: #{vit_encode.23} parent=5 // pred_region
        %s235 = ssub.s32 %s12, 2
        // Predicated region
        $region41: #{vit_encode.23} parent=39 // pred_check
          %p236 = pneg %p109
        $region42: #{vit_encode.23} parent=39 // pred_check_branch
          %238 = sbr.rel (%p236) target = $region44
        $region43: #{vit_encode.23} parent=39 // pred_region
          %s239 = sand.u32 %s94, 1
          %s240 = scalar_lea.sflag [#allocation3], %s239
          %s241 = sand.u32 %s94, 1
          %s242 = scalar_lea.vmem [#allocation2], %s241
          %243 = dma.done %s240, 16
        $region44: #{vit_encode.23} parent=39 // pred_fallthru
          _
      $region40: #{vit_encode.23} parent=5 // pred_fallthru
        _
    $region6: #{vit_encode.23} parent=1 // loop_footer
      %s16 = sadd.s32 1, %s12
    $region7: #{vit_encode.23} parent=1 // loop_footer_branch
      %11 = sbr.rel target = $region3
    $region8: #{vit_encode.23} parent=1 // loop_exit
      _
    %244 = vsyncpa [#allocation3], 1
    %s245 = scalar_lea.sflag [#allocation3], 1
    %246 = vsyncpa %s245, 1

// kernel: vit_encode.17
$region0: #{vit_encode.17}
  #allocation0 [shape = 'u32[]', space=smem, size = 0x4, offset = 0x4, fixed_abs, tag = 'smem constant byte address 0x4 - core index']
  #allocation1 [shape = 'u32[144,128]{1,0:T(1,128)}', space=vmem, size = 0x12000, scoped, tag = 'internal scratch']
  %s0 = inlined_call_operand.vmem [shape: f32[48,256], index: 0, kind: input, shape index: {}]
  %s1 = inlined_call_operand.vmem [shape: bf16[256,128], index: 1, kind: input, shape index: {}]
  %s2 = inlined_call_operand.vmem [shape: f32[1,128], index: 2, kind: input, shape index: {}]
  %s3 = inlined_call_operand.vmem [shape: f32[48,128], index: 3, kind: input, shape index: {}]
  %s4 = inlined_call_operand.vmem [shape: f32[48,128], index: 4, kind: output, shape index: {}]
  %s5 = sld [smem:[#allocation0]]
  $region49: #{vit_encode.17} parent=0
    _
  %s7 = ssub.s32 1, %s5
  %s8 = scalar_select 0, %s7, %s5
  loop: start=0, step=1, limit=5
  $region2: #{vit_encode.17} parent=0 // loop_pre_header
    _
  $region3: #{vit_encode.17} parent=0 // loop_header
    %s10 = sphi 0, %s14
    %p11 = scmp.ge.s32.totalorder %s10, 5
    %s20 = sphi 0, %s22
    %s23 = sphi 0, %s20
    %s24 = sphi 0, %s23
    %s40 = sphi 0, %s24
    %s44 = sphi 0, %s44
    %s46 = sphi 0, %s44
    %s47 = sphi 0, %s46
    %s61 = sphi 0, %s47
    %s65 = sphi 0, %s65
    %s67 = sphi 0, %s65
    %s68 = sphi 0, %s67
    %s82 = sphi 0, %s68
    %s88 = sphi 0, %s90
    %s91 = sphi 0, %s88
    %s92 = sphi 0, %s91
    %s108 = sphi 0, %s92
    %s114 = sphi 0, %s116
    %s117 = sphi 0, %s114
    %s118 = sphi 0, %s117
    %s134 = sphi 0, %s118
  $region4: #{vit_encode.17} parent=0 // loop_header_branch
    %13 = sbr.rel (%p11) target = $region8
  $region5: #{vit_encode.17} parent=0 // loop_body
    %s15 = ssub.s32 %s10, 1
    %s16 = ssub.s32 %s10, 2
    %s17 = sadd.s32 %s10, 1
    %s18 = ssub.s32 %s10, %s17
    %p19 = scmp.eq.s32.totalorder %s18, 0
    %s21 = sadd.s32 %s20, 1
    %s22 = scalar_select %p19, %s20, %s21
    %p25 = pneg %p19
    %p26 = scmp.eq.s32.totalorder %s10, 2
    %p27 = por %p25, %p26
    %p28 = scmp.ne.s32.totalorder %s20, %s23
    %p29 = scmp.eq.s32.totalorder %s10, 0
    %p30 = por %p28, %p29
    %p31 = scmp.ne.s32.totalorder %s20, %s23
    %p32 = scmp.eq.s32.totalorder %s15, 2
    %p33 = por %p31, %p32
    %p34 = scmp.ne.s32.totalorder %s23, %s24
    %p35 = scmp.eq.s32.totalorder %s15, 0
    %p36 = por %p34, %p35
    %p37 = scmp.ne.s32.totalorder %s23, %s24
    %p38 = scmp.eq.s32.totalorder %s16, 2
    %p39 = por %p37, %p38
    %p41 = scmp.ne.s32.totalorder %s24, %s40
    %p42 = scmp.eq.s32.totalorder %s16, 0
    %p43 = por %p41, %p42
    %s45 = sadd.s32 %s44, 1
    %p48 = scmp.eq.s32.totalorder %s10, 2
    %p49 = scmp.ne.s32.totalorder %s44, %s46
    %p50 = scmp.eq.s32.totalorder %s10, 0
    %p51 = por %p49, %p50
    %p52 = scmp.ne.s32.totalorder %s44, %s46
    %p53 = scmp.eq.s32.totalorder %s15, 2
    %p54 = por %p52, %p53
    %p55 = scmp.ne.s32.totalorder %s46, %s47
    %p56 = scmp.eq.s32.totalorder %s15, 0
    %p57 = por %p55, %p56
    %p58 = scmp.ne.s32.totalorder %s46, %s47
    %p59 = scmp.eq.s32.totalorder %s16, 2
    %p60 = por %p58, %p59
    %p62 = scmp.ne.s32.totalorder %s47, %s61
    %p63 = scmp.eq.s32.totalorder %s16, 0
    %p64 = por %p62, %p63
    %s66 = sadd.s32 %s65, 1
    %p69 = scmp.eq.s32.totalorder %s10, 2
    %p70 = scmp.ne.s32.totalorder %s65, %s67
    %p71 = scmp.eq.s32.totalorder %s10, 0
    %p72 = por %p70, %p71
    %p73 = scmp.ne.s32.totalorder %s65, %s67
    %p74 = scmp.eq.s32.totalorder %s15, 2
    %p75 = por %p73, %p74
    %p76 = scmp.ne.s32.totalorder %s67, %s68
    %p77 = scmp.eq.s32.totalorder %s15, 0
    %p78 = por %p76, %p77
    %p79 = scmp.ne.s32.totalorder %s67, %s68
    %p80 = scmp.eq.s32.totalorder %s16, 2
    %p81 = por %p79, %p80
    %p83 = scmp.ne.s32.totalorder %s68, %s82
    %p84 = scmp.eq.s32.totalorder %s16, 0
    %p85 = por %p83, %p84
    %s86 = ssub.s32 %s10, %s17
    %p87 = scmp.eq.s32.totalorder %s86, 0
    %s89 = sadd.s32 %s88, 1
    %s90 = scalar_select %p87, %s88, %s89
    %p93 = pneg %p87
    %p94 = scmp.eq.s32.totalorder %s10, 2
    %p95 = por %p93, %p94
    %p96 = scmp.ne.s32.totalorder %s88, %s91
    %p97 = scmp.eq.s32.totalorder %s10, 0
    %p98 = por %p96, %p97
    %p99 = scmp.ne.s32.totalorder %s88, %s91
    %p100 = scmp.eq.s32.totalorder %s15, 2
    %p101 = por %p99, %p100
    %p102 = scmp.ne.s32.totalorder %s91, %s92
    %p103 = scmp.eq.s32.totalorder %s15, 0
    %p104 = por %p102, %p103
    %p105 = scmp.ne.s32.totalorder %s91, %s92
    %p106 = scmp.eq.s32.totalorder %s16, 2
    %p107 = por %p105, %p106
    %p109 = scmp.ne.s32.totalorder %s92, %s108
    %p110 = scmp.eq.s32.totalorder %s16, 0
    %p111 = por %p109, %p110
    %s112 = ssub.s32 %s10, %s17
    %p113 = scmp.eq.s32.totalorder %s112, 0
    %s115 = sadd.s32 %s114, 1
    %s116 = scalar_select %p113, %s114, %s115
    %p119 = pneg %p113
    %p120 = scmp.eq.s32.totalorder %s10, 2
    %p121 = por %p119, %p120
    %p122 = scmp.ne.s32.totalorder %s114, %s117
    %p123 = scmp.eq.s32.totalorder %s10, 0
    %p124 = por %p122, %p123
    %p125 = scmp.ne.s32.totalorder %s114, %s117
    %p126 = scmp.eq.s32.totalorder %s15, 2
    %p127 = por %p125, %p126
    %p128 = scmp.ne.s32.totalorder %s117, %s118
    %p129 = scmp.eq.s32.totalorder %s15, 0
    %p130 = por %p128, %p129
    %p131 = scmp.ne.s32.totalorder %s117, %s118
    %p132 = scmp.eq.s32.totalorder %s16, 2
    %p133 = por %p131, %p132
    %p135 = scmp.ne.s32.totalorder %s118, %s134
    %p136 = scmp.eq.s32.totalorder %s16, 0
    %p137 = por %p135, %p136
    %p138 = scmp.le.s32.totalorder 1, %s10
    %p139 = scmp.lt.s32.totalorder %s10, 4
    %p140 = pnand %p138, %p139
    %p141 = pneg %p140
    // Predicated region
    $region9: #{vit_encode.17} parent=5 // pred_check
      _
    $region10: #{vit_encode.17} parent=5 // pred_check_branch
      %143 = sbr.rel (%p140) target = $region12
    $region11: #{vit_encode.17} parent=5 // pred_region
      %s144 = ssub.s32 %s10, 1
      // Predicated region
      $region13: #{vit_encode.17} parent=11 // pred_check
        %p145 = pneg %p57
      $region14: #{vit_encode.17} parent=11 // pred_check_branch
        %147 = sbr.rel (%p145) target = $region16
      $region15: #{vit_encode.17} parent=11 // pred_region
        _
      $region16: #{vit_encode.17} parent=11 // pred_fallthru
        _
      // Predicated region
      $region17: #{vit_encode.17} parent=11 // pred_check
        %p148 = pneg %p78
      $region18: #{vit_encode.17} parent=11 // pred_check_branch
        %150 = sbr.rel (%p148) target = $region20
      $region19: #{vit_encode.17} parent=11 // pred_region
        _
      $region20: #{vit_encode.17} parent=11 // pred_fallthru
        _
    $region12: #{vit_encode.17} parent=5 // pred_fallthru
      _
    %p151 = scmp.lt.s32.totalorder %s10, 3
    // Predicated region
    $region21: #{vit_encode.17} parent=5 // pred_check
      %p152 = pneg %p151
    $region22: #{vit_encode.17} parent=5 // pred_check_branch
      %154 = sbr.rel (%p152) target = $region24
    $region23: #{vit_encode.17} parent=5 // pred_region
      // Predicated region
      $region25: #{vit_encode.17} parent=23 // pred_check
        %p155 = pneg %p30
      $region26: #{vit_encode.17} parent=23 // pred_check_branch
        %157 = sbr.rel (%p155) target = $region28
      $region27: #{vit_encode.17} parent=23 // pred_region
        %s158 = smul.u32 2, %s10
        %p159 = scmp.lt.s32.totalorder %s158, 5
        %s160 = scalar_select %p159, %s158, 5
        %s161 = smul.addr %s160, 2
        %s162 = smul.addr %s161, 8
        %s163 = scalar_lea.vmem %s0, %s162
        %s164 = smul.u32 2, %s10
      $region28: #{vit_encode.17} parent=23 // pred_fallthru
        _
      // Predicated region
      $region29: #{vit_encode.17} parent=23 // pred_check
        %p165 = pneg %p98
      $region30: #{vit_encode.17} parent=23 // pred_check_branch
        %167 = sbr.rel (%p165) target = $region32
      $region31: #{vit_encode.17} parent=23 // pred_region
        %s168 = smul.u32 2, %s10
        %p169 = scmp.lt.s32.totalorder %s168, 5
        %s170 = scalar_select %p169, %s168, 5
        %s171 = smul.addr %s170, 8
        %s172 = scalar_lea.vmem %s3, %s171
        %s173 = smul.u32 2, %s10
      $region32: #{vit_encode.17} parent=23 // pred_fallthru
        _
    $region24: #{vit_encode.17} parent=5 // pred_fallthru
      _
    %p174 = scmp.le.s32.totalorder 1, %s10
    %p175 = scmp.lt.s32.totalorder %s10, 4
    %p176 = pnand %p174, %p175
    %p177 = pneg %p176
    // Predicated region
    $region33: #{vit_encode.17} parent=5 // pred_check
      _
    $region34: #{vit_encode.17} parent=5 // pred_check_branch
      %179 = sbr.rel (%p176) target = $region36
    $region35: #{vit_encode.17} parent=5 // pred_region
      %s180 = ssub.s32 %s10, 1
      %s181 = smul.u32 2, %s15
      %p182 = scmp.lt.s32.totalorder %s181, 5
      %s183 = scalar_select %p182, %s181, 5
      %s184 = smul.addr %s183, 2
      %s185 = smul.addr %s184, 8
      %s186 = scalar_lea.vmem %s0, %s185
      %p187 = pneg %p36
      %p188 = pneg %p33
      %p189 = pneg %p57
      %p190 = pneg %p54
      %p191 = pneg %p78
      %p192 = pneg %p75
      %s193 = smul.u32 2, %s15
      %p194 = scmp.lt.s32.totalorder %s193, 5
      %s195 = scalar_select %p194, %s193, 5
      %s196 = smul.addr %s195, 8
      %s197 = scalar_lea.vmem %s3, %s196
      %p198 = pneg %p104
      %p199 = pneg %p101
      %p200 = pneg %p130
      %p201 = pneg %p127
      %s202 = smul.u32 2, %s15
      %p203 = scmp.lt.s32.totalorder %s202, 5
      %s204 = scalar_select %p203, %s202, 5
      %s205 = smul.addr %s204, 8
      %s206 = scalar_lea.vmem %s4, %s205
      %s207 = smul.u32 2, %s15
      %p208 = scmp.lt.s32.totalorder %s207, 5
      %s209 = scalar_select %p208, %s207, 5
      %s210 = smul.addr %s209, 2
      %s211 = smul.addr %s210, 8
      %s212 = scalar_lea.vmem %s0, %s211
      %s213 = smul.u32 2, %s15
      %s214 = smul.u32 2, %s15
      %p215 = scmp.lt.s32.totalorder %s214, 5
      %s216 = scalar_select %p215, %s214, 5
      %s217 = smul.addr %s216, 8
      %s218 = scalar_lea.vmem %s3, %s217
      %s219 = smul.u32 2, %s15
      %s220 = smul.u32 2, %s15
      %p221 = scmp.lt.s32.totalorder %s220, 5
      %s222 = scalar_select %p221, %s220, 5
      %s223 = smul.addr %s222, 8
      %s224 = scalar_lea.vmem %s4, %s223
      %s225 = smul.u32 2, %s15
      %v227 = vld [vmem:[%s212] sm:$0xff]
      %v228 = vld [vmem:[%s212 + $0x8] sm:$0xff]
      %v229 = vld [vmem:[%s212 + $0x10] sm:$0xff]
      %v230 = vld [vmem:[%s212 + $0x18] sm:$0xff]
      %v231 = vpack.c.bf16 %v229, %v227
      %v232 = vpack.c.bf16 %v230, %v228
      %v233 = vld [vmem:[%s1] sm:$0xf]
      %v234 = vld [vmem:[%s1 + $0x4] sm:$0xf]
      %v235 = vld [vmem:[%s1 + $0x8] sm:$0xf]
      %v236 = vld [vmem:[%s1 + $0xc] sm:$0xf]
      %v237 = vld [vmem:[%s1 + $0x10] sm:$0xf]
      %v238 = vld [vmem:[%s1 + $0x14] sm:$0xf]
      %v239 = vld [vmem:[%s1 + $0x18] sm:$0xf]
      %v240 = vld [vmem:[%s1 + $0x1c] sm:$0xf]
      %v241 = vld [vmem:[%s1 + $0x20] sm:$0xf]
      %v242 = vld [vmem:[%s1 + $0x24] sm:$0xf]
      %v243 = vld [vmem:[%s1 + $0x28] sm:$0xf]
      %v244 = vld [vmem:[%s1 + $0x2c] sm:$0xf]
      %v245 = vld [vmem:[%s1 + $0x30] sm:$0xf]
      %v246 = vld [vmem:[%s1 + $0x34] sm:$0xf]
      %v247 = vld [vmem:[%s1 + $0x38] sm:$0xf]
      %v248 = vld [vmem:[%s1 + $0x3c] sm:$0xf]
      %v249 = vld [vmem:[%s1 + $0x40] sm:$0xf]
      %v250 = vld [vmem:[%s1 + $0x44] sm:$0xf]
      %v251 = vld [vmem:[%s1 + $0x48] sm:$0xf]
      %v252 = vld [vmem:[%s1 + $0x4c] sm:$0xf]
      %v253 = vld [vmem:[%s1 + $0x50] sm:$0xf]
      %v254 = vld [vmem:[%s1 + $0x54] sm:$0xf]
      %v255 = vld [vmem:[%s1 + $0x58] sm:$0xf]
      %v256 = vld [vmem:[%s1 + $0x5c] sm:$0xf]
      %v257 = vld [vmem:[%s1 + $0x60] sm:$0xf]
      %v258 = vld [vmem:[%s1 + $0x64] sm:$0xf]
      %v259 = vld [vmem:[%s1 + $0x68] sm:$0xf]
      %v260 = vld [vmem:[%s1 + $0x6c] sm:$0xf]
      %v261 = vld [vmem:[%s1 + $0x70] sm:$0xf]
      %v262 = vld [vmem:[%s1 + $0x74] sm:$0xf]
      %v263 = vld [vmem:[%s1 + $0x78] sm:$0xf]
      %v264 = vld [vmem:[%s1 + $0x7c] sm:$0xf]
      %v265 = vld [vmem:[%s2] sm:$0x1]
      %v267 = vlaneseq
      %v268 = vshrl.u32 %v267, 7
      %v269 = vsub.s32 0, %v268
      %v270 = vrot.slane %v265, %v269
      %v304 = vunpack.c.l.b16 %v233
      %v305 = vunpack.c.l.b16 %v234
      %v306 = vunpack.c.l.b16 %v235
      %v307 = vunpack.c.l.b16 %v236
      %v308 = vunpack.c.l.b16 %v237
      %v309 = vunpack.c.l.b16 %v238
      %v310 = vunpack.c.l.b16 %v239
      %v311 = vunpack.c.l.b16 %v240
      %v312 = vunpack.c.l.b16 %v241
      %v313 = vunpack.c.l.b16 %v242
      %v314 = vunpack.c.l.b16 %v243
      %v315 = vunpack.c.l.b16 %v244
      %v316 = vunpack.c.l.b16 %v245
      %v317 = vunpack.c.l.b16 %v246
      %v318 = vunpack.c.l.b16 %v247
      %v319 = vunpack.c.l.b16 %v248
      %v320 = vunpack.c.l.b16 %v249
      %v321 = vunpack.c.l.b16 %v250
      %v322 = vunpack.c.l.b16 %v251
      %v323 = vunpack.c.l.b16 %v252
      %v324 = vunpack.c.l.b16 %v253
      %v325 = vunpack.c.l.b16 %v254
      %v326 = vunpack.c.l.b16 %v255
      %v327 = vunpack.c.l.b16 %v256
      %v328 = vunpack.c.l.b16 %v257
      %v329 = vunpack.c.l.b16 %v258
      %v330 = vunpack.c.l.b16 %v259
      %v331 = vunpack.c.l.b16 %v260
      %v332 = vunpack.c.l.b16 %v261
      %v333 = vunpack.c.l.b16 %v262
      %v334 = vunpack.c.l.b16 %v263
      %v335 = vunpack.c.l.b16 %v264
      %v336 = vpack.c.b16 %v305, %v304
      %v337 = vpack.c.b16 %v307, %v306
      %v338 = vpack.c.b16 %v309, %v308
      %v339 = vpack.c.b16 %v311, %v310
      %v340 = vpack.c.b16 %v313, %v312
      %v341 = vpack.c.b16 %v315, %v314
      %v342 = vpack.c.b16 %v317, %v316
      %v343 = vpack.c.b16 %v319, %v318
      %v344 = vpack.c.b16 %v321, %v320
      %v345 = vpack.c.b16 %v323, %v322
      %v346 = vpack.c.b16 %v325, %v324
      %v347 = vpack.c.b16 %v327, %v326
      %v348 = vpack.c.b16 %v329, %v328
      %v349 = vpack.c.b16 %v331, %v330
      %v350 = vpack.c.b16 %v333, %v332
      %v351 = vpack.c.b16 %v335, %v334
      %368 = vmatprep.subr.bf16.mxu0 0
      %369 = vmatpush1.bf16.msra.mxu0 %v336
      %370 = vmatprep.subr.bf16.mxu0 0
      %371 = vmatpush1.bf16.msra.mxu0 %v337
      %372 = vmatprep.subr.bf16.mxu0 0
      %373 = vmatpush1.bf16.msra.mxu0 %v338
      %374 = vmatprep.subr.bf16.mxu0 0
      %375 = vmatpush1.bf16.msra.mxu0 %v339
      %376 = vmatprep.subr.bf16.mxu0 0
      %377 = vmatpush1.bf16.msra.mxu0 %v340
      %378 = vmatprep.subr.bf16.mxu0 0
      %379 = vmatpush1.bf16.msra.mxu0 %v341
      %380 = vmatprep.subr.bf16.mxu0 0
      %381 = vmatpush1.bf16.msra.mxu0 %v342
      %382 = vmatprep.subr.bf16.mxu0 0
      %383 = vmatpush1.bf16.msra.mxu0 %v343
      %384 = vmatprep.subr.bf16.mxu0 0
      %385 = vmatpush1.bf16.msra.mxu0 %v344
      %386 = vmatprep.subr.bf16.mxu0 0
      %387 = vmatpush1.bf16.msra.mxu0 %v345
      %388 = vmatprep.subr.bf16.mxu0 0
      %389 = vmatpush1.bf16.msra.mxu0 %v346
      %390 = vmatprep.subr.bf16.mxu0 0
      %391 = vmatpush1.bf16.msra.mxu0 %v347
      %392 = vmatprep.subr.bf16.mxu0 0
      %393 = vmatpush1.bf16.msra.mxu0 %v348
      %394 = vmatprep.subr.bf16.mxu0 0
      %395 = vmatpush1.bf16.msra.mxu0 %v349
      %396 = vmatprep.subr.bf16.mxu0 0
      %397 = vmatpush1.bf16.msra.mxu0 %v350
      %398 = vmatprep.subr.bf16.mxu0 0
      %399 = vmatpush1.bf16.msra.mxu0 %v351
      %400 = vmatprep.mubr.bf16.mxu0 %v232
      %401 = vmatmul.mubr.bf16.gmra.mrb[0].mxu0 %v231
      %v402 = vpop.f32.mrb[0].mxu0
      %v403 = vadd.f32 %v270, %v402
      %v404 = vpop.f32.mrb[0].mxu0
      %v405 = vpop.f32.mrb[0].mxu0
      %v406 = vadd.f32 %v270, %v405
      %v407 = vpop.f32.mrb[0].mxu0
      %408 = vdwg.mxu0
      %v409 = vld [vmem:[%s218] sm:$0xff]
      %v410 = vld [vmem:[%s218 + $0x8] sm:$0xff]
      %v411 = vadd.f32 %v403, %v409
      %v412 = vadd.f32 %v406, %v410
      %413 = vst [vmem:[%s224] sm:$0xff] %v411
      %414 = vst [vmem:[%s224 + $0x8] sm:$0xff] %v412
      %s415 = smul.u32 2, %s15
      %p416 = scmp.lt.s32.totalorder %s415, 5
      %s417 = scalar_select %p416, %s415, 5
      %s418 = smul.addr %s417, 8
      %s419 = scalar_lea.vmem %s4, %s418
      // Predicated region
      $region37: #{vit_encode.17} parent=35 // pred_check
        %p420 = pneg %p127
      $region38: #{vit_encode.17} parent=35 // pred_check_branch
        %422 = sbr.rel (%p420) target = $region40
      $region39: #{vit_encode.17} parent=35 // pred_region
        %s423 = smul.u32 2, %s15
      $region40: #{vit_encode.17} parent=35 // pred_fallthru
        _
    $region36: #{vit_encode.17} parent=5 // pred_fallthru
      _
    %p424 = scmp.le.s32.totalorder 2, %s10
    // Predicated region
    $region41: #{vit_encode.17} parent=5 // pred_check
      %p425 = pneg %p424
    $region42: #{vit_encode.17} parent=5 // pred_check_branch
      %427 = sbr.rel (%p425) target = $region44
    $region43: #{vit_encode.17} parent=5 // pred_region
      %s428 = ssub.s32 %s10, 2
      // Predicated region
      $region45: #{vit_encode.17} parent=43 // pred_check
        %p429 = pneg %p133
      $region46: #{vit_encode.17} parent=43 // pred_check_branch
        %431 = sbr.rel (%p429) target = $region48
      $region47: #{vit_encode.17} parent=43 // pred_region
        %s432 = smul.u32 2, %s16
        %p433 = scmp.lt.s32.totalorder %s432, 5
        %s434 = scalar_select %p433, %s432, 5
        %s435 = smul.addr %s434, 8
        %s436 = scalar_lea.vmem %s4, %s435
      $region48: #{vit_encode.17} parent=43 // pred_fallthru
        _
    $region44: #{vit_encode.17} parent=5 // pred_fallthru
      _
  $region6: #{vit_encode.17} parent=0 // loop_footer
    %s14 = sadd.s32 1, %s10
  $region7: #{vit_encode.17} parent=0 // loop_footer_branch
    %9 = sbr.rel target = $region3
  $region8: #{vit_encode.17} parent=0 // loop_exit
    _

// kernel: vit_encode.16
$region0: #{vit_encode.16}
  #allocation0 [shape = 'u32[]', space=smem, size = 0x4, offset = 0x4, fixed_abs, tag = 'smem constant byte address 0x4 - core index']
  #allocation1 [shape = 'u32[144,128]{1,0:T(1,128)}', space=vmem, size = 0x12000, scoped, tag = 'internal scratch']
  %s0 = inlined_call_operand.vmem [shape: f32[48,128], index: 0, kind: input, shape index: {}]
  %s1 = inlined_call_operand.vmem [shape: f32[1,128], index: 1, kind: input, shape index: {}]
  %s2 = inlined_call_operand.vmem [shape: f32[1,128], index: 2, kind: input, shape index: {}]
  %s3 = inlined_call_operand.vmem [shape: bf16[128,256], index: 3, kind: input, shape index: {}]
  %s4 = inlined_call_operand.vmem [shape: f32[1,256], index: 4, kind: input, shape index: {}]
  %s5 = inlined_call_operand.vmem [shape: f32[48,256], index: 5, kind: output, shape index: {}]
  %s6 = sld [smem:[#allocation0]]
  $region53: #{vit_encode.16} parent=0
    _
  %s8 = ssub.s32 1, %s6
  %s9 = scalar_select 0, %s8, %s6
  loop: start=0, step=1, limit=5
  $region2: #{vit_encode.16} parent=0 // loop_pre_header
    _
  $region3: #{vit_encode.16} parent=0 // loop_header
    %s11 = sphi 0, %s15
    %p12 = scmp.ge.s32.totalorder %s11, 5
    %s21 = sphi 0, %s23
    %s24 = sphi 0, %s21
    %s25 = sphi 0, %s24
    %s41 = sphi 0, %s25
    %s45 = sphi 0, %s45
    %s47 = sphi 0, %s45
    %s48 = sphi 0, %s47
    %s62 = sphi 0, %s48
    %s66 = sphi 0, %s66
    %s68 = sphi 0, %s66
    %s69 = sphi 0, %s68
    %s83 = sphi 0, %s69
    %s87 = sphi 0, %s87
    %s89 = sphi 0, %s87
    %s90 = sphi 0, %s89
    %s104 = sphi 0, %s90
    %s108 = sphi 0, %s108
    %s110 = sphi 0, %s108
    %s111 = sphi 0, %s110
    %s125 = sphi 0, %s111
    %s131 = sphi 0, %s133
    %s134 = sphi 0, %s131
    %s135 = sphi 0, %s134
    %s151 = sphi 0, %s135
  $region4: #{vit_encode.16} parent=0 // loop_header_branch
    %14 = sbr.rel (%p12) target = $region8
  $region5: #{vit_encode.16} parent=0 // loop_body
    %s16 = ssub.s32 %s11, 1
    %s17 = ssub.s32 %s11, 2
    %s18 = sadd.s32 %s11, 1
    %s19 = ssub.s32 %s11, %s18
    %p20 = scmp.eq.s32.totalorder %s19, 0
    %s22 = sadd.s32 %s21, 1
    %s23 = scalar_select %p20, %s21, %s22
    %p26 = pneg %p20
    %p27 = scmp.eq.s32.totalorder %s11, 2
    %p28 = por %p26, %p27
    %p29 = scmp.ne.s32.totalorder %s21, %s24
    %p30 = scmp.eq.s32.totalorder %s11, 0
    %p31 = por %p29, %p30
    %p32 = scmp.ne.s32.totalorder %s21, %s24
    %p33 = scmp.eq.s32.totalorder %s16, 2
    %p34 = por %p32, %p33
    %p35 = scmp.ne.s32.totalorder %s24, %s25
    %p36 = scmp.eq.s32.totalorder %s16, 0
    %p37 = por %p35, %p36
    %p38 = scmp.ne.s32.totalorder %s24, %s25
    %p39 = scmp.eq.s32.totalorder %s17, 2
    %p40 = por %p38, %p39
    %p42 = scmp.ne.s32.totalorder %s25, %s41
    %p43 = scmp.eq.s32.totalorder %s17, 0
    %p44 = por %p42, %p43
    %s46 = sadd.s32 %s45, 1
    %p49 = scmp.eq.s32.totalorder %s11, 2
    %p50 = scmp.ne.s32.totalorder %s45, %s47
    %p51 = scmp.eq.s32.totalorder %s11, 0
    %p52 = por %p50, %p51
    %p53 = scmp.ne.s32.totalorder %s45, %s47
    %p54 = scmp.eq.s32.totalorder %s16, 2
    %p55 = por %p53, %p54
    %p56 = scmp.ne.s32.totalorder %s47, %s48
    %p57 = scmp.eq.s32.totalorder %s16, 0
    %p58 = por %p56, %p57
    %p59 = scmp.ne.s32.totalorder %s47, %s48
    %p60 = scmp.eq.s32.totalorder %s17, 2
    %p61 = por %p59, %p60
    %p63 = scmp.ne.s32.totalorder %s48, %s62
    %p64 = scmp.eq.s32.totalorder %s17, 0
    %p65 = por %p63, %p64
    %s67 = sadd.s32 %s66, 1
    %p70 = scmp.eq.s32.totalorder %s11, 2
    %p71 = scmp.ne.s32.totalorder %s66, %s68
    %p72 = scmp.eq.s32.totalorder %s11, 0
    %p73 = por %p71, %p72
    %p74 = scmp.ne.s32.totalorder %s66, %s68
    %p75 = scmp.eq.s32.totalorder %s16, 2
    %p76 = por %p74, %p75
    %p77 = scmp.ne.s32.totalorder %s68, %s69
    %p78 = scmp.eq.s32.totalorder %s16, 0
    %p79 = por %p77, %p78
    %p80 = scmp.ne.s32.totalorder %s68, %s69
    %p81 = scmp.eq.s32.totalorder %s17, 2
    %p82 = por %p80, %p81
    %p84 = scmp.ne.s32.totalorder %s69, %s83
    %p85 = scmp.eq.s32.totalorder %s17, 0
    %p86 = por %p84, %p85
    %s88 = sadd.s32 %s87, 1
    %p91 = scmp.eq.s32.totalorder %s11, 2
    %p92 = scmp.ne.s32.totalorder %s87, %s89
    %p93 = scmp.eq.s32.totalorder %s11, 0
    %p94 = por %p92, %p93
    %p95 = scmp.ne.s32.totalorder %s87, %s89
    %p96 = scmp.eq.s32.totalorder %s16, 2
    %p97 = por %p95, %p96
    %p98 = scmp.ne.s32.totalorder %s89, %s90
    %p99 = scmp.eq.s32.totalorder %s16, 0
    %p100 = por %p98, %p99
    %p101 = scmp.ne.s32.totalorder %s89, %s90
    %p102 = scmp.eq.s32.totalorder %s17, 2
    %p103 = por %p101, %p102
    %p105 = scmp.ne.s32.totalorder %s90, %s104
    %p106 = scmp.eq.s32.totalorder %s17, 0
    %p107 = por %p105, %p106
    %s109 = sadd.s32 %s108, 1
    %p112 = scmp.eq.s32.totalorder %s11, 2
    %p113 = scmp.ne.s32.totalorder %s108, %s110
    %p114 = scmp.eq.s32.totalorder %s11, 0
    %p115 = por %p113, %p114
    %p116 = scmp.ne.s32.totalorder %s108, %s110
    %p117 = scmp.eq.s32.totalorder %s16, 2
    %p118 = por %p116, %p117
    %p119 = scmp.ne.s32.totalorder %s110, %s111
    %p120 = scmp.eq.s32.totalorder %s16, 0
    %p121 = por %p119, %p120
    %p122 = scmp.ne.s32.totalorder %s110, %s111
    %p123 = scmp.eq.s32.totalorder %s17, 2
    %p124 = por %p122, %p123
    %p126 = scmp.ne.s32.totalorder %s111, %s125
    %p127 = scmp.eq.s32.totalorder %s17, 0
    %p128 = por %p126, %p127
    %s129 = ssub.s32 %s11, %s18
    %p130 = scmp.eq.s32.totalorder %s129, 0
    %s132 = sadd.s32 %s131, 1
    %s133 = scalar_select %p130, %s131, %s132
    %p136 = pneg %p130
    %p137 = scmp.eq.s32.totalorder %s11, 2
    %p138 = por %p136, %p137
    %p139 = scmp.ne.s32.totalorder %s131, %s134
    %p140 = scmp.eq.s32.totalorder %s11, 0
    %p141 = por %p139, %p140
    %p142 = scmp.ne.s32.totalorder %s131, %s134
    %p143 = scmp.eq.s32.totalorder %s16, 2
    %p144 = por %p142, %p143
    %p145 = scmp.ne.s32.totalorder %s134, %s135
    %p146 = scmp.eq.s32.totalorder %s16, 0
    %p147 = por %p145, %p146
    %p148 = scmp.ne.s32.totalorder %s134, %s135
    %p149 = scmp.eq.s32.totalorder %s17, 2
    %p150 = por %p148, %p149
    %p152 = scmp.ne.s32.totalorder %s135, %s151
    %p153 = scmp.eq.s32.totalorder %s17, 0
    %p154 = por %p152, %p153
    %p155 = scmp.le.s32.totalorder 1, %s11
    %p156 = scmp.lt.s32.totalorder %s11, 4
    %p157 = pnand %p155, %p156
    %p158 = pneg %p157
    // Predicated region
    $region9: #{vit_encode.16} parent=5 // pred_check
      _
    $region10: #{vit_encode.16} parent=5 // pred_check_branch
      %160 = sbr.rel (%p157) target = $region12
    $region11: #{vit_encode.16} parent=5 // pred_region
      %s161 = ssub.s32 %s11, 1
      // Predicated region
      $region13: #{vit_encode.16} parent=11 // pred_check
        %p162 = pneg %p58
      $region14: #{vit_encode.16} parent=11 // pred_check_branch
        %164 = sbr.rel (%p162) target = $region16
      $region15: #{vit_encode.16} parent=11 // pred_region
        _
      $region16: #{vit_encode.16} parent=11 // pred_fallthru
        _
      // Predicated region
      $region17: #{vit_encode.16} parent=11 // pred_check
        %p165 = pneg %p79
      $region18: #{vit_encode.16} parent=11 // pred_check_branch
        %167 = sbr.rel (%p165) target = $region20
      $region19: #{vit_encode.16} parent=11 // pred_region
        _
      $region20: #{vit_encode.16} parent=11 // pred_fallthru
        _
      // Predicated region
      $region21: #{vit_encode.16} parent=11 // pred_check
        %p168 = pneg %p100
      $region22: #{vit_encode.16} parent=11 // pred_check_branch
        %170 = sbr.rel (%p168) target = $region24
      $region23: #{vit_encode.16} parent=11 // pred_region
        _
      $region24: #{vit_encode.16} parent=11 // pred_fallthru
        _
      // Predicated region
      $region25: #{vit_encode.16} parent=11 // pred_check
        %p171 = pneg %p121
      $region26: #{vit_encode.16} parent=11 // pred_check_branch
        %173 = sbr.rel (%p171) target = $region28
      $region27: #{vit_encode.16} parent=11 // pred_region
        _
      $region28: #{vit_encode.16} parent=11 // pred_fallthru
        _
    $region12: #{vit_encode.16} parent=5 // pred_fallthru
      _
    %p174 = scmp.lt.s32.totalorder %s11, 3
    // Predicated region
    $region29: #{vit_encode.16} parent=5 // pred_check
      %p175 = pneg %p174
    $region30: #{vit_encode.16} parent=5 // pred_check_branch
      %177 = sbr.rel (%p175) target = $region32
    $region31: #{vit_encode.16} parent=5 // pred_region
      // Predicated region
      $region33: #{vit_encode.16} parent=31 // pred_check
        %p178 = pneg %p31
      $region34: #{vit_encode.16} parent=31 // pred_check_branch
        %180 = sbr.rel (%p178) target = $region36
      $region35: #{vit_encode.16} parent=31 // pred_region
        %s181 = smul.u32 2, %s11
        %p182 = scmp.lt.s32.totalorder %s181, 5
        %s183 = scalar_select %p182, %s181, 5
        %s184 = smul.addr %s183, 8
        %s185 = scalar_lea.vmem %s0, %s184
        %s186 = smul.u32 2, %s11
      $region36: #{vit_encode.16} parent=31 // pred_fallthru
        _
    $region32: #{vit_encode.16} parent=5 // pred_fallthru
      _
    %p187 = scmp.le.s32.totalorder 1, %s11
    %p188 = scmp.lt.s32.totalorder %s11, 4
    %p189 = pnand %p187, %p188
    %p190 = pneg %p189
    // Predicated region
    $region37: #{vit_encode.16} parent=5 // pred_check
      _
    $region38: #{vit_encode.16} parent=5 // pred_check_branch
      %192 = sbr.rel (%p189) target = $region40
    $region39: #{vit_encode.16} parent=5 // pred_region
      %s193 = ssub.s32 %s11, 1
      %s194 = smul.u32 2, %s16
      %p195 = scmp.lt.s32.totalorder %s194, 5
      %s196 = scalar_select %p195, %s194, 5
      %s197 = smul.addr %s196, 8
      %s198 = scalar_lea.vmem %s0, %s197
      %p199 = pneg %p37
      %p200 = pneg %p34
      %p201 = pneg %p58
      %p202 = pneg %p55
      %p203 = pneg %p79
      %p204 = pneg %p76
      %p205 = pneg %p100
      %p206 = pneg %p97
      %p207 = pneg %p121
      %p208 = pneg %p118
      %p209 = pneg %p147
      %p210 = pneg %p144
      %s211 = smul.u32 2, %s16
      %p212 = scmp.lt.s32.totalorder %s211, 5
      %s213 = scalar_select %p212, %s211, 5
      %s214 = smul.addr %s213, 2
      %s215 = smul.addr %s214, 8
      %s216 = scalar_lea.vmem %s5, %s215
      %s217 = smul.u32 2, %s16
      %p218 = scmp.lt.s32.totalorder %s217, 5
      %s219 = scalar_select %p218, %s217, 5
      %s220 = smul.addr %s219, 8
      %s221 = scalar_lea.vmem %s0, %s220
      %s222 = smul.u32 2, %s16
      %s223 = smul.u32 2, %s16
      %p224 = scmp.lt.s32.totalorder %s223, 5
      %s225 = scalar_select %p224, %s223, 5
      %s226 = smul.addr %s225, 2
      %s227 = smul.addr %s226, 8
      %s228 = scalar_lea.vmem %s5, %s227
      %s229 = smul.u32 2, %s16
      %v231 = vld [vmem:[%s221] sm:$0xff]
      %v232 = vld [vmem:[%s221 + $0x8] sm:$0xff]
      %v233 = vld [vmem:[%s1] sm:$0x1]
      %v234 = vld [vmem:[%s2] sm:$0x1]
      %v235 = vld [vmem:[%s4] sm:$0x3]
      %236 = vadd.xlane.f32.xlu0 %v231
      %v237 = vpop.xlane.xlu0 %236
      %238 = vadd.xlane.f32.xlu0 %v232
      %v239 = vpop.xlane.xlu0 %238
      %v240 = vrcp.pop 128.0
      %v241 = vmul.f32 %v237, %v240
      %v242 = vmul.f32 %v239, %v240
      %v243 = vsub.f32 %v231, %v241
      %v244 = vsub.f32 %v232, %v242
      %v245 = vmul.f32 %v243, %v243
      %v246 = vmul.f32 %v244, %v244
      %247 = vadd.xlane.f32.xlu0 %v245
      %v248 = vpop.xlane.xlu0 %247
      %249 = vadd.xlane.f32.xlu0 %v246
      %v250 = vpop.xlane.xlu0 %249
      %v251 = vmul.f32 %v248, %v240
      %v252 = vmul.f32 %v250, %v240
      %v253 = vadd.f32 %v251, 1e-05
      %v254 = vadd.f32 %v252, 1e-05
      %v255 = vrsqrt.pop %v253
      %v256 = vrsqrt.pop %v254
      %v257 = vmul.f32 %v243, %v255
      %v258 = vmul.f32 %v244, %v256
      %v260 = vlaneseq
      %v261 = vshrl.u32 %v260, 7
      %v262 = vsub.s32 0, %v261
      %v263 = vrot.slane %v233, %v262
      %v265 = vmul.f32 %v257, %v263
      %v266 = vmul.f32 %v258, %v263
      %v268 = vlaneseq
      %v269 = vshrl.u32 %v268, 7
      %v270 = vsub.s32 0, %v269
      %v271 = vrot.slane %v234, %v270
      %v273 = vadd.f32 %v265, %v271
      %v274 = vadd.f32 %v266, %v271
      %v275 = vpack.c.bf16 %v274, %v273
      %v276 = vld [vmem:[%s3] sm:$0xff]
      %v277 = vld [vmem:[%s3 + $0x8] sm:$0xff]
      %v278 = vld [vmem:[%s3 + $0x10] sm:$0xff]
      %v279 = vld [vmem:[%s3 + $0x18] sm:$0xff]
      %v280 = vld [vmem:[%s3 + $0x20] sm:$0xff]
      %v281 = vld [vmem:[%s3 + $0x28] sm:$0xff]
      %v282 = vld [vmem:[%s3 + $0x30] sm:$0xff]
      %v283 = vld [vmem:[%s3 + $0x38] sm:$0xff]
      %v284 = vld [vmem:[%s3 + $0x40] sm:$0xff]
      %v285 = vld [vmem:[%s3 + $0x48] sm:$0xff]
      %v286 = vld [vmem:[%s3 + $0x50] sm:$0xff]
      %v287 = vld [vmem:[%s3 + $0x58] sm:$0xff]
      %v288 = vld [vmem:[%s3 + $0x60] sm:$0xff]
      %v289 = vld [vmem:[%s3 + $0x68] sm:$0xff]
      %v290 = vld [vmem:[%s3 + $0x70] sm:$0xff]
      %v291 = vld [vmem:[%s3 + $0x78] sm:$0xff]
      %v293 = vlaneseq
      %v294 = vshrl.u32 %v293, 7
      %v295 = vsub.s32 0, %v294
      %v296 = vrot.slane %v235, %v295
      %v297 = vlaneseq
      %v298 = vshrl.u32 %v297, 7
      %v299 = vsub.s32 1, %v298
      %v300 = vrot.slane %v235, %v299
      %v319 = vunpack.c.l.b16 %v276
      %v320 = vunpack.c.h.b16 %v276
      %v321 = vunpack.c.l.b16 %v277
      %v322 = vunpack.c.h.b16 %v277
      %v323 = vunpack.c.l.b16 %v278
      %v324 = vunpack.c.h.b16 %v278
      %v325 = vunpack.c.l.b16 %v279
      %v326 = vunpack.c.h.b16 %v279
      %v327 = vunpack.c.l.b16 %v280
      %v328 = vunpack.c.h.b16 %v280
      %v329 = vunpack.c.l.b16 %v281
      %v330 = vunpack.c.h.b16 %v281
      %v331 = vunpack.c.l.b16 %v282
      %v332 = vunpack.c.h.b16 %v282
      %v333 = vunpack.c.l.b16 %v283
      %v334 = vunpack.c.h.b16 %v283
      %v335 = vunpack.c.l.b16 %v284
      %v336 = vunpack.c.h.b16 %v284
      %v337 = vunpack.c.l.b16 %v285
      %v338 = vunpack.c.h.b16 %v285
      %v339 = vunpack.c.l.b16 %v286
      %v340 = vunpack.c.h.b16 %v286
      %v341 = vunpack.c.l.b16 %v287
      %v342 = vunpack.c.h.b16 %v287
      %v343 = vunpack.c.l.b16 %v288
      %v344 = vunpack.c.h.b16 %v288
      %v345 = vunpack.c.l.b16 %v289
      %v346 = vunpack.c.h.b16 %v289
      %v347 = vunpack.c.l.b16 %v290
      %v348 = vunpack.c.h.b16 %v290
      %v349 = vunpack.c.l.b16 %v291
      %v350 = vunpack.c.h.b16 %v291
      %v351 = vpack.c.b16 %v321, %v319
      %v352 = vpack.c.b16 %v322, %v320
      %v353 = vpack.c.b16 %v325, %v323
      %v354 = vpack.c.b16 %v326, %v324
      %v355 = vpack.c.b16 %v329, %v327
      %v356 = vpack.c.b16 %v330, %v328
      %v357 = vpack.c.b16 %v333, %v331
      %v358 = vpack.c.b16 %v334, %v332
      %v359 = vpack.c.b16 %v337, %v335
      %v360 = vpack.c.b16 %v338, %v336
      %v361 = vpack.c.b16 %v341, %v339
      %v362 = vpack.c.b16 %v342, %v340
      %v363 = vpack.c.b16 %v345, %v343
      %v364 = vpack.c.b16 %v346, %v344
      %v365 = vpack.c.b16 %v349, %v347
      %v366 = vpack.c.b16 %v350, %v348
      %383 = vmatprep.subr.bf16.mxu0 %v352
      %384 = vmatpush1.bf16.msra.mxu0 %v351
      %385 = vmatprep.subr.bf16.mxu0 %v354
      %386 = vmatpush1.bf16.msra.mxu0 %v353
      %387 = vmatprep.subr.bf16.mxu0 %v356
      %388 = vmatpush1.bf16.msra.mxu0 %v355
      %389 = vmatprep.subr.bf16.mxu0 %v358
      %390 = vmatpush1.bf16.msra.mxu0 %v357
      %391 = vmatprep.subr.bf16.mxu0 %v360
      %392 = vmatpush1.bf16.msra.mxu0 %v359
      %393 = vmatprep.subr.bf16.mxu0 %v362
      %394 = vmatpush1.bf16.msra.mxu0 %v361
      %395 = vmatprep.subr.bf16.mxu0 %v364
      %396 = vmatpush1.bf16.msra.mxu0 %v363
      %397 = vmatprep.subr.bf16.mxu0 %v366
      %398 = vmatpush1.bf16.msra.mxu0 %v365
      %399 = vmatprep.subr.bf16.mxu0 0
      %400 = vmatpush1.bf16.msra.mxu0 0
      %401 = vmatprep.subr.bf16.mxu0 0
      %402 = vmatpush1.bf16.msra.mxu0 0
      %403 = vmatprep.subr.bf16.mxu0 0
      %404 = vmatpush1.bf16.msra.mxu0 0
      %405 = vmatprep.subr.bf16.mxu0 0
      %406 = vmatpush1.bf16.msra.mxu0 0
      %407 = vmatprep.subr.bf16.mxu0 0
      %408 = vmatpush1.bf16.msra.mxu0 0
      %409 = vmatprep.subr.bf16.mxu0 0
      %410 = vmatpush1.bf16.msra.mxu0 0
      %411 = vmatprep.subr.bf16.mxu0 0
      %412 = vmatpush1.bf16.msra.mxu0 0
      %413 = vmatprep.subr.bf16.mxu0 0
      %414 = vmatpush1.bf16.msra.mxu0 0
      %415 = vmatprep.mubr.bf16.mxu0 0
      %416 = vmatmul.mubr.bf16.gmra.mrb[0].mxu0 %v275
      %v417 = vpop.f32.mrb[0].mxu0
      %v418 = vadd.f32 %v296, %v417
      %v419 = vpop.f32.mrb[0].mxu0
      %v420 = vadd.f32 %v300, %v419
      %v421 = vpop.f32.mrb[0].mxu0
      %v422 = vadd.f32 %v296, %v421
      %v423 = vpop.f32.mrb[0].mxu0
      %v424 = vadd.f32 %v300, %v423
      %425 = vdwg.mxu0
      %v426 = vmul.f32 %v418, 0.5
      %v427 = vmul.f32 %v420, 0.5
      %v428 = vmul.f32 %v422, 0.5
      %v429 = vmul.f32 %v424, 0.5
      %v430 = vmul.f32 %v418, 0.044715
      %v431 = vmul.f32 %v420, 0.044715
      %v432 = vmul.f32 %v422, 0.044715
      %v433 = vmul.f32 %v424, 0.044715
      %v434 = vmul.f32 %v430, %v418
      %v435 = vmul.f32 %v431, %v420
      %v436 = vmul.f32 %v432, %v422
      %v437 = vmul.f32 %v433, %v424
      %v438 = vmul.f32 %v434, %v418
      %v439 = vmul.f32 %v435, %v420
      %v440 = vmul.f32 %v436, %v422
      %v441 = vmul.f32 %v437, %v424
      %v442 = vadd.f32 %v418, %v438
      %v443 = vadd.f32 %v420, %v439
      %v444 = vadd.f32 %v422, %v440
      %v445 = vadd.f32 %v424, %v441
      %v446 = vmul.f32 %v442, 0.7978846
      %v447 = vmul.f32 %v443, 0.7978846
      %v448 = vmul.f32 %v444, 0.7978846
      %v449 = vmul.f32 %v445, 0.7978846
      %v450 = vtanh.pop %v446
      %v451 = vtanh.pop %v447
      %v452 = vtanh.pop %v448
      %v453 = vtanh.pop %v449
      %v454 = vadd.f32 %v450, 1.0
      %v455 = vadd.f32 %v451, 1.0
      %v456 = vadd.f32 %v452, 1.0
      %v457 = vadd.f32 %v453, 1.0
      %v458 = vmul.f32 %v426, %v454
      %v459 = vmul.f32 %v427, %v455
      %v460 = vmul.f32 %v428, %v456
      %v461 = vmul.f32 %v429, %v457
      %462 = vst [vmem:[%s228] sm:$0xff] %v458
      %463 = vst [vmem:[%s228 + $0x8] sm:$0xff] %v459
      %464 = vst [vmem:[%s228 + $0x10] sm:$0xff] %v460
      %465 = vst [vmem:[%s228 + $0x18] sm:$0xff] %v461
      %s466 = smul.u32 2, %s16
      %p467 = scmp.lt.s32.totalorder %s466, 5
      %s468 = scalar_select %p467, %s466, 5
      %s469 = smul.addr %s468, 2
      %s470 = smul.addr %s469, 8
      %s471 = scalar_lea.vmem %s5, %s470
      // Predicated region
      $region41: #{vit_encode.16} parent=39 // pred_check
        %p472 = pneg %p144
      $region42: #{vit_encode.16} parent=39 // pred_check_branch
        %474 = sbr.rel (%p472) target = $region44
      $region43: #{vit_encode.16} parent=39 // pred_region
        %s475 = smul.u32 2, %s16
      $region44: #{vit_encode.16} parent=39 // pred_fallthru
        _
    $region40: #{vit_encode.16} parent=5 // pred_fallthru
      _
    %p476 = scmp.le.s32.totalorder 2, %s11
    // Predicated region
    $region45: #{vit_encode.16} parent=5 // pred_check
      %p477 = pneg %p476
    $region46: #{vit_encode.16} parent=5 // pred_check_branch
      %479 = sbr.rel (%p477) target = $region48
    $region47: #{vit_encode.16} parent=5 // pred_region
      %s480 = ssub.s32 %s11, 2
      // Predicated region
      $region49: #{vit_encode.16} parent=47 // pred_check
        %p481 = pneg %p150
      $region50: #{vit_encode.16} parent=47 // pred_check_branch
        %483 = sbr.rel (%p481) target = $region52
      $region51: #{vit_encode.16} parent=47 // pred_region
        %s484 = smul.u32 2, %s17
        %p485 = scmp.lt.s32.totalorder %s484, 5
        %s486 = scalar_select %p485, %s484, 5
        %s487 = smul.addr %s486, 2
        %s488 = smul.addr %s487, 8
        %s489 = scalar_lea.vmem %s5, %s488
      $region52: #{vit_encode.16} parent=47 // pred_fallthru
        _
    $region48: #{vit_encode.16} parent=5 // pred_fallthru
      _
  $region6: #{vit_encode.16} parent=0 // loop_footer
    %s15 = sadd.s32 1, %s11
  $region7: #{vit_encode.16} parent=0 // loop_footer_branch
    %10 = sbr.rel target = $region3
  $region8: #{vit_encode.16} parent=0 // loop_exit
    _

</llo_original>
